<compile_context>
chip_gen: v7x
topology: tpu7x:2x2x1
jax: 0.10.0
libtpu: 0.0.40
codegen_flags: <defaults>
</compile_context>

<pallas_src>
import jax
import jax.numpy as jnp
import numpy as np
from jax.experimental import pallas as pl
from jax.experimental.pallas import tpu as pltpu

EPS = 1e-5
LANE = 128
MATMUL_DTYPE = jnp.bfloat16   # MXU inputs; accumulation / BN math stay f32.


def _round_up(x, m):
    return ((x + m - 1) // m) * m


def basic_block_kernel(x_ref, w1_ref, g1_ref, b1_ref, w2_ref, g2_ref, b2_ref,
                       out_ref):
    N, H, W, C = x_ref.shape          # real (unpadded) input channels
    Kp, Cp = w1_ref.shape             # padded contraction dim / padded out channels
    NHW = N * H * W

    x = x_ref[...]                    # (N, H, W, C) f32

    def conv3x3_same(t, w_ref):
        """3x3 'SAME' conv as one im2col matmul: (NHW, Kp)bf16 @ (Kp, Cp)bf16 -> f32."""
        cin = t.shape[-1]
        # Zero-bordered halo built once; 9 taps are static slices of it.
        zcol = jnp.zeros((N, H, 1, cin), t.dtype)
        th = jnp.concatenate([zcol, t, zcol], axis=2)            # (N, H,   W+2, cin)
        zrow = jnp.zeros((N, 1, W + 2, cin), t.dtype)
        th = jnp.concatenate([zrow, th, zrow], axis=1)           # (N, H+2, W+2, cin)
        # Tap order (ky-major, kx-minor, channel innermost) matches the HWIO-flattened
        # weight rows prepared in the wrapper.
        taps = [th[:, dy:dy + H, dx:dx + W, :]
                for dy in range(3) for dx in range(3)]
        patch = jnp.concatenate(taps, axis=-1).reshape(NHW, 9 * cin)
        kpad = Kp - 9 * cin
        if kpad:                                                  # pad K to 128-multiple
            patch = jnp.concatenate(
                [patch, jnp.zeros((NHW, kpad), patch.dtype)], axis=-1)
        return jnp.dot(patch.astype(MATMUL_DTYPE), w_ref[...],
                       preferred_element_type=jnp.float32)        # (NHW, Cp) f32

    def bn(a, g, b):
        # Training-mode batch stats; centered (numerically stable) biased variance.
        mean = jnp.mean(a, axis=0, keepdims=True)
        d = a - mean
        var = jnp.mean(d * d, axis=0, keepdims=True)
        return d * jax.lax.rsqrt(var + EPS) * g + b

    # conv1 -> bn1 -> relu   (Cp-wide so the elementwise ops are lane-dense;
    # padded output channels are exactly zero: zero weight cols, zero gamma/beta)
    a1 = conv3x3_same(x, w1_ref)                                  # (NHW, Cp)
    h1 = jnp.maximum(bn(a1, g1_ref[...], b1_ref[...]), 0.0)

    # Only the C real channels feed conv2's contraction (padded lanes are zero anyway).
    y = h1[:, :C].reshape(N, H, W, C)

    # conv2 -> bn2
    a2 = conv3x3_same(y, w2_ref)
    z = bn(a2, g2_ref[...], b2_ref[...]).reshape(N, H, W, Cp)

    # Residual add + final ReLU; pad identity to Cp once for a lane-dense store.
    pad_c = Cp - C
    if pad_c:
        xp = jnp.concatenate([x, jnp.zeros((N, H, W, pad_c), x.dtype)], axis=-1)
    else:
        xp = x
    out_ref[...] = jnp.maximum(z + xp, 0.0)


def basic_block_pallas(x_nchw, w1_oihw, g1, b1, w2_oihw, g2, b2):
    """Training-mode forward of BasicBlock (stride=1, downsample=None).

    x_nchw: (N, C, H, W) f32; conv weights in PyTorch OIHW layout; bn params (C,).
    Returns (N, C, H, W) f32.
    """
    N, C, H, W = x_nchw.shape
    assert w1_oihw.shape == (C, C, 3, 3) and w2_oihw.shape == (C, C, 3, 3), \
        "identity add requires in_channels == out_channels, stride=1"

    Cp = _round_up(C, LANE)            # lane-dense out-channel count
    Kp = _round_up(9 * C, LANE)        # padded contraction dim (9*C real rows)

    x = jnp.transpose(x_nchw, (0, 2, 3, 1)).astype(jnp.float32)   # NHWC, real C

    def prep_w(w_oihw):
        w = jnp.transpose(w_oihw, (2, 3, 1, 0)).astype(jnp.float32)   # HWIO
        w = w.reshape(9 * C, C)                                        # (9C, C)
        w = jnp.pad(w, ((0, Kp - 9 * C), (0, Cp - C)))                 # (Kp, Cp)
        return w.astype(MATMUL_DTYPE)

    def prep_v(v):
        return jnp.pad(v.astype(jnp.float32), (0, Cp - C)).reshape(1, Cp)

    vmem = pl.BlockSpec(memory_space=pltpu.MemorySpace.VMEM)
    out = pl.pallas_call(
        basic_block_kernel,
        out_shape=jax.ShapeDtypeStruct((N, H, W, Cp), jnp.float32),
        in_specs=[vmem] * 7,
        out_specs=vmem,
        compiler_params=pltpu.CompilerParams(vmem_limit_bytes=32 * 1024 * 1024),
    )(x, prep_w(w1_oihw), prep_v(g1), prep_v(b1),
      prep_w(w2_oihw), prep_v(g2), prep_v(b2))

    return jnp.transpose(out[..., :C], (0, 3, 1, 2))


def basic_block_reference(x_nchw, w1_oihw, g1, b1, w2_oihw, g2, b2):
    """Pure-JAX (XLA, f32) reference for validation."""
    x = jnp.transpose(x_nchw, (0, 2, 3, 1)).astype(jnp.float32)
    w1 = jnp.transpose(w1_oihw, (2, 3, 1, 0))
    w2 = jnp.transpose(w2_oihw, (2, 3, 1, 0))

    def conv(a, w):
        return jax.lax.conv_general_dilated(
            a, w, window_strides=(1, 1), padding="SAME",
            dimension_numbers=("NHWC", "HWIO", "NHWC"))

    def bn(a, g, b):
        m = jnp.mean(a, axis=(0, 1, 2))
        v = jnp.var(a, axis=(0, 1, 2))   # biased variance, as PyTorch normalizes with
        return (a - m) * jax.lax.rsqrt(v + EPS) * g + b

    y = jnp.maximum(bn(conv(x, w1), g1, b1), 0.0)
    z = bn(conv(y, w2), g2, b2)
    return jnp.transpose(jnp.maximum(z + x, 0.0), (0, 3, 1, 2))


if __name__ == "__main__":
    # Small shapes consistent with the module: batch=2, channels=4, spatial=16.
    N, C, H, W = 2, 4, 16, 16

    key = jax.random.PRNGKey(0)
    k_x, k_w1, k_w2, k_g1, k_b1, k_g2, k_b2 = jax.random.split(key, 7)

    x = jax.random.normal(k_x, (N, C, H, W), jnp.float32)

    # PyTorch-shaped params: conv (Cout, Cin, 3, 3); bn (Cout,).
    w1_oihw = 0.2 * jax.random.normal(k_w1, (C, C, 3, 3), jnp.float32)
    w2_oihw = 0.2 * jax.random.normal(k_w2, (C, C, 3, 3), jnp.float32)
    g1 = 1.0 + 0.1 * jax.random.normal(k_g1, (C,), jnp.float32)
    b1 = 0.1 * jax.random.normal(k_b1, (C,), jnp.float32)
    g2 = 1.0 + 0.1 * jax.random.normal(k_g2, (C,), jnp.float32)
    b2 = 0.1 * jax.random.normal(k_b2, (C,), jnp.float32)

    out = basic_block_pallas(x, w1_oihw, g1, b1, w2_oihw, g2, b2)
    out = jax.block_until_ready(out)

    ref = basic_block_reference(x, w1_oihw, g1, b1, w2_oihw, g2, b2)
    ref = jax.block_until_ready(ref)

    # bf16 MXU inputs (f32 accumulation / BN math) => looser tolerance vs f32 reference.
    np.testing.assert_allclose(np.asarray(out), np.asarray(ref), atol=3e-2, rtol=3e-2)
    print("KERNEL_OK")
</pallas_src>

<mosaic_0001>
module attributes {stable_mosaic.version = 11 : i64} {
  func.func @basic_block_kernel(%arg0: memref<2x16x16x4xf32, #tpu.memory_space<vmem>>, %arg1: memref<128x128xbf16, #tpu.memory_space<vmem>>, %arg2: memref<1x128xf32, #tpu.memory_space<vmem>>, %arg3: memref<1x128xf32, #tpu.memory_space<vmem>>, %arg4: memref<128x128xbf16, #tpu.memory_space<vmem>>, %arg5: memref<1x128xf32, #tpu.memory_space<vmem>>, %arg6: memref<1x128xf32, #tpu.memory_space<vmem>>, %arg7: memref<2x16x16x128xf32, #tpu.memory_space<vmem>>) attributes {dimension_semantics = [], scalar_prefetch = 0 : i64, scratch_operands = 0 : i64, tpu.core_type = #tpu.core_type<tc>} {
    %c0 = arith.constant 0 : index
    %c0_0 = arith.constant 0 : index
    %c0_1 = arith.constant 0 : index
    %c0_2 = arith.constant 0 : index
    %0 = vector.load %arg0[%c0, %c0_0, %c0_1, %c0_2] : memref<2x16x16x4xf32, #tpu.memory_space<vmem>>, vector<2x16x16x4xf32>
    %cst = arith.constant 0.000000e+00 : f32
    %1 = vector.broadcast %cst : f32 to vector<2x16x1x4xf32>
    %2 = tpu.concatenate %1, %0, %1 in 2 : vector<2x16x1x4xf32>, vector<2x16x16x4xf32>, vector<2x16x1x4xf32> -> vector<2x16x18x4xf32>
    %cst_3 = arith.constant 0.000000e+00 : f32
    %3 = vector.broadcast %cst_3 : f32 to vector<2x1x18x4xf32>
    %4 = tpu.concatenate %3, %2, %3 in 1 : vector<2x1x18x4xf32>, vector<2x16x18x4xf32>, vector<2x1x18x4xf32> -> vector<2x18x18x4xf32>
    %5 = vector.extract_strided_slice %4 {offsets = [0, 0, 0, 0], sizes = [2, 16, 16, 4], strides = [1, 1, 1, 1]} : vector<2x18x18x4xf32> to vector<2x16x16x4xf32>
    %6 = vector.extract_strided_slice %4 {offsets = [0, 0, 1, 0], sizes = [2, 16, 16, 4], strides = [1, 1, 1, 1]} : vector<2x18x18x4xf32> to vector<2x16x16x4xf32>
    %7 = vector.extract_strided_slice %4 {offsets = [0, 0, 2, 0], sizes = [2, 16, 16, 4], strides = [1, 1, 1, 1]} : vector<2x18x18x4xf32> to vector<2x16x16x4xf32>
    %8 = vector.extract_strided_slice %4 {offsets = [0, 1, 0, 0], sizes = [2, 16, 16, 4], strides = [1, 1, 1, 1]} : vector<2x18x18x4xf32> to vector<2x16x16x4xf32>
    %9 = vector.extract_strided_slice %4 {offsets = [0, 1, 1, 0], sizes = [2, 16, 16, 4], strides = [1, 1, 1, 1]} : vector<2x18x18x4xf32> to vector<2x16x16x4xf32>
    %10 = vector.extract_strided_slice %4 {offsets = [0, 1, 2, 0], sizes = [2, 16, 16, 4], strides = [1, 1, 1, 1]} : vector<2x18x18x4xf32> to vector<2x16x16x4xf32>
    %11 = vector.extract_strided_slice %4 {offsets = [0, 2, 0, 0], sizes = [2, 16, 16, 4], strides = [1, 1, 1, 1]} : vector<2x18x18x4xf32> to vector<2x16x16x4xf32>
    %12 = vector.extract_strided_slice %4 {offsets = [0, 2, 1, 0], sizes = [2, 16, 16, 4], strides = [1, 1, 1, 1]} : vector<2x18x18x4xf32> to vector<2x16x16x4xf32>
    %13 = vector.extract_strided_slice %4 {offsets = [0, 2, 2, 0], sizes = [2, 16, 16, 4], strides = [1, 1, 1, 1]} : vector<2x18x18x4xf32> to vector<2x16x16x4xf32>
    %14 = tpu.concatenate %5, %6, %7, %8, %9, %10, %11, %12, %13 in 3 : vector<2x16x16x4xf32>, vector<2x16x16x4xf32>, vector<2x16x16x4xf32>, vector<2x16x16x4xf32>, vector<2x16x16x4xf32>, vector<2x16x16x4xf32>, vector<2x16x16x4xf32>, vector<2x16x16x4xf32>, vector<2x16x16x4xf32> -> vector<2x16x16x36xf32>
    %15 = vector.shape_cast %14 : vector<2x16x16x36xf32> to vector<512x36xf32>
    %cst_4 = arith.constant 0.000000e+00 : f32
    %16 = vector.broadcast %cst_4 : f32 to vector<512x92xf32>
    %17 = tpu.concatenate %15, %16 in 1 : vector<512x36xf32>, vector<512x92xf32> -> vector<512x128xf32>
    %18 = arith.truncf %17 : vector<512x128xf32> to vector<512x128xbf16>
    %c0_5 = arith.constant 0 : index
    %c0_6 = arith.constant 0 : index
    %19 = vector.load %arg1[%c0_5, %c0_6] : memref<128x128xbf16, #tpu.memory_space<vmem>>, vector<128x128xbf16>
    %cst_7 = arith.constant dense<0.000000e+00> : vector<512x128xf32>
    %20 = tpu.matmul %18, %19, %cst_7 {dimension_numbers = #tpu.dot_dimension_numbers<[1], [0], [0], [1], [0, 0, 1, 1], [], []>} : vector<512x128xbf16>, vector<128x128xbf16>, vector<512x128xf32> -> vector<512x128xf32>
    %c0_8 = arith.constant 0 : index
    %c0_9 = arith.constant 0 : index
    %21 = vector.load %arg2[%c0_8, %c0_9] : memref<1x128xf32, #tpu.memory_space<vmem>>, vector<1x128xf32>
    %c0_10 = arith.constant 0 : index
    %c0_11 = arith.constant 0 : index
    %22 = vector.load %arg3[%c0_10, %c0_11] : memref<1x128xf32, #tpu.memory_space<vmem>>, vector<1x128xf32>
    %cst_12 = arith.constant dense<0.000000e+00> : vector<128xf32>
    %23 = vector.multi_reduction <add>, %20, %cst_12 [0] : vector<512x128xf32> to vector<128xf32>
    %24 = vector.shape_cast %23 : vector<128xf32> to vector<1x128xf32>
    %cst_13 = arith.constant 5.120000e+02 : f32
    %25 = vector.broadcast %cst_13 : f32 to vector<1x128xf32>
    %26 = arith.divf %24, %25 : vector<1x128xf32>
    %27 = vector.broadcast %26 : vector<1x128xf32> to vector<512x128xf32>
    %28 = arith.subf %20, %27 : vector<512x128xf32>
    %29 = arith.mulf %28, %28 : vector<512x128xf32>
    %cst_14 = arith.constant dense<0.000000e+00> : vector<128xf32>
    %30 = vector.multi_reduction <add>, %29, %cst_14 [0] : vector<512x128xf32> to vector<128xf32>
    %31 = vector.shape_cast %30 : vector<128xf32> to vector<1x128xf32>
    %cst_15 = arith.constant 5.120000e+02 : f32
    %32 = vector.broadcast %cst_15 : f32 to vector<1x128xf32>
    %33 = arith.divf %31, %32 : vector<1x128xf32>
    %cst_16 = arith.constant 9.99999974E-6 : f32
    %34 = vector.broadcast %cst_16 : f32 to vector<1x128xf32>
    %35 = arith.addf %33, %34 : vector<1x128xf32>
    %36 = math.rsqrt %35 : vector<1x128xf32>
    %37 = vector.broadcast %36 : vector<1x128xf32> to vector<512x128xf32>
    %38 = arith.mulf %28, %37 : vector<512x128xf32>
    %39 = vector.broadcast %21 : vector<1x128xf32> to vector<512x128xf32>
    %40 = arith.mulf %38, %39 : vector<512x128xf32>
    %41 = vector.broadcast %22 : vector<1x128xf32> to vector<512x128xf32>
    %42 = arith.addf %40, %41 : vector<512x128xf32>
    %cst_17 = arith.constant 0.000000e+00 : f32
    %43 = vector.broadcast %cst_17 : f32 to vector<512x128xf32>
    %44 = arith.maximumf %42, %43 : vector<512x128xf32>
    %45 = vector.extract_strided_slice %44 {offsets = [0, 0], sizes = [512, 4], strides = [1, 1]} : vector<512x128xf32> to vector<512x4xf32>
    %46 = vector.shape_cast %45 : vector<512x4xf32> to vector<2x16x16x4xf32>
    %cst_18 = arith.constant 0.000000e+00 : f32
    %47 = vector.broadcast %cst_18 : f32 to vector<2x16x1x4xf32>
    %48 = tpu.concatenate %47, %46, %47 in 2 : vector<2x16x1x4xf32>, vector<2x16x16x4xf32>, vector<2x16x1x4xf32> -> vector<2x16x18x4xf32>
    %cst_19 = arith.constant 0.000000e+00 : f32
    %49 = vector.broadcast %cst_19 : f32 to vector<2x1x18x4xf32>
    %50 = tpu.concatenate %49, %48, %49 in 1 : vector<2x1x18x4xf32>, vector<2x16x18x4xf32>, vector<2x1x18x4xf32> -> vector<2x18x18x4xf32>
    %51 = vector.extract_strided_slice %50 {offsets = [0, 0, 0, 0], sizes = [2, 16, 16, 4], strides = [1, 1, 1, 1]} : vector<2x18x18x4xf32> to vector<2x16x16x4xf32>
    %52 = vector.extract_strided_slice %50 {offsets = [0, 0, 1, 0], sizes = [2, 16, 16, 4], strides = [1, 1, 1, 1]} : vector<2x18x18x4xf32> to vector<2x16x16x4xf32>
    %53 = vector.extract_strided_slice %50 {offsets = [0, 0, 2, 0], sizes = [2, 16, 16, 4], strides = [1, 1, 1, 1]} : vector<2x18x18x4xf32> to vector<2x16x16x4xf32>
    %54 = vector.extract_strided_slice %50 {offsets = [0, 1, 0, 0], sizes = [2, 16, 16, 4], strides = [1, 1, 1, 1]} : vector<2x18x18x4xf32> to vector<2x16x16x4xf32>
    %55 = vector.extract_strided_slice %50 {offsets = [0, 1, 1, 0], sizes = [2, 16, 16, 4], strides = [1, 1, 1, 1]} : vector<2x18x18x4xf32> to vector<2x16x16x4xf32>
    %56 = vector.extract_strided_slice %50 {offsets = [0, 1, 2, 0], sizes = [2, 16, 16, 4], strides = [1, 1, 1, 1]} : vector<2x18x18x4xf32> to vector<2x16x16x4xf32>
    %57 = vector.extract_strided_slice %50 {offsets = [0, 2, 0, 0], sizes = [2, 16, 16, 4], strides = [1, 1, 1, 1]} : vector<2x18x18x4xf32> to vector<2x16x16x4xf32>
    %58 = vector.extract_strided_slice %50 {offsets = [0, 2, 1, 0], sizes = [2, 16, 16, 4], strides = [1, 1, 1, 1]} : vector<2x18x18x4xf32> to vector<2x16x16x4xf32>
    %59 = vector.extract_strided_slice %50 {offsets = [0, 2, 2, 0], sizes = [2, 16, 16, 4], strides = [1, 1, 1, 1]} : vector<2x18x18x4xf32> to vector<2x16x16x4xf32>
    %60 = tpu.concatenate %51, %52, %53, %54, %55, %56, %57, %58, %59 in 3 : vector<2x16x16x4xf32>, vector<2x16x16x4xf32>, vector<2x16x16x4xf32>, vector<2x16x16x4xf32>, vector<2x16x16x4xf32>, vector<2x16x16x4xf32>, vector<2x16x16x4xf32>, vector<2x16x16x4xf32>, vector<2x16x16x4xf32> -> vector<2x16x16x36xf32>
    %61 = vector.shape_cast %60 : vector<2x16x16x36xf32> to vector<512x36xf32>
    %cst_20 = arith.constant 0.000000e+00 : f32
    %62 = vector.broadcast %cst_20 : f32 to vector<512x92xf32>
    %63 = tpu.concatenate %61, %62 in 1 : vector<512x36xf32>, vector<512x92xf32> -> vector<512x128xf32>
    %64 = arith.truncf %63 : vector<512x128xf32> to vector<512x128xbf16>
    %c0_21 = arith.constant 0 : index
    %c0_22 = arith.constant 0 : index
    %65 = vector.load %arg4[%c0_21, %c0_22] : memref<128x128xbf16, #tpu.memory_space<vmem>>, vector<128x128xbf16>
    %cst_23 = arith.constant dense<0.000000e+00> : vector<512x128xf32>
    %66 = tpu.matmul %64, %65, %cst_23 {dimension_numbers = #tpu.dot_dimension_numbers<[1], [0], [0], [1], [0, 0, 1, 1], [], []>} : vector<512x128xbf16>, vector<128x128xbf16>, vector<512x128xf32> -> vector<512x128xf32>
    %c0_24 = arith.constant 0 : index
    %c0_25 = arith.constant 0 : index
    %67 = vector.load %arg5[%c0_24, %c0_25] : memref<1x128xf32, #tpu.memory_space<vmem>>, vector<1x128xf32>
    %c0_26 = arith.constant 0 : index
    %c0_27 = arith.constant 0 : index
    %68 = vector.load %arg6[%c0_26, %c0_27] : memref<1x128xf32, #tpu.memory_space<vmem>>, vector<1x128xf32>
    %cst_28 = arith.constant dense<0.000000e+00> : vector<128xf32>
    %69 = vector.multi_reduction <add>, %66, %cst_28 [0] : vector<512x128xf32> to vector<128xf32>
    %70 = vector.shape_cast %69 : vector<128xf32> to vector<1x128xf32>
    %cst_29 = arith.constant 5.120000e+02 : f32
    %71 = vector.broadcast %cst_29 : f32 to vector<1x128xf32>
    %72 = arith.divf %70, %71 : vector<1x128xf32>
    %73 = vector.broadcast %72 : vector<1x128xf32> to vector<512x128xf32>
    %74 = arith.subf %66, %73 : vector<512x128xf32>
    %75 = arith.mulf %74, %74 : vector<512x128xf32>
    %cst_30 = arith.constant dense<0.000000e+00> : vector<128xf32>
    %76 = vector.multi_reduction <add>, %75, %cst_30 [0] : vector<512x128xf32> to vector<128xf32>
    %77 = vector.shape_cast %76 : vector<128xf32> to vector<1x128xf32>
    %cst_31 = arith.constant 5.120000e+02 : f32
    %78 = vector.broadcast %cst_31 : f32 to vector<1x128xf32>
    %79 = arith.divf %77, %78 : vector<1x128xf32>
    %cst_32 = arith.constant 9.99999974E-6 : f32
    %80 = vector.broadcast %cst_32 : f32 to vector<1x128xf32>
    %81 = arith.addf %79, %80 : vector<1x128xf32>
    %82 = math.rsqrt %81 : vector<1x128xf32>
    %83 = vector.broadcast %82 : vector<1x128xf32> to vector<512x128xf32>
    %84 = arith.mulf %74, %83 : vector<512x128xf32>
    %85 = vector.broadcast %67 : vector<1x128xf32> to vector<512x128xf32>
    %86 = arith.mulf %84, %85 : vector<512x128xf32>
    %87 = vector.broadcast %68 : vector<1x128xf32> to vector<512x128xf32>
    %88 = arith.addf %86, %87 : vector<512x128xf32>
    %89 = vector.shape_cast %88 : vector<512x128xf32> to vector<2x16x16x128xf32>
    %cst_33 = arith.constant 0.000000e+00 : f32
    %90 = vector.broadcast %cst_33 : f32 to vector<2x16x16x124xf32>
    %91 = tpu.concatenate %0, %90 in 3 : vector<2x16x16x4xf32>, vector<2x16x16x124xf32> -> vector<2x16x16x128xf32>
    %92 = arith.addf %89, %91 : vector<2x16x16x128xf32>
    %cst_34 = arith.constant 0.000000e+00 : f32
    %93 = vector.broadcast %cst_34 : f32 to vector<2x16x16x128xf32>
    %94 = arith.maximumf %92, %93 : vector<2x16x16x128xf32>
    %c0_35 = arith.constant 0 : index
    %c0_36 = arith.constant 0 : index
    %c0_37 = arith.constant 0 : index
    %c0_38 = arith.constant 0 : index
    %95 = vector.load %arg7[%c0_35, %c0_36, %c0_37, %c0_38] : memref<2x16x16x128xf32, #tpu.memory_space<vmem>>, vector<2x16x16x128xf32>
    tpu.vector_store %arg7[%c0_35, %c0_36, %c0_37, %c0_38], %94 {strides = array<i32>} : memref<2x16x16x128xf32, #tpu.memory_space<vmem>>, vector<2x16x16x128xf32>,
    return
  }
}

</mosaic_0001>

<llo_original>
// kernel: tpu_custom_call.1
$region0: #{tpu_custom_call.1}
  #allocation0 [shape = 'u32[]', space=smem, size = 0x4, offset = 0x4, fixed_abs, tag = 'smem constant byte address 0x4 - core index']
  #allocation1 [shape = 'u32[144,128]{1,0:T(1,128)}', space=vmem, size = 0x12000, scoped, tag = 'internal scratch']
  %s0 = inlined_call_operand.vmem [shape: f32[2,16,16,4], index: 0, kind: input, shape index: {}]
  %s1 = inlined_call_operand.vmem [shape: bf16[128,128], index: 1, kind: input, shape index: {}]
  %s2 = inlined_call_operand.vmem [shape: f32[1,128], index: 2, kind: input, shape index: {}]
  %s3 = inlined_call_operand.vmem [shape: f32[1,128], index: 3, kind: input, shape index: {}]
  %s4 = inlined_call_operand.vmem [shape: bf16[128,128], index: 4, kind: input, shape index: {}]
  %s5 = inlined_call_operand.vmem [shape: f32[1,128], index: 5, kind: input, shape index: {}]
  %s6 = inlined_call_operand.vmem [shape: f32[1,128], index: 6, kind: input, shape index: {}]
  %s7 = inlined_call_operand.hbm [shape: f32[2,16,16,128], index: 7, kind: output, shape index: {}]
  %s8 = sld [smem:[#allocation0]]
  $region38: #{tpu_custom_call.1} parent=0
    _
  %s10 = ssub.s32 1, %s8
  %s11 = scalar_select 0, %s10, %s8
  $region1: #{tpu_custom_call.1} parent=0
    #allocation2 [shape = 'u8[262144]{0}', space=vmem, size = 0x40000, scoped, tag = 'output window, operand 0, single buffered']
    #allocation3 [shape = 's32[1]{0}', space=sflag, size = 0x4, scoped, tag = 'scoped memory for tpu_custom_call.1']
    %12 = vsyncpa [#allocation3], 0
    // Predicated region
    $region2: #{tpu_custom_call.1} parent=1 // pred_check
      _
    $region3: #{tpu_custom_call.1} parent=1 // pred_check_branch
      %14 = sbr.rel (0) target = $region5
    $region4: #{tpu_custom_call.1} parent=1 // pred_region
      _
    $region5: #{tpu_custom_call.1} parent=1 // pred_fallthru
      _
    // Predicated region
    $region6: #{tpu_custom_call.1} parent=1 // pred_check
      _
    $region7: #{tpu_custom_call.1} parent=1 // pred_check_branch
      %16 = sbr.rel (0) target = $region9
    $region8: #{tpu_custom_call.1} parent=1 // pred_region
      _
    $region9: #{tpu_custom_call.1} parent=1 // pred_fallthru
      _
    // Predicated region
    $region10: #{tpu_custom_call.1} parent=1 // pred_check
      _
    $region11: #{tpu_custom_call.1} parent=1 // pred_check_branch
      %18 = sbr.rel (0) target = $region13
    $region12: #{tpu_custom_call.1} parent=1 // pred_region
      _
    $region13: #{tpu_custom_call.1} parent=1 // pred_fallthru
      _
    // Predicated region
    $region14: #{tpu_custom_call.1} parent=1 // pred_check
      _
    $region15: #{tpu_custom_call.1} parent=1 // pred_check_branch
      %20 = sbr.rel (0) target = $region17
    $region16: #{tpu_custom_call.1} parent=1 // pred_region
      _
    $region17: #{tpu_custom_call.1} parent=1 // pred_fallthru
      _
    // Predicated region
    $region18: #{tpu_custom_call.1} parent=1 // pred_check
      _
    $region19: #{tpu_custom_call.1} parent=1 // pred_check_branch
      %22 = sbr.rel (0) target = $region21
    $region20: #{tpu_custom_call.1} parent=1 // pred_region
      _
    $region21: #{tpu_custom_call.1} parent=1 // pred_fallthru
      _
    // Predicated region
    $region22: #{tpu_custom_call.1} parent=1 // pred_check
      _
    $region23: #{tpu_custom_call.1} parent=1 // pred_check_branch
      %24 = sbr.rel (0) target = $region25
    $region24: #{tpu_custom_call.1} parent=1 // pred_region
      _
    $region25: #{tpu_custom_call.1} parent=1 // pred_fallthru
      _
    // Predicated region
    $region26: #{tpu_custom_call.1} parent=1 // pred_check
      _
    $region27: #{tpu_custom_call.1} parent=1 // pred_check_branch
      %26 = sbr.rel (0) target = $region29
    $region28: #{tpu_custom_call.1} parent=1 // pred_region
      _
    $region29: #{tpu_custom_call.1} parent=1 // pred_fallthru
      _
    %v28 = vld [vmem:[%s0] sm:$0xff]
    %v29 = vld [vmem:[%s0 + $0x8] sm:$0xff]
    %v30 = vld [vmem:[%s0 + $0x10] sm:$0xff]
    %v31 = vld [vmem:[%s0 + $0x18] sm:$0xff]
    %v32 = vld [vmem:[%s0 + $0x20] sm:$0xff]
    %v33 = vld [vmem:[%s0 + $0x28] sm:$0xff]
    %v34 = vld [vmem:[%s0 + $0x30] sm:$0xff]
    %v35 = vld [vmem:[%s0 + $0x38] sm:$0xff]
    %v36 = vld [vmem:[%s0 + $0x40] sm:$0xff]
    %v37 = vld [vmem:[%s0 + $0x48] sm:$0xff]
    %v38 = vld [vmem:[%s0 + $0x50] sm:$0xff]
    %v39 = vld [vmem:[%s0 + $0x58] sm:$0xff]
    %v40 = vld [vmem:[%s0 + $0x60] sm:$0xff]
    %v41 = vld [vmem:[%s0 + $0x68] sm:$0xff]
    %v42 = vld [vmem:[%s0 + $0x70] sm:$0xff]
    %v43 = vld [vmem:[%s0 + $0x78] sm:$0xff]
    %v44 = vld [vmem:[%s0 + $0x80] sm:$0xff]
    %v45 = vld [vmem:[%s0 + $0x88] sm:$0xff]
    %v46 = vld [vmem:[%s0 + $0x90] sm:$0xff]
    %v47 = vld [vmem:[%s0 + $0x98] sm:$0xff]
    %v48 = vld [vmem:[%s0 + $0xa0] sm:$0xff]
    %v49 = vld [vmem:[%s0 + $0xa8] sm:$0xff]
    %v50 = vld [vmem:[%s0 + $0xb0] sm:$0xff]
    %v51 = vld [vmem:[%s0 + $0xb8] sm:$0xff]
    %v52 = vld [vmem:[%s0 + $0xc0] sm:$0xff]
    %v53 = vld [vmem:[%s0 + $0xc8] sm:$0xff]
    %v54 = vld [vmem:[%s0 + $0xd0] sm:$0xff]
    %v55 = vld [vmem:[%s0 + $0xd8] sm:$0xff]
    %v56 = vld [vmem:[%s0 + $0xe0] sm:$0xff]
    %v57 = vld [vmem:[%s0 + $0xe8] sm:$0xff]
    %v58 = vld [vmem:[%s0 + $0xf0] sm:$0xff]
    %v59 = vld [vmem:[%s0 + $0xf8] sm:$0xff]
    %v60 = vld [vmem:[%s0 + $0x100] sm:$0xff]
    %v61 = vld [vmem:[%s0 + $0x108] sm:$0xff]
    %v62 = vld [vmem:[%s0 + $0x110] sm:$0xff]
    %v63 = vld [vmem:[%s0 + $0x118] sm:$0xff]
    %v64 = vld [vmem:[%s0 + $0x120] sm:$0xff]
    %v65 = vld [vmem:[%s0 + $0x128] sm:$0xff]
    %v66 = vld [vmem:[%s0 + $0x130] sm:$0xff]
    %v67 = vld [vmem:[%s0 + $0x138] sm:$0xff]
    %v68 = vld [vmem:[%s0 + $0x140] sm:$0xff]
    %v69 = vld [vmem:[%s0 + $0x148] sm:$0xff]
    %v70 = vld [vmem:[%s0 + $0x150] sm:$0xff]
    %v71 = vld [vmem:[%s0 + $0x158] sm:$0xff]
    %v72 = vld [vmem:[%s0 + $0x160] sm:$0xff]
    %v73 = vld [vmem:[%s0 + $0x168] sm:$0xff]
    %v74 = vld [vmem:[%s0 + $0x170] sm:$0xff]
    %v75 = vld [vmem:[%s0 + $0x178] sm:$0xff]
    %v76 = vld [vmem:[%s0 + $0x180] sm:$0xff]
    %v77 = vld [vmem:[%s0 + $0x188] sm:$0xff]
    %v78 = vld [vmem:[%s0 + $0x190] sm:$0xff]
    %v79 = vld [vmem:[%s0 + $0x198] sm:$0xff]
    %v80 = vld [vmem:[%s0 + $0x1a0] sm:$0xff]
    %v81 = vld [vmem:[%s0 + $0x1a8] sm:$0xff]
    %v82 = vld [vmem:[%s0 + $0x1b0] sm:$0xff]
    %v83 = vld [vmem:[%s0 + $0x1b8] sm:$0xff]
    %v84 = vld [vmem:[%s0 + $0x1c0] sm:$0xff]
    %v85 = vld [vmem:[%s0 + $0x1c8] sm:$0xff]
    %v86 = vld [vmem:[%s0 + $0x1d0] sm:$0xff]
    %v87 = vld [vmem:[%s0 + $0x1d8] sm:$0xff]
    %v88 = vld [vmem:[%s0 + $0x1e0] sm:$0xff]
    %v89 = vld [vmem:[%s0 + $0x1e8] sm:$0xff]
    %v90 = vld [vmem:[%s0 + $0x1f0] sm:$0xff]
    %v91 = vld [vmem:[%s0 + $0x1f8] sm:$0xff]
    %vm156 = vcmask 1040384
    %v157 = vrot.slane %v28, 7
    %v158 = vrot.slane %v29, 7
    %v159 = vsel %vm156, %v157, %v158
    %v160 = vrot.slane %v30, 7
    %v161 = vrot.slane %v31, 7
    %v162 = vsel %vm156, %v160, %v161
    %v163 = vrot.slane %v32, 7
    %v164 = vrot.slane %v33, 7
    %v165 = vsel %vm156, %v163, %v164
    %v166 = vrot.slane %v34, 7
    %v167 = vrot.slane %v35, 7
    %v168 = vsel %vm156, %v166, %v167
    %v169 = vrot.slane %v36, 7
    %v170 = vrot.slane %v37, 7
    %v171 = vsel %vm156, %v169, %v170
    %v172 = vrot.slane %v38, 7
    %v173 = vrot.slane %v39, 7
    %v174 = vsel %vm156, %v172, %v173
    %v175 = vrot.slane %v40, 7
    %v176 = vrot.slane %v41, 7
    %v177 = vsel %vm156, %v175, %v176
    %v178 = vrot.slane %v42, 7
    %v179 = vrot.slane %v43, 7
    %v180 = vsel %vm156, %v178, %v179
    %v181 = vrot.slane %v44, 7
    %v182 = vrot.slane %v45, 7
    %v183 = vsel %vm156, %v181, %v182
    %v184 = vrot.slane %v46, 7
    %v185 = vrot.slane %v47, 7
    %v186 = vsel %vm156, %v184, %v185
    %v187 = vrot.slane %v48, 7
    %v188 = vrot.slane %v49, 7
    %v189 = vsel %vm156, %v187, %v188
    %v190 = vrot.slane %v50, 7
    %v191 = vrot.slane %v51, 7
    %v192 = vsel %vm156, %v190, %v191
    %v193 = vrot.slane %v52, 7
    %v194 = vrot.slane %v53, 7
    %v195 = vsel %vm156, %v193, %v194
    %v196 = vrot.slane %v54, 7
    %v197 = vrot.slane %v55, 7
    %v198 = vsel %vm156, %v196, %v197
    %v199 = vrot.slane %v56, 7
    %v200 = vrot.slane %v57, 7
    %v201 = vsel %vm156, %v199, %v200
    %v202 = vrot.slane %v58, 7
    %v203 = vrot.slane %v59, 7
    %v204 = vsel %vm156, %v202, %v203
    %v205 = vrot.slane %v60, 7
    %v206 = vrot.slane %v61, 7
    %v207 = vsel %vm156, %v205, %v206
    %v208 = vrot.slane %v62, 7
    %v209 = vrot.slane %v63, 7
    %v210 = vsel %vm156, %v208, %v209
    %v211 = vrot.slane %v64, 7
    %v212 = vrot.slane %v65, 7
    %v213 = vsel %vm156, %v211, %v212
    %v214 = vrot.slane %v66, 7
    %v215 = vrot.slane %v67, 7
    %v216 = vsel %vm156, %v214, %v215
    %v217 = vrot.slane %v68, 7
    %v218 = vrot.slane %v69, 7
    %v219 = vsel %vm156, %v217, %v218
    %v220 = vrot.slane %v70, 7
    %v221 = vrot.slane %v71, 7
    %v222 = vsel %vm156, %v220, %v221
    %v223 = vrot.slane %v72, 7
    %v224 = vrot.slane %v73, 7
    %v225 = vsel %vm156, %v223, %v224
    %v226 = vrot.slane %v74, 7
    %v227 = vrot.slane %v75, 7
    %v228 = vsel %vm156, %v226, %v227
    %v229 = vrot.slane %v76, 7
    %v230 = vrot.slane %v77, 7
    %v231 = vsel %vm156, %v229, %v230
    %v232 = vrot.slane %v78, 7
    %v233 = vrot.slane %v79, 7
    %v234 = vsel %vm156, %v232, %v233
    %v235 = vrot.slane %v80, 7
    %v236 = vrot.slane %v81, 7
    %v237 = vsel %vm156, %v235, %v236
    %v238 = vrot.slane %v82, 7
    %v239 = vrot.slane %v83, 7
    %v240 = vsel %vm156, %v238, %v239
    %v241 = vrot.slane %v84, 7
    %v242 = vrot.slane %v85, 7
    %v243 = vsel %vm156, %v241, %v242
    %v244 = vrot.slane %v86, 7
    %v245 = vrot.slane %v87, 7
    %v246 = vsel %vm156, %v244, %v245
    %v247 = vrot.slane %v88, 7
    %v248 = vrot.slane %v89, 7
    %v249 = vsel %vm156, %v247, %v248
    %v250 = vrot.slane %v90, 7
    %v251 = vrot.slane %v91, 7
    %v252 = vsel %vm156, %v250, %v251
    %v347 = vsel %vm156, 0.0, %v157
    %v348 = vsel %vm156, 0.0, %v160
    %v349 = vsel %vm156, 0.0, %v163
    %v350 = vsel %vm156, 0.0, %v166
    %v351 = vsel %vm156, 0.0, %v169
    %v352 = vsel %vm156, 0.0, %v172
    %v353 = vsel %vm156, 0.0, %v175
    %v354 = vsel %vm156, 0.0, %v178
    %v355 = vsel %vm156, 0.0, %v181
    %v356 = vsel %vm156, 0.0, %v184
    %v357 = vsel %vm156, 0.0, %v187
    %v358 = vsel %vm156, 0.0, %v190
    %v359 = vsel %vm156, 0.0, %v193
    %v360 = vsel %vm156, 0.0, %v196
    %v361 = vsel %vm156, 0.0, %v199
    %v362 = vsel %vm156, 0.0, %v202
    %v363 = vsel %vm156, 0.0, %v205
    %v364 = vsel %vm156, 0.0, %v208
    %v365 = vsel %vm156, 0.0, %v211
    %v366 = vsel %vm156, 0.0, %v214
    %v367 = vsel %vm156, 0.0, %v217
    %v368 = vsel %vm156, 0.0, %v220
    %v369 = vsel %vm156, 0.0, %v223
    %v370 = vsel %vm156, 0.0, %v226
    %v371 = vsel %vm156, 0.0, %v229
    %v372 = vsel %vm156, 0.0, %v232
    %v373 = vsel %vm156, 0.0, %v235
    %v374 = vsel %vm156, 0.0, %v238
    %v375 = vsel %vm156, 0.0, %v241
    %v376 = vsel %vm156, 0.0, %v244
    %v377 = vsel %vm156, 0.0, %v247
    %v378 = vsel %vm156, 0.0, %v250
    %v379 = vsel %vm156, %v158, 0.0
    %v380 = vsel %vm156, %v161, 0.0
    %v381 = vsel %vm156, %v164, 0.0
    %v382 = vsel %vm156, %v167, 0.0
    %v383 = vsel %vm156, %v170, 0.0
    %v384 = vsel %vm156, %v173, 0.0
    %v385 = vsel %vm156, %v176, 0.0
    %v386 = vsel %vm156, %v179, 0.0
    %v387 = vsel %vm156, %v182, 0.0
    %v388 = vsel %vm156, %v185, 0.0
    %v389 = vsel %vm156, %v188, 0.0
    %v390 = vsel %vm156, %v191, 0.0
    %v391 = vsel %vm156, %v194, 0.0
    %v392 = vsel %vm156, %v197, 0.0
    %v393 = vsel %vm156, %v200, 0.0
    %v394 = vsel %vm156, %v203, 0.0
    %v395 = vsel %vm156, %v206, 0.0
    %v396 = vsel %vm156, %v209, 0.0
    %v397 = vsel %vm156, %v212, 0.0
    %v398 = vsel %vm156, %v215, 0.0
    %v399 = vsel %vm156, %v218, 0.0
    %v400 = vsel %vm156, %v221, 0.0
    %v401 = vsel %vm156, %v224, 0.0
    %v402 = vsel %vm156, %v227, 0.0
    %v403 = vsel %vm156, %v230, 0.0
    %v404 = vsel %vm156, %v233, 0.0
    %v405 = vsel %vm156, %v236, 0.0
    %v406 = vsel %vm156, %v239, 0.0
    %v407 = vsel %vm156, %v242, 0.0
    %v408 = vsel %vm156, %v245, 0.0
    %v409 = vsel %vm156, %v248, 0.0
    %v410 = vsel %vm156, %v251, 0.0
    %vm472 = vcmask 1046528
    %v473 = vrot.slane 0.0, 1
    %v474 = vsel %vm472, %v473, %v473
    %v475 = vrot.slane %v347, 1
    %v476 = vrot.slane %v159, 1
    %v477 = vsel %vm472, %v475, %v476
    %v478 = vrot.slane %v379, 1
    %v479 = vsel %vm472, %v476, %v478
    %v480 = vrot.slane %v348, 1
    %v481 = vrot.slane %v162, 1
    %v482 = vsel %vm472, %v480, %v481
    %v483 = vrot.slane %v380, 1
    %v484 = vsel %vm472, %v481, %v483
    %v485 = vrot.slane %v349, 1
    %v486 = vrot.slane %v165, 1
    %v487 = vsel %vm472, %v485, %v486
    %v488 = vrot.slane %v381, 1
    %v489 = vsel %vm472, %v486, %v488
    %v490 = vrot.slane %v350, 1
    %v491 = vrot.slane %v168, 1
    %v492 = vsel %vm472, %v490, %v491
    %v493 = vrot.slane %v382, 1
    %v494 = vsel %vm472, %v491, %v493
    %v495 = vrot.slane %v351, 1
    %v496 = vrot.slane %v171, 1
    %v497 = vsel %vm472, %v495, %v496
    %v498 = vrot.slane %v383, 1
    %v499 = vsel %vm472, %v496, %v498
    %v500 = vrot.slane %v352, 1
    %v501 = vrot.slane %v174, 1
    %v502 = vsel %vm472, %v500, %v501
    %v503 = vrot.slane %v384, 1
    %v504 = vsel %vm472, %v501, %v503
    %v505 = vrot.slane %v353, 1
    %v506 = vrot.slane %v177, 1
    %v507 = vsel %vm472, %v505, %v506
    %v508 = vrot.slane %v385, 1
    %v509 = vsel %vm472, %v506, %v508
    %v510 = vrot.slane %v354, 1
    %v511 = vrot.slane %v180, 1
    %v512 = vsel %vm472, %v510, %v511
    %v513 = vrot.slane %v386, 1
    %v514 = vsel %vm472, %v511, %v513
    %v515 = vrot.slane %v355, 1
    %v516 = vrot.slane %v183, 1
    %v517 = vsel %vm472, %v515, %v516
    %v518 = vrot.slane %v387, 1
    %v519 = vsel %vm472, %v516, %v518
    %v520 = vrot.slane %v356, 1
    %v521 = vrot.slane %v186, 1
    %v522 = vsel %vm472, %v520, %v521
    %v523 = vrot.slane %v388, 1
    %v524 = vsel %vm472, %v521, %v523
    %v525 = vrot.slane %v357, 1
    %v526 = vrot.slane %v189, 1
    %v527 = vsel %vm472, %v525, %v526
    %v528 = vrot.slane %v389, 1
    %v529 = vsel %vm472, %v526, %v528
    %v530 = vrot.slane %v358, 1
    %v531 = vrot.slane %v192, 1
    %v532 = vsel %vm472, %v530, %v531
    %v533 = vrot.slane %v390, 1
    %v534 = vsel %vm472, %v531, %v533
    %v535 = vrot.slane %v359, 1
    %v536 = vrot.slane %v195, 1
    %v537 = vsel %vm472, %v535, %v536
    %v538 = vrot.slane %v391, 1
    %v539 = vsel %vm472, %v536, %v538
    %v540 = vrot.slane %v360, 1
    %v541 = vrot.slane %v198, 1
    %v542 = vsel %vm472, %v540, %v541
    %v543 = vrot.slane %v392, 1
    %v544 = vsel %vm472, %v541, %v543
    %v545 = vrot.slane %v361, 1
    %v546 = vrot.slane %v201, 1
    %v547 = vsel %vm472, %v545, %v546
    %v548 = vrot.slane %v393, 1
    %v549 = vsel %vm472, %v546, %v548
    %v550 = vrot.slane %v363, 1
    %v551 = vrot.slane %v207, 1
    %v552 = vsel %vm472, %v550, %v551
    %v553 = vrot.slane %v395, 1
    %v554 = vsel %vm472, %v551, %v553
    %v555 = vrot.slane %v364, 1
    %v556 = vrot.slane %v210, 1
    %v557 = vsel %vm472, %v555, %v556
    %v558 = vrot.slane %v396, 1
    %v559 = vsel %vm472, %v556, %v558
    %v560 = vrot.slane %v365, 1
    %v561 = vrot.slane %v213, 1
    %v562 = vsel %vm472, %v560, %v561
    %v563 = vrot.slane %v397, 1
    %v564 = vsel %vm472, %v561, %v563
    %v565 = vrot.slane %v366, 1
    %v566 = vrot.slane %v216, 1
    %v567 = vsel %vm472, %v565, %v566
    %v568 = vrot.slane %v398, 1
    %v569 = vsel %vm472, %v566, %v568
    %v570 = vrot.slane %v367, 1
    %v571 = vrot.slane %v219, 1
    %v572 = vsel %vm472, %v570, %v571
    %v573 = vrot.slane %v399, 1
    %v574 = vsel %vm472, %v571, %v573
    %v575 = vrot.slane %v368, 1
    %v576 = vrot.slane %v222, 1
    %v577 = vsel %vm472, %v575, %v576
    %v578 = vrot.slane %v400, 1
    %v579 = vsel %vm472, %v576, %v578
    %v580 = vrot.slane %v369, 1
    %v581 = vrot.slane %v225, 1
    %v582 = vsel %vm472, %v580, %v581
    %v583 = vrot.slane %v401, 1
    %v584 = vsel %vm472, %v581, %v583
    %v585 = vrot.slane %v370, 1
    %v586 = vrot.slane %v228, 1
    %v587 = vsel %vm472, %v585, %v586
    %v588 = vrot.slane %v402, 1
    %v589 = vsel %vm472, %v586, %v588
    %v590 = vrot.slane %v371, 1
    %v591 = vrot.slane %v231, 1
    %v592 = vsel %vm472, %v590, %v591
    %v593 = vrot.slane %v403, 1
    %v594 = vsel %vm472, %v591, %v593
    %v595 = vrot.slane %v372, 1
    %v596 = vrot.slane %v234, 1
    %v597 = vsel %vm472, %v595, %v596
    %v598 = vrot.slane %v404, 1
    %v599 = vsel %vm472, %v596, %v598
    %v600 = vrot.slane %v373, 1
    %v601 = vrot.slane %v237, 1
    %v602 = vsel %vm472, %v600, %v601
    %v603 = vrot.slane %v405, 1
    %v604 = vsel %vm472, %v601, %v603
    %v605 = vrot.slane %v374, 1
    %v606 = vrot.slane %v240, 1
    %v607 = vsel %vm472, %v605, %v606
    %v608 = vrot.slane %v406, 1
    %v609 = vsel %vm472, %v606, %v608
    %v610 = vrot.slane %v375, 1
    %v611 = vrot.slane %v243, 1
    %v612 = vsel %vm472, %v610, %v611
    %v613 = vrot.slane %v407, 1
    %v614 = vsel %vm472, %v611, %v613
    %v615 = vrot.slane %v376, 1
    %v616 = vrot.slane %v246, 1
    %v617 = vsel %vm472, %v615, %v616
    %v618 = vrot.slane %v408, 1
    %v619 = vsel %vm472, %v616, %v618
    %v620 = vrot.slane %v377, 1
    %v621 = vrot.slane %v249, 1
    %v622 = vsel %vm472, %v620, %v621
    %v623 = vrot.slane %v409, 1
    %v624 = vsel %vm472, %v621, %v623
    %625 = vrot.lane.b32.xlu0 %v474, 4
    %v626 = vpop.permute.xlu0 %625
    %627 = vrot.lane.b32.xlu0 %v477, 4
    %v628 = vpop.permute.xlu0 %627
    %629 = vrot.lane.b32.xlu0 %v479, 4
    %v630 = vpop.permute.xlu0 %629
    %631 = vrot.lane.b32.xlu0 %v482, 4
    %v632 = vpop.permute.xlu0 %631
    %633 = vrot.lane.b32.xlu0 %v484, 4
    %v634 = vpop.permute.xlu0 %633
    %635 = vrot.lane.b32.xlu0 %v487, 4
    %v636 = vpop.permute.xlu0 %635
    %637 = vrot.lane.b32.xlu0 %v489, 4
    %v638 = vpop.permute.xlu0 %637
    %639 = vrot.lane.b32.xlu0 %v492, 4
    %v640 = vpop.permute.xlu0 %639
    %641 = vrot.lane.b32.xlu0 %v494, 4
    %v642 = vpop.permute.xlu0 %641
    %643 = vrot.lane.b32.xlu0 %v497, 4
    %v644 = vpop.permute.xlu0 %643
    %645 = vrot.lane.b32.xlu0 %v499, 4
    %v646 = vpop.permute.xlu0 %645
    %647 = vrot.lane.b32.xlu0 %v502, 4
    %v648 = vpop.permute.xlu0 %647
    %649 = vrot.lane.b32.xlu0 %v504, 4
    %v650 = vpop.permute.xlu0 %649
    %651 = vrot.lane.b32.xlu0 %v507, 4
    %v652 = vpop.permute.xlu0 %651
    %653 = vrot.lane.b32.xlu0 %v509, 4
    %v654 = vpop.permute.xlu0 %653
    %655 = vrot.lane.b32.xlu0 %v512, 4
    %v656 = vpop.permute.xlu0 %655
    %657 = vrot.lane.b32.xlu0 %v514, 4
    %v658 = vpop.permute.xlu0 %657
    %659 = vrot.lane.b32.xlu0 %v517, 4
    %v660 = vpop.permute.xlu0 %659
    %661 = vrot.lane.b32.xlu0 %v519, 4
    %v662 = vpop.permute.xlu0 %661
    %663 = vrot.lane.b32.xlu0 %v522, 4
    %v664 = vpop.permute.xlu0 %663
    %665 = vrot.lane.b32.xlu0 %v524, 4
    %v666 = vpop.permute.xlu0 %665
    %667 = vrot.lane.b32.xlu0 %v527, 4
    %v668 = vpop.permute.xlu0 %667
    %669 = vrot.lane.b32.xlu0 %v529, 4
    %v670 = vpop.permute.xlu0 %669
    %671 = vrot.lane.b32.xlu0 %v532, 4
    %v672 = vpop.permute.xlu0 %671
    %673 = vrot.lane.b32.xlu0 %v534, 4
    %v674 = vpop.permute.xlu0 %673
    %675 = vrot.lane.b32.xlu0 %v537, 4
    %v676 = vpop.permute.xlu0 %675
    %677 = vrot.lane.b32.xlu0 %v539, 4
    %v678 = vpop.permute.xlu0 %677
    %679 = vrot.lane.b32.xlu0 %v542, 4
    %v680 = vpop.permute.xlu0 %679
    %681 = vrot.lane.b32.xlu0 %v544, 4
    %v682 = vpop.permute.xlu0 %681
    %683 = vrot.lane.b32.xlu0 %v547, 4
    %v684 = vpop.permute.xlu0 %683
    %685 = vrot.lane.b32.xlu0 %v549, 4
    %v686 = vpop.permute.xlu0 %685
    %687 = vrot.lane.b32.xlu0 %v552, 4
    %v688 = vpop.permute.xlu0 %687
    %689 = vrot.lane.b32.xlu0 %v554, 4
    %v690 = vpop.permute.xlu0 %689
    %691 = vrot.lane.b32.xlu0 %v557, 4
    %v692 = vpop.permute.xlu0 %691
    %693 = vrot.lane.b32.xlu0 %v559, 4
    %v694 = vpop.permute.xlu0 %693
    %695 = vrot.lane.b32.xlu0 %v562, 4
    %v696 = vpop.permute.xlu0 %695
    %697 = vrot.lane.b32.xlu0 %v564, 4
    %v698 = vpop.permute.xlu0 %697
    %699 = vrot.lane.b32.xlu0 %v567, 4
    %v700 = vpop.permute.xlu0 %699
    %701 = vrot.lane.b32.xlu0 %v569, 4
    %v702 = vpop.permute.xlu0 %701
    %703 = vrot.lane.b32.xlu0 %v572, 4
    %v704 = vpop.permute.xlu0 %703
    %705 = vrot.lane.b32.xlu0 %v574, 4
    %v706 = vpop.permute.xlu0 %705
    %707 = vrot.lane.b32.xlu0 %v577, 4
    %v708 = vpop.permute.xlu0 %707
    %709 = vrot.lane.b32.xlu0 %v579, 4
    %v710 = vpop.permute.xlu0 %709
    %711 = vrot.lane.b32.xlu0 %v582, 4
    %v712 = vpop.permute.xlu0 %711
    %713 = vrot.lane.b32.xlu0 %v584, 4
    %v714 = vpop.permute.xlu0 %713
    %715 = vrot.lane.b32.xlu0 %v587, 4
    %v716 = vpop.permute.xlu0 %715
    %717 = vrot.lane.b32.xlu0 %v589, 4
    %v718 = vpop.permute.xlu0 %717
    %719 = vrot.lane.b32.xlu0 %v592, 4
    %v720 = vpop.permute.xlu0 %719
    %721 = vrot.lane.b32.xlu0 %v594, 4
    %v722 = vpop.permute.xlu0 %721
    %723 = vrot.lane.b32.xlu0 %v597, 4
    %v724 = vpop.permute.xlu0 %723
    %725 = vrot.lane.b32.xlu0 %v599, 4
    %v726 = vpop.permute.xlu0 %725
    %727 = vrot.lane.b32.xlu0 %v602, 4
    %v728 = vpop.permute.xlu0 %727
    %729 = vrot.lane.b32.xlu0 %v604, 4
    %v730 = vpop.permute.xlu0 %729
    %731 = vrot.lane.b32.xlu0 %v607, 4
    %v732 = vpop.permute.xlu0 %731
    %733 = vrot.lane.b32.xlu0 %v609, 4
    %v734 = vpop.permute.xlu0 %733
    %735 = vrot.lane.b32.xlu0 %v612, 4
    %v736 = vpop.permute.xlu0 %735
    %737 = vrot.lane.b32.xlu0 %v614, 4
    %v738 = vpop.permute.xlu0 %737
    %739 = vrot.lane.b32.xlu0 %v617, 4
    %v740 = vpop.permute.xlu0 %739
    %741 = vrot.lane.b32.xlu0 %v619, 4
    %v742 = vpop.permute.xlu0 %741
    %743 = vrot.lane.b32.xlu0 %v622, 4
    %v744 = vpop.permute.xlu0 %743
    %745 = vrot.lane.b32.xlu0 %v624, 4
    %v746 = vpop.permute.xlu0 %745
    %vm808 = vcmask 1045504
    %v809 = vrot.slane 0.0, 2
    %v810 = vsel %vm808, %v809, %v809
    %v811 = vrot.slane %v347, 2
    %v812 = vrot.slane %v159, 2
    %v813 = vsel %vm808, %v811, %v812
    %v814 = vrot.slane %v379, 2
    %v815 = vsel %vm808, %v812, %v814
    %v816 = vrot.slane %v348, 2
    %v817 = vrot.slane %v162, 2
    %v818 = vsel %vm808, %v816, %v817
    %v819 = vrot.slane %v380, 2
    %v820 = vsel %vm808, %v817, %v819
    %v821 = vrot.slane %v349, 2
    %v822 = vrot.slane %v165, 2
    %v823 = vsel %vm808, %v821, %v822
    %v824 = vrot.slane %v381, 2
    %v825 = vsel %vm808, %v822, %v824
    %v826 = vrot.slane %v350, 2
    %v827 = vrot.slane %v168, 2
    %v828 = vsel %vm808, %v826, %v827
    %v829 = vrot.slane %v382, 2
    %v830 = vsel %vm808, %v827, %v829
    %v831 = vrot.slane %v351, 2
    %v832 = vrot.slane %v171, 2
    %v833 = vsel %vm808, %v831, %v832
    %v834 = vrot.slane %v383, 2
    %v835 = vsel %vm808, %v832, %v834
    %v836 = vrot.slane %v352, 2
    %v837 = vrot.slane %v174, 2
    %v838 = vsel %vm808, %v836, %v837
    %v839 = vrot.slane %v384, 2
    %v840 = vsel %vm808, %v837, %v839
    %v841 = vrot.slane %v353, 2
    %v842 = vrot.slane %v177, 2
    %v843 = vsel %vm808, %v841, %v842
    %v844 = vrot.slane %v385, 2
    %v845 = vsel %vm808, %v842, %v844
    %v846 = vrot.slane %v354, 2
    %v847 = vrot.slane %v180, 2
    %v848 = vsel %vm808, %v846, %v847
    %v849 = vrot.slane %v386, 2
    %v850 = vsel %vm808, %v847, %v849
    %v851 = vrot.slane %v355, 2
    %v852 = vrot.slane %v183, 2
    %v853 = vsel %vm808, %v851, %v852
    %v854 = vrot.slane %v387, 2
    %v855 = vsel %vm808, %v852, %v854
    %v856 = vrot.slane %v356, 2
    %v857 = vrot.slane %v186, 2
    %v858 = vsel %vm808, %v856, %v857
    %v859 = vrot.slane %v388, 2
    %v860 = vsel %vm808, %v857, %v859
    %v861 = vrot.slane %v357, 2
    %v862 = vrot.slane %v189, 2
    %v863 = vsel %vm808, %v861, %v862
    %v864 = vrot.slane %v389, 2
    %v865 = vsel %vm808, %v862, %v864
    %v866 = vrot.slane %v358, 2
    %v867 = vrot.slane %v192, 2
    %v868 = vsel %vm808, %v866, %v867
    %v869 = vrot.slane %v390, 2
    %v870 = vsel %vm808, %v867, %v869
    %v871 = vrot.slane %v359, 2
    %v872 = vrot.slane %v195, 2
    %v873 = vsel %vm808, %v871, %v872
    %v874 = vrot.slane %v391, 2
    %v875 = vsel %vm808, %v872, %v874
    %v876 = vrot.slane %v360, 2
    %v877 = vrot.slane %v198, 2
    %v878 = vsel %vm808, %v876, %v877
    %v879 = vrot.slane %v392, 2
    %v880 = vsel %vm808, %v877, %v879
    %v881 = vrot.slane %v361, 2
    %v882 = vrot.slane %v201, 2
    %v883 = vsel %vm808, %v881, %v882
    %v884 = vrot.slane %v393, 2
    %v885 = vsel %vm808, %v882, %v884
    %v886 = vrot.slane %v363, 2
    %v887 = vrot.slane %v207, 2
    %v888 = vsel %vm808, %v886, %v887
    %v889 = vrot.slane %v395, 2
    %v890 = vsel %vm808, %v887, %v889
    %v891 = vrot.slane %v364, 2
    %v892 = vrot.slane %v210, 2
    %v893 = vsel %vm808, %v891, %v892
    %v894 = vrot.slane %v396, 2
    %v895 = vsel %vm808, %v892, %v894
    %v896 = vrot.slane %v365, 2
    %v897 = vrot.slane %v213, 2
    %v898 = vsel %vm808, %v896, %v897
    %v899 = vrot.slane %v397, 2
    %v900 = vsel %vm808, %v897, %v899
    %v901 = vrot.slane %v366, 2
    %v902 = vrot.slane %v216, 2
    %v903 = vsel %vm808, %v901, %v902
    %v904 = vrot.slane %v398, 2
    %v905 = vsel %vm808, %v902, %v904
    %v906 = vrot.slane %v367, 2
    %v907 = vrot.slane %v219, 2
    %v908 = vsel %vm808, %v906, %v907
    %v909 = vrot.slane %v399, 2
    %v910 = vsel %vm808, %v907, %v909
    %v911 = vrot.slane %v368, 2
    %v912 = vrot.slane %v222, 2
    %v913 = vsel %vm808, %v911, %v912
    %v914 = vrot.slane %v400, 2
    %v915 = vsel %vm808, %v912, %v914
    %v916 = vrot.slane %v369, 2
    %v917 = vrot.slane %v225, 2
    %v918 = vsel %vm808, %v916, %v917
    %v919 = vrot.slane %v401, 2
    %v920 = vsel %vm808, %v917, %v919
    %v921 = vrot.slane %v370, 2
    %v922 = vrot.slane %v228, 2
    %v923 = vsel %vm808, %v921, %v922
    %v924 = vrot.slane %v402, 2
    %v925 = vsel %vm808, %v922, %v924
    %v926 = vrot.slane %v371, 2
    %v927 = vrot.slane %v231, 2
    %v928 = vsel %vm808, %v926, %v927
    %v929 = vrot.slane %v403, 2
    %v930 = vsel %vm808, %v927, %v929
    %v931 = vrot.slane %v372, 2
    %v932 = vrot.slane %v234, 2
    %v933 = vsel %vm808, %v931, %v932
    %v934 = vrot.slane %v404, 2
    %v935 = vsel %vm808, %v932, %v934
    %v936 = vrot.slane %v373, 2
    %v937 = vrot.slane %v237, 2
    %v938 = vsel %vm808, %v936, %v937
    %v939 = vrot.slane %v405, 2
    %v940 = vsel %vm808, %v937, %v939
    %v941 = vrot.slane %v374, 2
    %v942 = vrot.slane %v240, 2
    %v943 = vsel %vm808, %v941, %v942
    %v944 = vrot.slane %v406, 2
    %v945 = vsel %vm808, %v942, %v944
    %v946 = vrot.slane %v375, 2
    %v947 = vrot.slane %v243, 2
    %v948 = vsel %vm808, %v946, %v947
    %v949 = vrot.slane %v407, 2
    %v950 = vsel %vm808, %v947, %v949
    %v951 = vrot.slane %v376, 2
    %v952 = vrot.slane %v246, 2
    %v953 = vsel %vm808, %v951, %v952
    %v954 = vrot.slane %v408, 2
    %v955 = vsel %vm808, %v952, %v954
    %v956 = vrot.slane %v377, 2
    %v957 = vrot.slane %v249, 2
    %v958 = vsel %vm808, %v956, %v957
    %v959 = vrot.slane %v409, 2
    %v960 = vsel %vm808, %v957, %v959
    %961 = vrot.lane.b32.xlu0 %v810, 8
    %v962 = vpop.permute.xlu0 %961
    %963 = vrot.lane.b32.xlu0 %v813, 8
    %v964 = vpop.permute.xlu0 %963
    %965 = vrot.lane.b32.xlu0 %v815, 8
    %v966 = vpop.permute.xlu0 %965
    %967 = vrot.lane.b32.xlu0 %v818, 8
    %v968 = vpop.permute.xlu0 %967
    %969 = vrot.lane.b32.xlu0 %v820, 8
    %v970 = vpop.permute.xlu0 %969
    %971 = vrot.lane.b32.xlu0 %v823, 8
    %v972 = vpop.permute.xlu0 %971
    %973 = vrot.lane.b32.xlu0 %v825, 8
    %v974 = vpop.permute.xlu0 %973
    %975 = vrot.lane.b32.xlu0 %v828, 8
    %v976 = vpop.permute.xlu0 %975
    %977 = vrot.lane.b32.xlu0 %v830, 8
    %v978 = vpop.permute.xlu0 %977
    %979 = vrot.lane.b32.xlu0 %v833, 8
    %v980 = vpop.permute.xlu0 %979
    %981 = vrot.lane.b32.xlu0 %v835, 8
    %v982 = vpop.permute.xlu0 %981
    %983 = vrot.lane.b32.xlu0 %v838, 8
    %v984 = vpop.permute.xlu0 %983
    %985 = vrot.lane.b32.xlu0 %v840, 8
    %v986 = vpop.permute.xlu0 %985
    %987 = vrot.lane.b32.xlu0 %v843, 8
    %v988 = vpop.permute.xlu0 %987
    %989 = vrot.lane.b32.xlu0 %v845, 8
    %v990 = vpop.permute.xlu0 %989
    %991 = vrot.lane.b32.xlu0 %v848, 8
    %v992 = vpop.permute.xlu0 %991
    %993 = vrot.lane.b32.xlu0 %v850, 8
    %v994 = vpop.permute.xlu0 %993
    %995 = vrot.lane.b32.xlu0 %v853, 8
    %v996 = vpop.permute.xlu0 %995
    %997 = vrot.lane.b32.xlu0 %v855, 8
    %v998 = vpop.permute.xlu0 %997
    %999 = vrot.lane.b32.xlu0 %v858, 8
    %v1000 = vpop.permute.xlu0 %999
    %1001 = vrot.lane.b32.xlu0 %v860, 8
    %v1002 = vpop.permute.xlu0 %1001
    %1003 = vrot.lane.b32.xlu0 %v863, 8
    %v1004 = vpop.permute.xlu0 %1003
    %1005 = vrot.lane.b32.xlu0 %v865, 8
    %v1006 = vpop.permute.xlu0 %1005
    %1007 = vrot.lane.b32.xlu0 %v868, 8
    %v1008 = vpop.permute.xlu0 %1007
    %1009 = vrot.lane.b32.xlu0 %v870, 8
    %v1010 = vpop.permute.xlu0 %1009
    %1011 = vrot.lane.b32.xlu0 %v873, 8
    %v1012 = vpop.permute.xlu0 %1011
    %1013 = vrot.lane.b32.xlu0 %v875, 8
    %v1014 = vpop.permute.xlu0 %1013
    %1015 = vrot.lane.b32.xlu0 %v878, 8
    %v1016 = vpop.permute.xlu0 %1015
    %1017 = vrot.lane.b32.xlu0 %v880, 8
    %v1018 = vpop.permute.xlu0 %1017
    %1019 = vrot.lane.b32.xlu0 %v883, 8
    %v1020 = vpop.permute.xlu0 %1019
    %1021 = vrot.lane.b32.xlu0 %v885, 8
    %v1022 = vpop.permute.xlu0 %1021
    %1023 = vrot.lane.b32.xlu0 %v888, 8
    %v1024 = vpop.permute.xlu0 %1023
    %1025 = vrot.lane.b32.xlu0 %v890, 8
    %v1026 = vpop.permute.xlu0 %1025
    %1027 = vrot.lane.b32.xlu0 %v893, 8
    %v1028 = vpop.permute.xlu0 %1027
    %1029 = vrot.lane.b32.xlu0 %v895, 8
    %v1030 = vpop.permute.xlu0 %1029
    %1031 = vrot.lane.b32.xlu0 %v898, 8
    %v1032 = vpop.permute.xlu0 %1031
    %1033 = vrot.lane.b32.xlu0 %v900, 8
    %v1034 = vpop.permute.xlu0 %1033
    %1035 = vrot.lane.b32.xlu0 %v903, 8
    %v1036 = vpop.permute.xlu0 %1035
    %1037 = vrot.lane.b32.xlu0 %v905, 8
    %v1038 = vpop.permute.xlu0 %1037
    %1039 = vrot.lane.b32.xlu0 %v908, 8
    %v1040 = vpop.permute.xlu0 %1039
    %1041 = vrot.lane.b32.xlu0 %v910, 8
    %v1042 = vpop.permute.xlu0 %1041
    %1043 = vrot.lane.b32.xlu0 %v913, 8
    %v1044 = vpop.permute.xlu0 %1043
    %1045 = vrot.lane.b32.xlu0 %v915, 8
    %v1046 = vpop.permute.xlu0 %1045
    %1047 = vrot.lane.b32.xlu0 %v918, 8
    %v1048 = vpop.permute.xlu0 %1047
    %1049 = vrot.lane.b32.xlu0 %v920, 8
    %v1050 = vpop.permute.xlu0 %1049
    %1051 = vrot.lane.b32.xlu0 %v923, 8
    %v1052 = vpop.permute.xlu0 %1051
    %1053 = vrot.lane.b32.xlu0 %v925, 8
    %v1054 = vpop.permute.xlu0 %1053
    %1055 = vrot.lane.b32.xlu0 %v928, 8
    %v1056 = vpop.permute.xlu0 %1055
    %1057 = vrot.lane.b32.xlu0 %v930, 8
    %v1058 = vpop.permute.xlu0 %1057
    %1059 = vrot.lane.b32.xlu0 %v933, 8
    %v1060 = vpop.permute.xlu0 %1059
    %1061 = vrot.lane.b32.xlu0 %v935, 8
    %v1062 = vpop.permute.xlu0 %1061
    %1063 = vrot.lane.b32.xlu0 %v938, 8
    %v1064 = vpop.permute.xlu0 %1063
    %1065 = vrot.lane.b32.xlu0 %v940, 8
    %v1066 = vpop.permute.xlu0 %1065
    %1067 = vrot.lane.b32.xlu0 %v943, 8
    %v1068 = vpop.permute.xlu0 %1067
    %1069 = vrot.lane.b32.xlu0 %v945, 8
    %v1070 = vpop.permute.xlu0 %1069
    %1071 = vrot.lane.b32.xlu0 %v948, 8
    %v1072 = vpop.permute.xlu0 %1071
    %1073 = vrot.lane.b32.xlu0 %v950, 8
    %v1074 = vpop.permute.xlu0 %1073
    %1075 = vrot.lane.b32.xlu0 %v953, 8
    %v1076 = vpop.permute.xlu0 %1075
    %1077 = vrot.lane.b32.xlu0 %v955, 8
    %v1078 = vpop.permute.xlu0 %1077
    %1079 = vrot.lane.b32.xlu0 %v958, 8
    %v1080 = vpop.permute.xlu0 %1079
    %1081 = vrot.lane.b32.xlu0 %v960, 8
    %v1082 = vpop.permute.xlu0 %1081
    %1146 = vrot.lane.b32.xlu0 %v347, 12
    %v1147 = vpop.permute.xlu0 %1146
    %1148 = vrot.lane.b32.xlu0 %v159, 12
    %v1149 = vpop.permute.xlu0 %1148
    %1150 = vrot.lane.b32.xlu0 %v348, 12
    %v1151 = vpop.permute.xlu0 %1150
    %1152 = vrot.lane.b32.xlu0 %v162, 12
    %v1153 = vpop.permute.xlu0 %1152
    %1154 = vrot.lane.b32.xlu0 %v349, 12
    %v1155 = vpop.permute.xlu0 %1154
    %1156 = vrot.lane.b32.xlu0 %v165, 12
    %v1157 = vpop.permute.xlu0 %1156
    %1158 = vrot.lane.b32.xlu0 %v350, 12
    %v1159 = vpop.permute.xlu0 %1158
    %1160 = vrot.lane.b32.xlu0 %v168, 12
    %v1161 = vpop.permute.xlu0 %1160
    %1162 = vrot.lane.b32.xlu0 %v351, 12
    %v1163 = vpop.permute.xlu0 %1162
    %1164 = vrot.lane.b32.xlu0 %v171, 12
    %v1165 = vpop.permute.xlu0 %1164
    %1166 = vrot.lane.b32.xlu0 %v352, 12
    %v1167 = vpop.permute.xlu0 %1166
    %1168 = vrot.lane.b32.xlu0 %v174, 12
    %v1169 = vpop.permute.xlu0 %1168
    %1170 = vrot.lane.b32.xlu0 %v353, 12
    %v1171 = vpop.permute.xlu0 %1170
    %1172 = vrot.lane.b32.xlu0 %v177, 12
    %v1173 = vpop.permute.xlu0 %1172
    %1174 = vrot.lane.b32.xlu0 %v354, 12
    %v1175 = vpop.permute.xlu0 %1174
    %1176 = vrot.lane.b32.xlu0 %v180, 12
    %v1177 = vpop.permute.xlu0 %1176
    %1178 = vrot.lane.b32.xlu0 %v355, 12
    %v1179 = vpop.permute.xlu0 %1178
    %1180 = vrot.lane.b32.xlu0 %v183, 12
    %v1181 = vpop.permute.xlu0 %1180
    %1182 = vrot.lane.b32.xlu0 %v356, 12
    %v1183 = vpop.permute.xlu0 %1182
    %1184 = vrot.lane.b32.xlu0 %v186, 12
    %v1185 = vpop.permute.xlu0 %1184
    %1186 = vrot.lane.b32.xlu0 %v357, 12
    %v1187 = vpop.permute.xlu0 %1186
    %1188 = vrot.lane.b32.xlu0 %v189, 12
    %v1189 = vpop.permute.xlu0 %1188
    %1190 = vrot.lane.b32.xlu0 %v358, 12
    %v1191 = vpop.permute.xlu0 %1190
    %1192 = vrot.lane.b32.xlu0 %v192, 12
    %v1193 = vpop.permute.xlu0 %1192
    %1194 = vrot.lane.b32.xlu0 %v359, 12
    %v1195 = vpop.permute.xlu0 %1194
    %1196 = vrot.lane.b32.xlu0 %v195, 12
    %v1197 = vpop.permute.xlu0 %1196
    %1198 = vrot.lane.b32.xlu0 %v360, 12
    %v1199 = vpop.permute.xlu0 %1198
    %1200 = vrot.lane.b32.xlu0 %v198, 12
    %v1201 = vpop.permute.xlu0 %1200
    %1202 = vrot.lane.b32.xlu0 %v361, 12
    %v1203 = vpop.permute.xlu0 %1202
    %1204 = vrot.lane.b32.xlu0 %v201, 12
    %v1205 = vpop.permute.xlu0 %1204
    %1206 = vrot.lane.b32.xlu0 %v362, 12
    %v1207 = vpop.permute.xlu0 %1206
    %1208 = vrot.lane.b32.xlu0 %v204, 12
    %v1209 = vpop.permute.xlu0 %1208
    %1210 = vrot.lane.b32.xlu0 %v363, 12
    %v1211 = vpop.permute.xlu0 %1210
    %1212 = vrot.lane.b32.xlu0 %v207, 12
    %v1213 = vpop.permute.xlu0 %1212
    %1214 = vrot.lane.b32.xlu0 %v364, 12
    %v1215 = vpop.permute.xlu0 %1214
    %1216 = vrot.lane.b32.xlu0 %v210, 12
    %v1217 = vpop.permute.xlu0 %1216
    %1218 = vrot.lane.b32.xlu0 %v365, 12
    %v1219 = vpop.permute.xlu0 %1218
    %1220 = vrot.lane.b32.xlu0 %v213, 12
    %v1221 = vpop.permute.xlu0 %1220
    %1222 = vrot.lane.b32.xlu0 %v366, 12
    %v1223 = vpop.permute.xlu0 %1222
    %1224 = vrot.lane.b32.xlu0 %v216, 12
    %v1225 = vpop.permute.xlu0 %1224
    %1226 = vrot.lane.b32.xlu0 %v367, 12
    %v1227 = vpop.permute.xlu0 %1226
    %1228 = vrot.lane.b32.xlu0 %v219, 12
    %v1229 = vpop.permute.xlu0 %1228
    %1230 = vrot.lane.b32.xlu0 %v368, 12
    %v1231 = vpop.permute.xlu0 %1230
    %1232 = vrot.lane.b32.xlu0 %v222, 12
    %v1233 = vpop.permute.xlu0 %1232
    %1234 = vrot.lane.b32.xlu0 %v369, 12
    %v1235 = vpop.permute.xlu0 %1234
    %1236 = vrot.lane.b32.xlu0 %v225, 12
    %v1237 = vpop.permute.xlu0 %1236
    %1238 = vrot.lane.b32.xlu0 %v370, 12
    %v1239 = vpop.permute.xlu0 %1238
    %1240 = vrot.lane.b32.xlu0 %v228, 12
    %v1241 = vpop.permute.xlu0 %1240
    %1242 = vrot.lane.b32.xlu0 %v371, 12
    %v1243 = vpop.permute.xlu0 %1242
    %1244 = vrot.lane.b32.xlu0 %v231, 12
    %v1245 = vpop.permute.xlu0 %1244
    %1246 = vrot.lane.b32.xlu0 %v372, 12
    %v1247 = vpop.permute.xlu0 %1246
    %1248 = vrot.lane.b32.xlu0 %v234, 12
    %v1249 = vpop.permute.xlu0 %1248
    %1250 = vrot.lane.b32.xlu0 %v373, 12
    %v1251 = vpop.permute.xlu0 %1250
    %1252 = vrot.lane.b32.xlu0 %v237, 12
    %v1253 = vpop.permute.xlu0 %1252
    %1254 = vrot.lane.b32.xlu0 %v374, 12
    %v1255 = vpop.permute.xlu0 %1254
    %1256 = vrot.lane.b32.xlu0 %v240, 12
    %v1257 = vpop.permute.xlu0 %1256
    %1258 = vrot.lane.b32.xlu0 %v375, 12
    %v1259 = vpop.permute.xlu0 %1258
    %1260 = vrot.lane.b32.xlu0 %v243, 12
    %v1261 = vpop.permute.xlu0 %1260
    %1262 = vrot.lane.b32.xlu0 %v376, 12
    %v1263 = vpop.permute.xlu0 %1262
    %1264 = vrot.lane.b32.xlu0 %v246, 12
    %v1265 = vpop.permute.xlu0 %1264
    %1266 = vrot.lane.b32.xlu0 %v377, 12
    %v1267 = vpop.permute.xlu0 %1266
    %1268 = vrot.lane.b32.xlu0 %v249, 12
    %v1269 = vpop.permute.xlu0 %1268
    %1270 = vrot.lane.b32.xlu0 %v378, 12
    %v1271 = vpop.permute.xlu0 %1270
    %1272 = vrot.lane.b32.xlu0 %v252, 12
    %v1273 = vpop.permute.xlu0 %1272
    %v1340 = vrot.slane %v362, 1
    %v1341 = vrot.slane %v204, 1
    %v1342 = vsel %vm472, %v1340, %v1341
    %v1343 = vrot.slane %v394, 1
    %v1344 = vsel %vm472, %v1341, %v1343
    %v1345 = vrot.slane %v378, 1
    %v1346 = vrot.slane %v252, 1
    %v1347 = vsel %vm472, %v1345, %v1346
    %v1348 = vrot.slane %v410, 1
    %v1349 = vsel %vm472, %v1346, %v1348
    %1350 = vrot.lane.b32.xlu0 %v477, 16
    %v1351 = vpop.permute.xlu0 %1350
    %1352 = vrot.lane.b32.xlu0 %v479, 16
    %v1353 = vpop.permute.xlu0 %1352
    %1354 = vrot.lane.b32.xlu0 %v482, 16
    %v1355 = vpop.permute.xlu0 %1354
    %1356 = vrot.lane.b32.xlu0 %v484, 16
    %v1357 = vpop.permute.xlu0 %1356
    %1358 = vrot.lane.b32.xlu0 %v487, 16
    %v1359 = vpop.permute.xlu0 %1358
    %1360 = vrot.lane.b32.xlu0 %v489, 16
    %v1361 = vpop.permute.xlu0 %1360
    %1362 = vrot.lane.b32.xlu0 %v492, 16
    %v1363 = vpop.permute.xlu0 %1362
    %1364 = vrot.lane.b32.xlu0 %v494, 16
    %v1365 = vpop.permute.xlu0 %1364
    %1366 = vrot.lane.b32.xlu0 %v497, 16
    %v1367 = vpop.permute.xlu0 %1366
    %1368 = vrot.lane.b32.xlu0 %v499, 16
    %v1369 = vpop.permute.xlu0 %1368
    %1370 = vrot.lane.b32.xlu0 %v502, 16
    %v1371 = vpop.permute.xlu0 %1370
    %1372 = vrot.lane.b32.xlu0 %v504, 16
    %v1373 = vpop.permute.xlu0 %1372
    %1374 = vrot.lane.b32.xlu0 %v507, 16
    %v1375 = vpop.permute.xlu0 %1374
    %1376 = vrot.lane.b32.xlu0 %v509, 16
    %v1377 = vpop.permute.xlu0 %1376
    %1378 = vrot.lane.b32.xlu0 %v512, 16
    %v1379 = vpop.permute.xlu0 %1378
    %1380 = vrot.lane.b32.xlu0 %v514, 16
    %v1381 = vpop.permute.xlu0 %1380
    %1382 = vrot.lane.b32.xlu0 %v517, 16
    %v1383 = vpop.permute.xlu0 %1382
    %1384 = vrot.lane.b32.xlu0 %v519, 16
    %v1385 = vpop.permute.xlu0 %1384
    %1386 = vrot.lane.b32.xlu0 %v522, 16
    %v1387 = vpop.permute.xlu0 %1386
    %1388 = vrot.lane.b32.xlu0 %v524, 16
    %v1389 = vpop.permute.xlu0 %1388
    %1390 = vrot.lane.b32.xlu0 %v527, 16
    %v1391 = vpop.permute.xlu0 %1390
    %1392 = vrot.lane.b32.xlu0 %v529, 16
    %v1393 = vpop.permute.xlu0 %1392
    %1394 = vrot.lane.b32.xlu0 %v532, 16
    %v1395 = vpop.permute.xlu0 %1394
    %1396 = vrot.lane.b32.xlu0 %v534, 16
    %v1397 = vpop.permute.xlu0 %1396
    %1398 = vrot.lane.b32.xlu0 %v537, 16
    %v1399 = vpop.permute.xlu0 %1398
    %1400 = vrot.lane.b32.xlu0 %v539, 16
    %v1401 = vpop.permute.xlu0 %1400
    %1402 = vrot.lane.b32.xlu0 %v542, 16
    %v1403 = vpop.permute.xlu0 %1402
    %1404 = vrot.lane.b32.xlu0 %v544, 16
    %v1405 = vpop.permute.xlu0 %1404
    %1406 = vrot.lane.b32.xlu0 %v547, 16
    %v1407 = vpop.permute.xlu0 %1406
    %1408 = vrot.lane.b32.xlu0 %v549, 16
    %v1409 = vpop.permute.xlu0 %1408
    %1410 = vrot.lane.b32.xlu0 %v1342, 16
    %v1411 = vpop.permute.xlu0 %1410
    %1412 = vrot.lane.b32.xlu0 %v1344, 16
    %v1413 = vpop.permute.xlu0 %1412
    %1414 = vrot.lane.b32.xlu0 %v552, 16
    %v1415 = vpop.permute.xlu0 %1414
    %1416 = vrot.lane.b32.xlu0 %v554, 16
    %v1417 = vpop.permute.xlu0 %1416
    %1418 = vrot.lane.b32.xlu0 %v557, 16
    %v1419 = vpop.permute.xlu0 %1418
    %1420 = vrot.lane.b32.xlu0 %v559, 16
    %v1421 = vpop.permute.xlu0 %1420
    %1422 = vrot.lane.b32.xlu0 %v562, 16
    %v1423 = vpop.permute.xlu0 %1422
    %1424 = vrot.lane.b32.xlu0 %v564, 16
    %v1425 = vpop.permute.xlu0 %1424
    %1426 = vrot.lane.b32.xlu0 %v567, 16
    %v1427 = vpop.permute.xlu0 %1426
    %1428 = vrot.lane.b32.xlu0 %v569, 16
    %v1429 = vpop.permute.xlu0 %1428
    %1430 = vrot.lane.b32.xlu0 %v572, 16
    %v1431 = vpop.permute.xlu0 %1430
    %1432 = vrot.lane.b32.xlu0 %v574, 16
    %v1433 = vpop.permute.xlu0 %1432
    %1434 = vrot.lane.b32.xlu0 %v577, 16
    %v1435 = vpop.permute.xlu0 %1434
    %1436 = vrot.lane.b32.xlu0 %v579, 16
    %v1437 = vpop.permute.xlu0 %1436
    %1438 = vrot.lane.b32.xlu0 %v582, 16
    %v1439 = vpop.permute.xlu0 %1438
    %1440 = vrot.lane.b32.xlu0 %v584, 16
    %v1441 = vpop.permute.xlu0 %1440
    %1442 = vrot.lane.b32.xlu0 %v587, 16
    %v1443 = vpop.permute.xlu0 %1442
    %1444 = vrot.lane.b32.xlu0 %v589, 16
    %v1445 = vpop.permute.xlu0 %1444
    %1446 = vrot.lane.b32.xlu0 %v592, 16
    %v1447 = vpop.permute.xlu0 %1446
    %1448 = vrot.lane.b32.xlu0 %v594, 16
    %v1449 = vpop.permute.xlu0 %1448
    %1450 = vrot.lane.b32.xlu0 %v597, 16
    %v1451 = vpop.permute.xlu0 %1450
    %1452 = vrot.lane.b32.xlu0 %v599, 16
    %v1453 = vpop.permute.xlu0 %1452
    %1454 = vrot.lane.b32.xlu0 %v602, 16
    %v1455 = vpop.permute.xlu0 %1454
    %1456 = vrot.lane.b32.xlu0 %v604, 16
    %v1457 = vpop.permute.xlu0 %1456
    %1458 = vrot.lane.b32.xlu0 %v607, 16
    %v1459 = vpop.permute.xlu0 %1458
    %1460 = vrot.lane.b32.xlu0 %v609, 16
    %v1461 = vpop.permute.xlu0 %1460
    %1462 = vrot.lane.b32.xlu0 %v612, 16
    %v1463 = vpop.permute.xlu0 %1462
    %1464 = vrot.lane.b32.xlu0 %v614, 16
    %v1465 = vpop.permute.xlu0 %1464
    %1466 = vrot.lane.b32.xlu0 %v617, 16
    %v1467 = vpop.permute.xlu0 %1466
    %1468 = vrot.lane.b32.xlu0 %v619, 16
    %v1469 = vpop.permute.xlu0 %1468
    %1470 = vrot.lane.b32.xlu0 %v622, 16
    %v1471 = vpop.permute.xlu0 %1470
    %1472 = vrot.lane.b32.xlu0 %v624, 16
    %v1473 = vpop.permute.xlu0 %1472
    %1474 = vrot.lane.b32.xlu0 %v1347, 16
    %v1475 = vpop.permute.xlu0 %1474
    %1476 = vrot.lane.b32.xlu0 %v1349, 16
    %v1477 = vpop.permute.xlu0 %1476
    %v1542 = vrot.slane %v362, 2
    %v1543 = vrot.slane %v204, 2
    %v1544 = vsel %vm808, %v1542, %v1543
    %v1545 = vrot.slane %v394, 2
    %v1546 = vsel %vm808, %v1543, %v1545
    %v1547 = vrot.slane %v378, 2
    %v1548 = vrot.slane %v252, 2
    %v1549 = vsel %vm808, %v1547, %v1548
    %v1550 = vrot.slane %v410, 2
    %v1551 = vsel %vm808, %v1548, %v1550
    %1552 = vrot.lane.b32.xlu0 %v813, 20
    %v1553 = vpop.permute.xlu0 %1552
    %1554 = vrot.lane.b32.xlu0 %v815, 20
    %v1555 = vpop.permute.xlu0 %1554
    %1556 = vrot.lane.b32.xlu0 %v818, 20
    %v1557 = vpop.permute.xlu0 %1556
    %1558 = vrot.lane.b32.xlu0 %v820, 20
    %v1559 = vpop.permute.xlu0 %1558
    %1560 = vrot.lane.b32.xlu0 %v823, 20
    %v1561 = vpop.permute.xlu0 %1560
    %1562 = vrot.lane.b32.xlu0 %v825, 20
    %v1563 = vpop.permute.xlu0 %1562
    %1564 = vrot.lane.b32.xlu0 %v828, 20
    %v1565 = vpop.permute.xlu0 %1564
    %1566 = vrot.lane.b32.xlu0 %v830, 20
    %v1567 = vpop.permute.xlu0 %1566
    %1568 = vrot.lane.b32.xlu0 %v833, 20
    %v1569 = vpop.permute.xlu0 %1568
    %1570 = vrot.lane.b32.xlu0 %v835, 20
    %v1571 = vpop.permute.xlu0 %1570
    %1572 = vrot.lane.b32.xlu0 %v838, 20
    %v1573 = vpop.permute.xlu0 %1572
    %1574 = vrot.lane.b32.xlu0 %v840, 20
    %v1575 = vpop.permute.xlu0 %1574
    %1576 = vrot.lane.b32.xlu0 %v843, 20
    %v1577 = vpop.permute.xlu0 %1576
    %1578 = vrot.lane.b32.xlu0 %v845, 20
    %v1579 = vpop.permute.xlu0 %1578
    %1580 = vrot.lane.b32.xlu0 %v848, 20
    %v1581 = vpop.permute.xlu0 %1580
    %1582 = vrot.lane.b32.xlu0 %v850, 20
    %v1583 = vpop.permute.xlu0 %1582
    %1584 = vrot.lane.b32.xlu0 %v853, 20
    %v1585 = vpop.permute.xlu0 %1584
    %1586 = vrot.lane.b32.xlu0 %v855, 20
    %v1587 = vpop.permute.xlu0 %1586
    %1588 = vrot.lane.b32.xlu0 %v858, 20
    %v1589 = vpop.permute.xlu0 %1588
    %1590 = vrot.lane.b32.xlu0 %v860, 20
    %v1591 = vpop.permute.xlu0 %1590
    %1592 = vrot.lane.b32.xlu0 %v863, 20
    %v1593 = vpop.permute.xlu0 %1592
    %1594 = vrot.lane.b32.xlu0 %v865, 20
    %v1595 = vpop.permute.xlu0 %1594
    %1596 = vrot.lane.b32.xlu0 %v868, 20
    %v1597 = vpop.permute.xlu0 %1596
    %1598 = vrot.lane.b32.xlu0 %v870, 20
    %v1599 = vpop.permute.xlu0 %1598
    %1600 = vrot.lane.b32.xlu0 %v873, 20
    %v1601 = vpop.permute.xlu0 %1600
    %1602 = vrot.lane.b32.xlu0 %v875, 20
    %v1603 = vpop.permute.xlu0 %1602
    %1604 = vrot.lane.b32.xlu0 %v878, 20
    %v1605 = vpop.permute.xlu0 %1604
    %1606 = vrot.lane.b32.xlu0 %v880, 20
    %v1607 = vpop.permute.xlu0 %1606
    %1608 = vrot.lane.b32.xlu0 %v883, 20
    %v1609 = vpop.permute.xlu0 %1608
    %1610 = vrot.lane.b32.xlu0 %v885, 20
    %v1611 = vpop.permute.xlu0 %1610
    %1612 = vrot.lane.b32.xlu0 %v1544, 20
    %v1613 = vpop.permute.xlu0 %1612
    %1614 = vrot.lane.b32.xlu0 %v1546, 20
    %v1615 = vpop.permute.xlu0 %1614
    %1616 = vrot.lane.b32.xlu0 %v888, 20
    %v1617 = vpop.permute.xlu0 %1616
    %1618 = vrot.lane.b32.xlu0 %v890, 20
    %v1619 = vpop.permute.xlu0 %1618
    %1620 = vrot.lane.b32.xlu0 %v893, 20
    %v1621 = vpop.permute.xlu0 %1620
    %1622 = vrot.lane.b32.xlu0 %v895, 20
    %v1623 = vpop.permute.xlu0 %1622
    %1624 = vrot.lane.b32.xlu0 %v898, 20
    %v1625 = vpop.permute.xlu0 %1624
    %1626 = vrot.lane.b32.xlu0 %v900, 20
    %v1627 = vpop.permute.xlu0 %1626
    %1628 = vrot.lane.b32.xlu0 %v903, 20
    %v1629 = vpop.permute.xlu0 %1628
    %1630 = vrot.lane.b32.xlu0 %v905, 20
    %v1631 = vpop.permute.xlu0 %1630
    %1632 = vrot.lane.b32.xlu0 %v908, 20
    %v1633 = vpop.permute.xlu0 %1632
    %1634 = vrot.lane.b32.xlu0 %v910, 20
    %v1635 = vpop.permute.xlu0 %1634
    %1636 = vrot.lane.b32.xlu0 %v913, 20
    %v1637 = vpop.permute.xlu0 %1636
    %1638 = vrot.lane.b32.xlu0 %v915, 20
    %v1639 = vpop.permute.xlu0 %1638
    %1640 = vrot.lane.b32.xlu0 %v918, 20
    %v1641 = vpop.permute.xlu0 %1640
    %1642 = vrot.lane.b32.xlu0 %v920, 20
    %v1643 = vpop.permute.xlu0 %1642
    %1644 = vrot.lane.b32.xlu0 %v923, 20
    %v1645 = vpop.permute.xlu0 %1644
    %1646 = vrot.lane.b32.xlu0 %v925, 20
    %v1647 = vpop.permute.xlu0 %1646
    %1648 = vrot.lane.b32.xlu0 %v928, 20
    %v1649 = vpop.permute.xlu0 %1648
    %1650 = vrot.lane.b32.xlu0 %v930, 20
    %v1651 = vpop.permute.xlu0 %1650
    %1652 = vrot.lane.b32.xlu0 %v933, 20
    %v1653 = vpop.permute.xlu0 %1652
    %1654 = vrot.lane.b32.xlu0 %v935, 20
    %v1655 = vpop.permute.xlu0 %1654
    %1656 = vrot.lane.b32.xlu0 %v938, 20
    %v1657 = vpop.permute.xlu0 %1656
    %1658 = vrot.lane.b32.xlu0 %v940, 20
    %v1659 = vpop.permute.xlu0 %1658
    %1660 = vrot.lane.b32.xlu0 %v943, 20
    %v1661 = vpop.permute.xlu0 %1660
    %1662 = vrot.lane.b32.xlu0 %v945, 20
    %v1663 = vpop.permute.xlu0 %1662
    %1664 = vrot.lane.b32.xlu0 %v948, 20
    %v1665 = vpop.permute.xlu0 %1664
    %1666 = vrot.lane.b32.xlu0 %v950, 20
    %v1667 = vpop.permute.xlu0 %1666
    %1668 = vrot.lane.b32.xlu0 %v953, 20
    %v1669 = vpop.permute.xlu0 %1668
    %1670 = vrot.lane.b32.xlu0 %v955, 20
    %v1671 = vpop.permute.xlu0 %1670
    %1672 = vrot.lane.b32.xlu0 %v958, 20
    %v1673 = vpop.permute.xlu0 %1672
    %1674 = vrot.lane.b32.xlu0 %v960, 20
    %v1675 = vpop.permute.xlu0 %1674
    %1676 = vrot.lane.b32.xlu0 %v1549, 20
    %v1677 = vpop.permute.xlu0 %1676
    %1678 = vrot.lane.b32.xlu0 %v1551, 20
    %v1679 = vpop.permute.xlu0 %1678
    %1744 = vrot.lane.b32.xlu0 %v348, 24
    %v1745 = vpop.permute.xlu0 %1744
    %1746 = vrot.lane.b32.xlu0 %v162, 24
    %v1747 = vpop.permute.xlu0 %1746
    %1748 = vrot.lane.b32.xlu0 %v349, 24
    %v1749 = vpop.permute.xlu0 %1748
    %1750 = vrot.lane.b32.xlu0 %v165, 24
    %v1751 = vpop.permute.xlu0 %1750
    %1752 = vrot.lane.b32.xlu0 %v350, 24
    %v1753 = vpop.permute.xlu0 %1752
    %1754 = vrot.lane.b32.xlu0 %v168, 24
    %v1755 = vpop.permute.xlu0 %1754
    %1756 = vrot.lane.b32.xlu0 %v351, 24
    %v1757 = vpop.permute.xlu0 %1756
    %1758 = vrot.lane.b32.xlu0 %v171, 24
    %v1759 = vpop.permute.xlu0 %1758
    %1760 = vrot.lane.b32.xlu0 %v352, 24
    %v1761 = vpop.permute.xlu0 %1760
    %1762 = vrot.lane.b32.xlu0 %v174, 24
    %v1763 = vpop.permute.xlu0 %1762
    %1764 = vrot.lane.b32.xlu0 %v353, 24
    %v1765 = vpop.permute.xlu0 %1764
    %1766 = vrot.lane.b32.xlu0 %v177, 24
    %v1767 = vpop.permute.xlu0 %1766
    %1768 = vrot.lane.b32.xlu0 %v354, 24
    %v1769 = vpop.permute.xlu0 %1768
    %1770 = vrot.lane.b32.xlu0 %v180, 24
    %v1771 = vpop.permute.xlu0 %1770
    %1772 = vrot.lane.b32.xlu0 %v355, 24
    %v1773 = vpop.permute.xlu0 %1772
    %1774 = vrot.lane.b32.xlu0 %v183, 24
    %v1775 = vpop.permute.xlu0 %1774
    %1776 = vrot.lane.b32.xlu0 %v356, 24
    %v1777 = vpop.permute.xlu0 %1776
    %1778 = vrot.lane.b32.xlu0 %v186, 24
    %v1779 = vpop.permute.xlu0 %1778
    %1780 = vrot.lane.b32.xlu0 %v357, 24
    %v1781 = vpop.permute.xlu0 %1780
    %1782 = vrot.lane.b32.xlu0 %v189, 24
    %v1783 = vpop.permute.xlu0 %1782
    %1784 = vrot.lane.b32.xlu0 %v358, 24
    %v1785 = vpop.permute.xlu0 %1784
    %1786 = vrot.lane.b32.xlu0 %v192, 24
    %v1787 = vpop.permute.xlu0 %1786
    %1788 = vrot.lane.b32.xlu0 %v359, 24
    %v1789 = vpop.permute.xlu0 %1788
    %1790 = vrot.lane.b32.xlu0 %v195, 24
    %v1791 = vpop.permute.xlu0 %1790
    %1792 = vrot.lane.b32.xlu0 %v360, 24
    %v1793 = vpop.permute.xlu0 %1792
    %1794 = vrot.lane.b32.xlu0 %v198, 24
    %v1795 = vpop.permute.xlu0 %1794
    %1796 = vrot.lane.b32.xlu0 %v361, 24
    %v1797 = vpop.permute.xlu0 %1796
    %1798 = vrot.lane.b32.xlu0 %v201, 24
    %v1799 = vpop.permute.xlu0 %1798
    %1800 = vrot.lane.b32.xlu0 %v362, 24
    %v1801 = vpop.permute.xlu0 %1800
    %1802 = vrot.lane.b32.xlu0 %v204, 24
    %v1803 = vpop.permute.xlu0 %1802
    %1804 = vrot.lane.b32.xlu0 0.0, 24
    %v1805 = vpop.permute.xlu0 %1804
    %1806 = vrot.lane.b32.xlu0 %v364, 24
    %v1807 = vpop.permute.xlu0 %1806
    %1808 = vrot.lane.b32.xlu0 %v210, 24
    %v1809 = vpop.permute.xlu0 %1808
    %1810 = vrot.lane.b32.xlu0 %v365, 24
    %v1811 = vpop.permute.xlu0 %1810
    %1812 = vrot.lane.b32.xlu0 %v213, 24
    %v1813 = vpop.permute.xlu0 %1812
    %1814 = vrot.lane.b32.xlu0 %v366, 24
    %v1815 = vpop.permute.xlu0 %1814
    %1816 = vrot.lane.b32.xlu0 %v216, 24
    %v1817 = vpop.permute.xlu0 %1816
    %1818 = vrot.lane.b32.xlu0 %v367, 24
    %v1819 = vpop.permute.xlu0 %1818
    %1820 = vrot.lane.b32.xlu0 %v219, 24
    %v1821 = vpop.permute.xlu0 %1820
    %1822 = vrot.lane.b32.xlu0 %v368, 24
    %v1823 = vpop.permute.xlu0 %1822
    %1824 = vrot.lane.b32.xlu0 %v222, 24
    %v1825 = vpop.permute.xlu0 %1824
    %1826 = vrot.lane.b32.xlu0 %v369, 24
    %v1827 = vpop.permute.xlu0 %1826
    %1828 = vrot.lane.b32.xlu0 %v225, 24
    %v1829 = vpop.permute.xlu0 %1828
    %1830 = vrot.lane.b32.xlu0 %v370, 24
    %v1831 = vpop.permute.xlu0 %1830
    %1832 = vrot.lane.b32.xlu0 %v228, 24
    %v1833 = vpop.permute.xlu0 %1832
    %1834 = vrot.lane.b32.xlu0 %v371, 24
    %v1835 = vpop.permute.xlu0 %1834
    %1836 = vrot.lane.b32.xlu0 %v231, 24
    %v1837 = vpop.permute.xlu0 %1836
    %1838 = vrot.lane.b32.xlu0 %v372, 24
    %v1839 = vpop.permute.xlu0 %1838
    %1840 = vrot.lane.b32.xlu0 %v234, 24
    %v1841 = vpop.permute.xlu0 %1840
    %1842 = vrot.lane.b32.xlu0 %v373, 24
    %v1843 = vpop.permute.xlu0 %1842
    %1844 = vrot.lane.b32.xlu0 %v237, 24
    %v1845 = vpop.permute.xlu0 %1844
    %1846 = vrot.lane.b32.xlu0 %v374, 24
    %v1847 = vpop.permute.xlu0 %1846
    %1848 = vrot.lane.b32.xlu0 %v240, 24
    %v1849 = vpop.permute.xlu0 %1848
    %1850 = vrot.lane.b32.xlu0 %v375, 24
    %v1851 = vpop.permute.xlu0 %1850
    %1852 = vrot.lane.b32.xlu0 %v243, 24
    %v1853 = vpop.permute.xlu0 %1852
    %1854 = vrot.lane.b32.xlu0 %v376, 24
    %v1855 = vpop.permute.xlu0 %1854
    %1856 = vrot.lane.b32.xlu0 %v246, 24
    %v1857 = vpop.permute.xlu0 %1856
    %1858 = vrot.lane.b32.xlu0 %v377, 24
    %v1859 = vpop.permute.xlu0 %1858
    %1860 = vrot.lane.b32.xlu0 %v249, 24
    %v1861 = vpop.permute.xlu0 %1860
    %1862 = vrot.lane.b32.xlu0 %v378, 24
    %v1863 = vpop.permute.xlu0 %1862
    %1864 = vrot.lane.b32.xlu0 %v252, 24
    %v1865 = vpop.permute.xlu0 %1864
    %1927 = vrot.lane.b32.xlu0 %v482, 28
    %v1928 = vpop.permute.xlu0 %1927
    %1929 = vrot.lane.b32.xlu0 %v484, 28
    %v1930 = vpop.permute.xlu0 %1929
    %1931 = vrot.lane.b32.xlu0 %v487, 28
    %v1932 = vpop.permute.xlu0 %1931
    %1933 = vrot.lane.b32.xlu0 %v489, 28
    %v1934 = vpop.permute.xlu0 %1933
    %1935 = vrot.lane.b32.xlu0 %v492, 28
    %v1936 = vpop.permute.xlu0 %1935
    %1937 = vrot.lane.b32.xlu0 %v494, 28
    %v1938 = vpop.permute.xlu0 %1937
    %1939 = vrot.lane.b32.xlu0 %v497, 28
    %v1940 = vpop.permute.xlu0 %1939
    %1941 = vrot.lane.b32.xlu0 %v499, 28
    %v1942 = vpop.permute.xlu0 %1941
    %1943 = vrot.lane.b32.xlu0 %v502, 28
    %v1944 = vpop.permute.xlu0 %1943
    %1945 = vrot.lane.b32.xlu0 %v504, 28
    %v1946 = vpop.permute.xlu0 %1945
    %1947 = vrot.lane.b32.xlu0 %v507, 28
    %v1948 = vpop.permute.xlu0 %1947
    %1949 = vrot.lane.b32.xlu0 %v509, 28
    %v1950 = vpop.permute.xlu0 %1949
    %1951 = vrot.lane.b32.xlu0 %v512, 28
    %v1952 = vpop.permute.xlu0 %1951
    %1953 = vrot.lane.b32.xlu0 %v514, 28
    %v1954 = vpop.permute.xlu0 %1953
    %1955 = vrot.lane.b32.xlu0 %v517, 28
    %v1956 = vpop.permute.xlu0 %1955
    %1957 = vrot.lane.b32.xlu0 %v519, 28
    %v1958 = vpop.permute.xlu0 %1957
    %1959 = vrot.lane.b32.xlu0 %v522, 28
    %v1960 = vpop.permute.xlu0 %1959
    %1961 = vrot.lane.b32.xlu0 %v524, 28
    %v1962 = vpop.permute.xlu0 %1961
    %1963 = vrot.lane.b32.xlu0 %v527, 28
    %v1964 = vpop.permute.xlu0 %1963
    %1965 = vrot.lane.b32.xlu0 %v529, 28
    %v1966 = vpop.permute.xlu0 %1965
    %1967 = vrot.lane.b32.xlu0 %v532, 28
    %v1968 = vpop.permute.xlu0 %1967
    %1969 = vrot.lane.b32.xlu0 %v534, 28
    %v1970 = vpop.permute.xlu0 %1969
    %1971 = vrot.lane.b32.xlu0 %v537, 28
    %v1972 = vpop.permute.xlu0 %1971
    %1973 = vrot.lane.b32.xlu0 %v539, 28
    %v1974 = vpop.permute.xlu0 %1973
    %1975 = vrot.lane.b32.xlu0 %v542, 28
    %v1976 = vpop.permute.xlu0 %1975
    %1977 = vrot.lane.b32.xlu0 %v544, 28
    %v1978 = vpop.permute.xlu0 %1977
    %1979 = vrot.lane.b32.xlu0 %v547, 28
    %v1980 = vpop.permute.xlu0 %1979
    %1981 = vrot.lane.b32.xlu0 %v549, 28
    %v1982 = vpop.permute.xlu0 %1981
    %1983 = vrot.lane.b32.xlu0 %v1342, 28
    %v1984 = vpop.permute.xlu0 %1983
    %1985 = vrot.lane.b32.xlu0 %v1344, 28
    %v1986 = vpop.permute.xlu0 %1985
    %1987 = vrot.lane.b32.xlu0 %v474, 28
    %v1988 = vpop.permute.xlu0 %1987
    %1989 = vrot.lane.b32.xlu0 %v557, 28
    %v1990 = vpop.permute.xlu0 %1989
    %1991 = vrot.lane.b32.xlu0 %v559, 28
    %v1992 = vpop.permute.xlu0 %1991
    %1993 = vrot.lane.b32.xlu0 %v562, 28
    %v1994 = vpop.permute.xlu0 %1993
    %1995 = vrot.lane.b32.xlu0 %v564, 28
    %v1996 = vpop.permute.xlu0 %1995
    %1997 = vrot.lane.b32.xlu0 %v567, 28
    %v1998 = vpop.permute.xlu0 %1997
    %1999 = vrot.lane.b32.xlu0 %v569, 28
    %v2000 = vpop.permute.xlu0 %1999
    %2001 = vrot.lane.b32.xlu0 %v572, 28
    %v2002 = vpop.permute.xlu0 %2001
    %2003 = vrot.lane.b32.xlu0 %v574, 28
    %v2004 = vpop.permute.xlu0 %2003
    %2005 = vrot.lane.b32.xlu0 %v577, 28
    %v2006 = vpop.permute.xlu0 %2005
    %2007 = vrot.lane.b32.xlu0 %v579, 28
    %v2008 = vpop.permute.xlu0 %2007
    %2009 = vrot.lane.b32.xlu0 %v582, 28
    %v2010 = vpop.permute.xlu0 %2009
    %2011 = vrot.lane.b32.xlu0 %v584, 28
    %v2012 = vpop.permute.xlu0 %2011
    %2013 = vrot.lane.b32.xlu0 %v587, 28
    %v2014 = vpop.permute.xlu0 %2013
    %2015 = vrot.lane.b32.xlu0 %v589, 28
    %v2016 = vpop.permute.xlu0 %2015
    %2017 = vrot.lane.b32.xlu0 %v592, 28
    %v2018 = vpop.permute.xlu0 %2017
    %2019 = vrot.lane.b32.xlu0 %v594, 28
    %v2020 = vpop.permute.xlu0 %2019
    %2021 = vrot.lane.b32.xlu0 %v597, 28
    %v2022 = vpop.permute.xlu0 %2021
    %2023 = vrot.lane.b32.xlu0 %v599, 28
    %v2024 = vpop.permute.xlu0 %2023
    %2025 = vrot.lane.b32.xlu0 %v602, 28
    %v2026 = vpop.permute.xlu0 %2025
    %2027 = vrot.lane.b32.xlu0 %v604, 28
    %v2028 = vpop.permute.xlu0 %2027
    %2029 = vrot.lane.b32.xlu0 %v607, 28
    %v2030 = vpop.permute.xlu0 %2029
    %2031 = vrot.lane.b32.xlu0 %v609, 28
    %v2032 = vpop.permute.xlu0 %2031
    %2033 = vrot.lane.b32.xlu0 %v612, 28
    %v2034 = vpop.permute.xlu0 %2033
    %2035 = vrot.lane.b32.xlu0 %v614, 28
    %v2036 = vpop.permute.xlu0 %2035
    %2037 = vrot.lane.b32.xlu0 %v617, 28
    %v2038 = vpop.permute.xlu0 %2037
    %2039 = vrot.lane.b32.xlu0 %v619, 28
    %v2040 = vpop.permute.xlu0 %2039
    %2041 = vrot.lane.b32.xlu0 %v622, 28
    %v2042 = vpop.permute.xlu0 %2041
    %2043 = vrot.lane.b32.xlu0 %v624, 28
    %v2044 = vpop.permute.xlu0 %2043
    %2045 = vrot.lane.b32.xlu0 %v1347, 28
    %v2046 = vpop.permute.xlu0 %2045
    %2047 = vrot.lane.b32.xlu0 %v1349, 28
    %v2048 = vpop.permute.xlu0 %2047
    %2110 = vrot.lane.b32.xlu0 %v818, 32
    %v2111 = vpop.permute.xlu0 %2110
    %2112 = vrot.lane.b32.xlu0 %v820, 32
    %v2113 = vpop.permute.xlu0 %2112
    %2114 = vrot.lane.b32.xlu0 %v823, 32
    %v2115 = vpop.permute.xlu0 %2114
    %2116 = vrot.lane.b32.xlu0 %v825, 32
    %v2117 = vpop.permute.xlu0 %2116
    %2118 = vrot.lane.b32.xlu0 %v828, 32
    %v2119 = vpop.permute.xlu0 %2118
    %2120 = vrot.lane.b32.xlu0 %v830, 32
    %v2121 = vpop.permute.xlu0 %2120
    %2122 = vrot.lane.b32.xlu0 %v833, 32
    %v2123 = vpop.permute.xlu0 %2122
    %2124 = vrot.lane.b32.xlu0 %v835, 32
    %v2125 = vpop.permute.xlu0 %2124
    %2126 = vrot.lane.b32.xlu0 %v838, 32
    %v2127 = vpop.permute.xlu0 %2126
    %2128 = vrot.lane.b32.xlu0 %v840, 32
    %v2129 = vpop.permute.xlu0 %2128
    %2130 = vrot.lane.b32.xlu0 %v843, 32
    %v2131 = vpop.permute.xlu0 %2130
    %2132 = vrot.lane.b32.xlu0 %v845, 32
    %v2133 = vpop.permute.xlu0 %2132
    %2134 = vrot.lane.b32.xlu0 %v848, 32
    %v2135 = vpop.permute.xlu0 %2134
    %2136 = vrot.lane.b32.xlu0 %v850, 32
    %v2137 = vpop.permute.xlu0 %2136
    %2138 = vrot.lane.b32.xlu0 %v853, 32
    %v2139 = vpop.permute.xlu0 %2138
    %2140 = vrot.lane.b32.xlu0 %v855, 32
    %v2141 = vpop.permute.xlu0 %2140
    %2142 = vrot.lane.b32.xlu0 %v858, 32
    %v2143 = vpop.permute.xlu0 %2142
    %2144 = vrot.lane.b32.xlu0 %v860, 32
    %v2145 = vpop.permute.xlu0 %2144
    %2146 = vrot.lane.b32.xlu0 %v863, 32
    %v2147 = vpop.permute.xlu0 %2146
    %2148 = vrot.lane.b32.xlu0 %v865, 32
    %v2149 = vpop.permute.xlu0 %2148
    %2150 = vrot.lane.b32.xlu0 %v868, 32
    %v2151 = vpop.permute.xlu0 %2150
    %2152 = vrot.lane.b32.xlu0 %v870, 32
    %v2153 = vpop.permute.xlu0 %2152
    %2154 = vrot.lane.b32.xlu0 %v873, 32
    %v2155 = vpop.permute.xlu0 %2154
    %2156 = vrot.lane.b32.xlu0 %v875, 32
    %v2157 = vpop.permute.xlu0 %2156
    %2158 = vrot.lane.b32.xlu0 %v878, 32
    %v2159 = vpop.permute.xlu0 %2158
    %2160 = vrot.lane.b32.xlu0 %v880, 32
    %v2161 = vpop.permute.xlu0 %2160
    %2162 = vrot.lane.b32.xlu0 %v883, 32
    %v2163 = vpop.permute.xlu0 %2162
    %2164 = vrot.lane.b32.xlu0 %v885, 32
    %v2165 = vpop.permute.xlu0 %2164
    %2166 = vrot.lane.b32.xlu0 %v1544, 32
    %v2167 = vpop.permute.xlu0 %2166
    %2168 = vrot.lane.b32.xlu0 %v1546, 32
    %v2169 = vpop.permute.xlu0 %2168
    %2170 = vrot.lane.b32.xlu0 %v810, 32
    %v2171 = vpop.permute.xlu0 %2170
    %2172 = vrot.lane.b32.xlu0 %v893, 32
    %v2173 = vpop.permute.xlu0 %2172
    %2174 = vrot.lane.b32.xlu0 %v895, 32
    %v2175 = vpop.permute.xlu0 %2174
    %2176 = vrot.lane.b32.xlu0 %v898, 32
    %v2177 = vpop.permute.xlu0 %2176
    %2178 = vrot.lane.b32.xlu0 %v900, 32
    %v2179 = vpop.permute.xlu0 %2178
    %2180 = vrot.lane.b32.xlu0 %v903, 32
    %v2181 = vpop.permute.xlu0 %2180
    %2182 = vrot.lane.b32.xlu0 %v905, 32
    %v2183 = vpop.permute.xlu0 %2182
    %2184 = vrot.lane.b32.xlu0 %v908, 32
    %v2185 = vpop.permute.xlu0 %2184
    %2186 = vrot.lane.b32.xlu0 %v910, 32
    %v2187 = vpop.permute.xlu0 %2186
    %2188 = vrot.lane.b32.xlu0 %v913, 32
    %v2189 = vpop.permute.xlu0 %2188
    %2190 = vrot.lane.b32.xlu0 %v915, 32
    %v2191 = vpop.permute.xlu0 %2190
    %2192 = vrot.lane.b32.xlu0 %v918, 32
    %v2193 = vpop.permute.xlu0 %2192
    %2194 = vrot.lane.b32.xlu0 %v920, 32
    %v2195 = vpop.permute.xlu0 %2194
    %2196 = vrot.lane.b32.xlu0 %v923, 32
    %v2197 = vpop.permute.xlu0 %2196
    %2198 = vrot.lane.b32.xlu0 %v925, 32
    %v2199 = vpop.permute.xlu0 %2198
    %2200 = vrot.lane.b32.xlu0 %v928, 32
    %v2201 = vpop.permute.xlu0 %2200
    %2202 = vrot.lane.b32.xlu0 %v930, 32
    %v2203 = vpop.permute.xlu0 %2202
    %2204 = vrot.lane.b32.xlu0 %v933, 32
    %v2205 = vpop.permute.xlu0 %2204
    %2206 = vrot.lane.b32.xlu0 %v935, 32
    %v2207 = vpop.permute.xlu0 %2206
    %2208 = vrot.lane.b32.xlu0 %v938, 32
    %v2209 = vpop.permute.xlu0 %2208
    %2210 = vrot.lane.b32.xlu0 %v940, 32
    %v2211 = vpop.permute.xlu0 %2210
    %2212 = vrot.lane.b32.xlu0 %v943, 32
    %v2213 = vpop.permute.xlu0 %2212
    %2214 = vrot.lane.b32.xlu0 %v945, 32
    %v2215 = vpop.permute.xlu0 %2214
    %2216 = vrot.lane.b32.xlu0 %v948, 32
    %v2217 = vpop.permute.xlu0 %2216
    %2218 = vrot.lane.b32.xlu0 %v950, 32
    %v2219 = vpop.permute.xlu0 %2218
    %2220 = vrot.lane.b32.xlu0 %v953, 32
    %v2221 = vpop.permute.xlu0 %2220
    %2222 = vrot.lane.b32.xlu0 %v955, 32
    %v2223 = vpop.permute.xlu0 %2222
    %2224 = vrot.lane.b32.xlu0 %v958, 32
    %v2225 = vpop.permute.xlu0 %2224
    %2226 = vrot.lane.b32.xlu0 %v960, 32
    %v2227 = vpop.permute.xlu0 %2226
    %2228 = vrot.lane.b32.xlu0 %v1549, 32
    %v2229 = vpop.permute.xlu0 %2228
    %2230 = vrot.lane.b32.xlu0 %v1551, 32
    %v2231 = vpop.permute.xlu0 %2230
    %vm2293 = vcmask 31744
    %v2294 = vsel %vm2293, 0.0, %v626
    %v2295 = vsel %vm2293, %v347, %v628
    %v2296 = vsel %vm2293, %v159, %v630
    %v2297 = vsel %vm2293, %v348, %v632
    %v2298 = vsel %vm2293, %v162, %v634
    %v2299 = vsel %vm2293, %v349, %v636
    %v2300 = vsel %vm2293, %v165, %v638
    %v2301 = vsel %vm2293, %v350, %v640
    %v2302 = vsel %vm2293, %v168, %v642
    %v2303 = vsel %vm2293, %v351, %v644
    %v2304 = vsel %vm2293, %v171, %v646
    %v2305 = vsel %vm2293, %v352, %v648
    %v2306 = vsel %vm2293, %v174, %v650
    %v2307 = vsel %vm2293, %v353, %v652
    %v2308 = vsel %vm2293, %v177, %v654
    %v2309 = vsel %vm2293, %v354, %v656
    %v2310 = vsel %vm2293, %v180, %v658
    %v2311 = vsel %vm2293, %v355, %v660
    %v2312 = vsel %vm2293, %v183, %v662
    %v2313 = vsel %vm2293, %v356, %v664
    %v2314 = vsel %vm2293, %v186, %v666
    %v2315 = vsel %vm2293, %v357, %v668
    %v2316 = vsel %vm2293, %v189, %v670
    %v2317 = vsel %vm2293, %v358, %v672
    %v2318 = vsel %vm2293, %v192, %v674
    %v2319 = vsel %vm2293, %v359, %v676
    %v2320 = vsel %vm2293, %v195, %v678
    %v2321 = vsel %vm2293, %v360, %v680
    %v2322 = vsel %vm2293, %v198, %v682
    %v2323 = vsel %vm2293, %v361, %v684
    %v2324 = vsel %vm2293, %v201, %v686
    %v2325 = vsel %vm2293, %v363, %v688
    %v2326 = vsel %vm2293, %v207, %v690
    %v2327 = vsel %vm2293, %v364, %v692
    %v2328 = vsel %vm2293, %v210, %v694
    %v2329 = vsel %vm2293, %v365, %v696
    %v2330 = vsel %vm2293, %v213, %v698
    %v2331 = vsel %vm2293, %v366, %v700
    %v2332 = vsel %vm2293, %v216, %v702
    %v2333 = vsel %vm2293, %v367, %v704
    %v2334 = vsel %vm2293, %v219, %v706
    %v2335 = vsel %vm2293, %v368, %v708
    %v2336 = vsel %vm2293, %v222, %v710
    %v2337 = vsel %vm2293, %v369, %v712
    %v2338 = vsel %vm2293, %v225, %v714
    %v2339 = vsel %vm2293, %v370, %v716
    %v2340 = vsel %vm2293, %v228, %v718
    %v2341 = vsel %vm2293, %v371, %v720
    %v2342 = vsel %vm2293, %v231, %v722
    %v2343 = vsel %vm2293, %v372, %v724
    %v2344 = vsel %vm2293, %v234, %v726
    %v2345 = vsel %vm2293, %v373, %v728
    %v2346 = vsel %vm2293, %v237, %v730
    %v2347 = vsel %vm2293, %v374, %v732
    %v2348 = vsel %vm2293, %v240, %v734
    %v2349 = vsel %vm2293, %v375, %v736
    %v2350 = vsel %vm2293, %v243, %v738
    %v2351 = vsel %vm2293, %v376, %v740
    %v2352 = vsel %vm2293, %v246, %v742
    %v2353 = vsel %vm2293, %v377, %v744
    %v2354 = vsel %vm2293, %v249, %v746
    %vm2355 = vcmask 64512
    %v2356 = vsel %vm2355, %v2294, %v962
    %v2357 = vsel %vm2355, %v2295, %v964
    %v2358 = vsel %vm2355, %v2296, %v966
    %v2359 = vsel %vm2355, %v2297, %v968
    %v2360 = vsel %vm2355, %v2298, %v970
    %v2361 = vsel %vm2355, %v2299, %v972
    %v2362 = vsel %vm2355, %v2300, %v974
    %v2363 = vsel %vm2355, %v2301, %v976
    %v2364 = vsel %vm2355, %v2302, %v978
    %v2365 = vsel %vm2355, %v2303, %v980
    %v2366 = vsel %vm2355, %v2304, %v982
    %v2367 = vsel %vm2355, %v2305, %v984
    %v2368 = vsel %vm2355, %v2306, %v986
    %v2369 = vsel %vm2355, %v2307, %v988
    %v2370 = vsel %vm2355, %v2308, %v990
    %v2371 = vsel %vm2355, %v2309, %v992
    %v2372 = vsel %vm2355, %v2310, %v994
    %v2373 = vsel %vm2355, %v2311, %v996
    %v2374 = vsel %vm2355, %v2312, %v998
    %v2375 = vsel %vm2355, %v2313, %v1000
    %v2376 = vsel %vm2355, %v2314, %v1002
    %v2377 = vsel %vm2355, %v2315, %v1004
    %v2378 = vsel %vm2355, %v2316, %v1006
    %v2379 = vsel %vm2355, %v2317, %v1008
    %v2380 = vsel %vm2355, %v2318, %v1010
    %v2381 = vsel %vm2355, %v2319, %v1012
    %v2382 = vsel %vm2355, %v2320, %v1014
    %v2383 = vsel %vm2355, %v2321, %v1016
    %v2384 = vsel %vm2355, %v2322, %v1018
    %v2385 = vsel %vm2355, %v2323, %v1020
    %v2386 = vsel %vm2355, %v2324, %v1022
    %v2387 = vsel %vm2355, %v2325, %v1024
    %v2388 = vsel %vm2355, %v2326, %v1026
    %v2389 = vsel %vm2355, %v2327, %v1028
    %v2390 = vsel %vm2355, %v2328, %v1030
    %v2391 = vsel %vm2355, %v2329, %v1032
    %v2392 = vsel %vm2355, %v2330, %v1034
    %v2393 = vsel %vm2355, %v2331, %v1036
    %v2394 = vsel %vm2355, %v2332, %v1038
    %v2395 = vsel %vm2355, %v2333, %v1040
    %v2396 = vsel %vm2355, %v2334, %v1042
    %v2397 = vsel %vm2355, %v2335, %v1044
    %v2398 = vsel %vm2355, %v2336, %v1046
    %v2399 = vsel %vm2355, %v2337, %v1048
    %v2400 = vsel %vm2355, %v2338, %v1050
    %v2401 = vsel %vm2355, %v2339, %v1052
    %v2402 = vsel %vm2355, %v2340, %v1054
    %v2403 = vsel %vm2355, %v2341, %v1056
    %v2404 = vsel %vm2355, %v2342, %v1058
    %v2405 = vsel %vm2355, %v2343, %v1060
    %v2406 = vsel %vm2355, %v2344, %v1062
    %v2407 = vsel %vm2355, %v2345, %v1064
    %v2408 = vsel %vm2355, %v2346, %v1066
    %v2409 = vsel %vm2355, %v2347, %v1068
    %v2410 = vsel %vm2355, %v2348, %v1070
    %v2411 = vsel %vm2355, %v2349, %v1072
    %v2412 = vsel %vm2355, %v2350, %v1074
    %v2413 = vsel %vm2355, %v2351, %v1076
    %v2414 = vsel %vm2355, %v2352, %v1078
    %v2415 = vsel %vm2355, %v2353, %v1080
    %v2416 = vsel %vm2355, %v2354, %v1082
    %vm2417 = vcmask 97280
    %v2418 = vsel %vm2417, %v2356, %v1147
    %v2419 = vsel %vm2417, %v2356, %v1149
    %v2420 = vsel %vm2417, %v2357, %v1151
    %v2421 = vsel %vm2417, %v2358, %v1153
    %v2422 = vsel %vm2417, %v2359, %v1155
    %v2423 = vsel %vm2417, %v2360, %v1157
    %v2424 = vsel %vm2417, %v2361, %v1159
    %v2425 = vsel %vm2417, %v2362, %v1161
    %v2426 = vsel %vm2417, %v2363, %v1163
    %v2427 = vsel %vm2417, %v2364, %v1165
    %v2428 = vsel %vm2417, %v2365, %v1167
    %v2429 = vsel %vm2417, %v2366, %v1169
    %v2430 = vsel %vm2417, %v2367, %v1171
    %v2431 = vsel %vm2417, %v2368, %v1173
    %v2432 = vsel %vm2417, %v2369, %v1175
    %v2433 = vsel %vm2417, %v2370, %v1177
    %v2434 = vsel %vm2417, %v2371, %v1179
    %v2435 = vsel %vm2417, %v2372, %v1181
    %v2436 = vsel %vm2417, %v2373, %v1183
    %v2437 = vsel %vm2417, %v2374, %v1185
    %v2438 = vsel %vm2417, %v2375, %v1187
    %v2439 = vsel %vm2417, %v2376, %v1189
    %v2440 = vsel %vm2417, %v2377, %v1191
    %v2441 = vsel %vm2417, %v2378, %v1193
    %v2442 = vsel %vm2417, %v2379, %v1195
    %v2443 = vsel %vm2417, %v2380, %v1197
    %v2444 = vsel %vm2417, %v2381, %v1199
    %v2445 = vsel %vm2417, %v2382, %v1201
    %v2446 = vsel %vm2417, %v2383, %v1203
    %v2447 = vsel %vm2417, %v2384, %v1205
    %v2448 = vsel %vm2417, %v2385, %v1207
    %v2449 = vsel %vm2417, %v2386, %v1209
    %v2450 = vsel %vm2417, %v2356, %v1211
    %v2451 = vsel %vm2417, %v2356, %v1213
    %v2452 = vsel %vm2417, %v2387, %v1215
    %v2453 = vsel %vm2417, %v2388, %v1217
    %v2454 = vsel %vm2417, %v2389, %v1219
    %v2455 = vsel %vm2417, %v2390, %v1221
    %v2456 = vsel %vm2417, %v2391, %v1223
    %v2457 = vsel %vm2417, %v2392, %v1225
    %v2458 = vsel %vm2417, %v2393, %v1227
    %v2459 = vsel %vm2417, %v2394, %v1229
    %v2460 = vsel %vm2417, %v2395, %v1231
    %v2461 = vsel %vm2417, %v2396, %v1233
    %v2462 = vsel %vm2417, %v2397, %v1235
    %v2463 = vsel %vm2417, %v2398, %v1237
    %v2464 = vsel %vm2417, %v2399, %v1239
    %v2465 = vsel %vm2417, %v2400, %v1241
    %v2466 = vsel %vm2417, %v2401, %v1243
    %v2467 = vsel %vm2417, %v2402, %v1245
    %v2468 = vsel %vm2417, %v2403, %v1247
    %v2469 = vsel %vm2417, %v2404, %v1249
    %v2470 = vsel %vm2417, %v2405, %v1251
    %v2471 = vsel %vm2417, %v2406, %v1253
    %v2472 = vsel %vm2417, %v2407, %v1255
    %v2473 = vsel %vm2417, %v2408, %v1257
    %v2474 = vsel %vm2417, %v2409, %v1259
    %v2475 = vsel %vm2417, %v2410, %v1261
    %v2476 = vsel %vm2417, %v2411, %v1263
    %v2477 = vsel %vm2417, %v2412, %v1265
    %v2478 = vsel %vm2417, %v2413, %v1267
    %v2479 = vsel %vm2417, %v2414, %v1269
    %v2480 = vsel %vm2417, %v2415, %v1271
    %v2481 = vsel %vm2417, %v2416, %v1273
    %vm2482 = vcmask 130048
    %v2483 = vsel %vm2482, %v2418, %v1351
    %v2484 = vsel %vm2482, %v2419, %v1353
    %v2485 = vsel %vm2482, %v2420, %v1355
    %v2486 = vsel %vm2482, %v2421, %v1357
    %v2487 = vsel %vm2482, %v2422, %v1359
    %v2488 = vsel %vm2482, %v2423, %v1361
    %v2489 = vsel %vm2482, %v2424, %v1363
    %v2490 = vsel %vm2482, %v2425, %v1365
    %v2491 = vsel %vm2482, %v2426, %v1367
    %v2492 = vsel %vm2482, %v2427, %v1369
    %v2493 = vsel %vm2482, %v2428, %v1371
    %v2494 = vsel %vm2482, %v2429, %v1373
    %v2495 = vsel %vm2482, %v2430, %v1375
    %v2496 = vsel %vm2482, %v2431, %v1377
    %v2497 = vsel %vm2482, %v2432, %v1379
    %v2498 = vsel %vm2482, %v2433, %v1381
    %v2499 = vsel %vm2482, %v2434, %v1383
    %v2500 = vsel %vm2482, %v2435, %v1385
    %v2501 = vsel %vm2482, %v2436, %v1387
    %v2502 = vsel %vm2482, %v2437, %v1389
    %v2503 = vsel %vm2482, %v2438, %v1391
    %v2504 = vsel %vm2482, %v2439, %v1393
    %v2505 = vsel %vm2482, %v2440, %v1395
    %v2506 = vsel %vm2482, %v2441, %v1397
    %v2507 = vsel %vm2482, %v2442, %v1399
    %v2508 = vsel %vm2482, %v2443, %v1401
    %v2509 = vsel %vm2482, %v2444, %v1403
    %v2510 = vsel %vm2482, %v2445, %v1405
    %v2511 = vsel %vm2482, %v2446, %v1407
    %v2512 = vsel %vm2482, %v2447, %v1409
    %v2513 = vsel %vm2482, %v2448, %v1411
    %v2514 = vsel %vm2482, %v2449, %v1413
    %v2515 = vsel %vm2482, %v2450, %v1415
    %v2516 = vsel %vm2482, %v2451, %v1417
    %v2517 = vsel %vm2482, %v2452, %v1419
    %v2518 = vsel %vm2482, %v2453, %v1421
    %v2519 = vsel %vm2482, %v2454, %v1423
    %v2520 = vsel %vm2482, %v2455, %v1425
    %v2521 = vsel %vm2482, %v2456, %v1427
    %v2522 = vsel %vm2482, %v2457, %v1429
    %v2523 = vsel %vm2482, %v2458, %v1431
    %v2524 = vsel %vm2482, %v2459, %v1433
    %v2525 = vsel %vm2482, %v2460, %v1435
    %v2526 = vsel %vm2482, %v2461, %v1437
    %v2527 = vsel %vm2482, %v2462, %v1439
    %v2528 = vsel %vm2482, %v2463, %v1441
    %v2529 = vsel %vm2482, %v2464, %v1443
    %v2530 = vsel %vm2482, %v2465, %v1445
    %v2531 = vsel %vm2482, %v2466, %v1447
    %v2532 = vsel %vm2482, %v2467, %v1449
    %v2533 = vsel %vm2482, %v2468, %v1451
    %v2534 = vsel %vm2482, %v2469, %v1453
    %v2535 = vsel %vm2482, %v2470, %v1455
    %v2536 = vsel %vm2482, %v2471, %v1457
    %v2537 = vsel %vm2482, %v2472, %v1459
    %v2538 = vsel %vm2482, %v2473, %v1461
    %v2539 = vsel %vm2482, %v2474, %v1463
    %v2540 = vsel %vm2482, %v2475, %v1465
    %v2541 = vsel %vm2482, %v2476, %v1467
    %v2542 = vsel %vm2482, %v2477, %v1469
    %v2543 = vsel %vm2482, %v2478, %v1471
    %v2544 = vsel %vm2482, %v2479, %v1473
    %v2545 = vsel %vm2482, %v2480, %v1475
    %v2546 = vsel %vm2482, %v2481, %v1477
    %vm2547 = vcmask 162816
    %v2548 = vsel %vm2547, %v2483, %v1553
    %v2549 = vsel %vm2547, %v2484, %v1555
    %v2550 = vsel %vm2547, %v2485, %v1557
    %v2551 = vsel %vm2547, %v2486, %v1559
    %v2552 = vsel %vm2547, %v2487, %v1561
    %v2553 = vsel %vm2547, %v2488, %v1563
    %v2554 = vsel %vm2547, %v2489, %v1565
    %v2555 = vsel %vm2547, %v2490, %v1567
    %v2556 = vsel %vm2547, %v2491, %v1569
    %v2557 = vsel %vm2547, %v2492, %v1571
    %v2558 = vsel %vm2547, %v2493, %v1573
    %v2559 = vsel %vm2547, %v2494, %v1575
    %v2560 = vsel %vm2547, %v2495, %v1577
    %v2561 = vsel %vm2547, %v2496, %v1579
    %v2562 = vsel %vm2547, %v2497, %v1581
    %v2563 = vsel %vm2547, %v2498, %v1583
    %v2564 = vsel %vm2547, %v2499, %v1585
    %v2565 = vsel %vm2547, %v2500, %v1587
    %v2566 = vsel %vm2547, %v2501, %v1589
    %v2567 = vsel %vm2547, %v2502, %v1591
    %v2568 = vsel %vm2547, %v2503, %v1593
    %v2569 = vsel %vm2547, %v2504, %v1595
    %v2570 = vsel %vm2547, %v2505, %v1597
    %v2571 = vsel %vm2547, %v2506, %v1599
    %v2572 = vsel %vm2547, %v2507, %v1601
    %v2573 = vsel %vm2547, %v2508, %v1603
    %v2574 = vsel %vm2547, %v2509, %v1605
    %v2575 = vsel %vm2547, %v2510, %v1607
    %v2576 = vsel %vm2547, %v2511, %v1609
    %v2577 = vsel %vm2547, %v2512, %v1611
    %v2578 = vsel %vm2547, %v2513, %v1613
    %v2579 = vsel %vm2547, %v2514, %v1615
    %v2580 = vsel %vm2547, %v2515, %v1617
    %v2581 = vsel %vm2547, %v2516, %v1619
    %v2582 = vsel %vm2547, %v2517, %v1621
    %v2583 = vsel %vm2547, %v2518, %v1623
    %v2584 = vsel %vm2547, %v2519, %v1625
    %v2585 = vsel %vm2547, %v2520, %v1627
    %v2586 = vsel %vm2547, %v2521, %v1629
    %v2587 = vsel %vm2547, %v2522, %v1631
    %v2588 = vsel %vm2547, %v2523, %v1633
    %v2589 = vsel %vm2547, %v2524, %v1635
    %v2590 = vsel %vm2547, %v2525, %v1637
    %v2591 = vsel %vm2547, %v2526, %v1639
    %v2592 = vsel %vm2547, %v2527, %v1641
    %v2593 = vsel %vm2547, %v2528, %v1643
    %v2594 = vsel %vm2547, %v2529, %v1645
    %v2595 = vsel %vm2547, %v2530, %v1647
    %v2596 = vsel %vm2547, %v2531, %v1649
    %v2597 = vsel %vm2547, %v2532, %v1651
    %v2598 = vsel %vm2547, %v2533, %v1653
    %v2599 = vsel %vm2547, %v2534, %v1655
    %v2600 = vsel %vm2547, %v2535, %v1657
    %v2601 = vsel %vm2547, %v2536, %v1659
    %v2602 = vsel %vm2547, %v2537, %v1661
    %v2603 = vsel %vm2547, %v2538, %v1663
    %v2604 = vsel %vm2547, %v2539, %v1665
    %v2605 = vsel %vm2547, %v2540, %v1667
    %v2606 = vsel %vm2547, %v2541, %v1669
    %v2607 = vsel %vm2547, %v2542, %v1671
    %v2608 = vsel %vm2547, %v2543, %v1673
    %v2609 = vsel %vm2547, %v2544, %v1675
    %v2610 = vsel %vm2547, %v2545, %v1677
    %v2611 = vsel %vm2547, %v2546, %v1679
    %vm2612 = vcmask 195584
    %v2613 = vsel %vm2612, %v2548, %v1745
    %v2614 = vsel %vm2612, %v2549, %v1747
    %v2615 = vsel %vm2612, %v2550, %v1749
    %v2616 = vsel %vm2612, %v2551, %v1751
    %v2617 = vsel %vm2612, %v2552, %v1753
    %v2618 = vsel %vm2612, %v2553, %v1755
    %v2619 = vsel %vm2612, %v2554, %v1757
    %v2620 = vsel %vm2612, %v2555, %v1759
    %v2621 = vsel %vm2612, %v2556, %v1761
    %v2622 = vsel %vm2612, %v2557, %v1763
    %v2623 = vsel %vm2612, %v2558, %v1765
    %v2624 = vsel %vm2612, %v2559, %v1767
    %v2625 = vsel %vm2612, %v2560, %v1769
    %v2626 = vsel %vm2612, %v2561, %v1771
    %v2627 = vsel %vm2612, %v2562, %v1773
    %v2628 = vsel %vm2612, %v2563, %v1775
    %v2629 = vsel %vm2612, %v2564, %v1777
    %v2630 = vsel %vm2612, %v2565, %v1779
    %v2631 = vsel %vm2612, %v2566, %v1781
    %v2632 = vsel %vm2612, %v2567, %v1783
    %v2633 = vsel %vm2612, %v2568, %v1785
    %v2634 = vsel %vm2612, %v2569, %v1787
    %v2635 = vsel %vm2612, %v2570, %v1789
    %v2636 = vsel %vm2612, %v2571, %v1791
    %v2637 = vsel %vm2612, %v2572, %v1793
    %v2638 = vsel %vm2612, %v2573, %v1795
    %v2639 = vsel %vm2612, %v2574, %v1797
    %v2640 = vsel %vm2612, %v2575, %v1799
    %v2641 = vsel %vm2612, %v2576, %v1801
    %v2642 = vsel %vm2612, %v2577, %v1803
    %v2643 = vsel %vm2612, %v2578, %v1805
    %v2644 = vsel %vm2612, %v2579, %v1805
    %v2645 = vsel %vm2612, %v2580, %v1807
    %v2646 = vsel %vm2612, %v2581, %v1809
    %v2647 = vsel %vm2612, %v2582, %v1811
    %v2648 = vsel %vm2612, %v2583, %v1813
    %v2649 = vsel %vm2612, %v2584, %v1815
    %v2650 = vsel %vm2612, %v2585, %v1817
    %v2651 = vsel %vm2612, %v2586, %v1819
    %v2652 = vsel %vm2612, %v2587, %v1821
    %v2653 = vsel %vm2612, %v2588, %v1823
    %v2654 = vsel %vm2612, %v2589, %v1825
    %v2655 = vsel %vm2612, %v2590, %v1827
    %v2656 = vsel %vm2612, %v2591, %v1829
    %v2657 = vsel %vm2612, %v2592, %v1831
    %v2658 = vsel %vm2612, %v2593, %v1833
    %v2659 = vsel %vm2612, %v2594, %v1835
    %v2660 = vsel %vm2612, %v2595, %v1837
    %v2661 = vsel %vm2612, %v2596, %v1839
    %v2662 = vsel %vm2612, %v2597, %v1841
    %v2663 = vsel %vm2612, %v2598, %v1843
    %v2664 = vsel %vm2612, %v2599, %v1845
    %v2665 = vsel %vm2612, %v2600, %v1847
    %v2666 = vsel %vm2612, %v2601, %v1849
    %v2667 = vsel %vm2612, %v2602, %v1851
    %v2668 = vsel %vm2612, %v2603, %v1853
    %v2669 = vsel %vm2612, %v2604, %v1855
    %v2670 = vsel %vm2612, %v2605, %v1857
    %v2671 = vsel %vm2612, %v2606, %v1859
    %v2672 = vsel %vm2612, %v2607, %v1861
    %v2673 = vsel %vm2612, %v2608, %v1863
    %v2674 = vsel %vm2612, %v2609, %v1865
    %v2675 = vsel %vm2612, %v2610, %v1805
    %v2676 = vsel %vm2612, %v2611, %v1805
    %vm2677 = vcmask 228352
    %v2678 = vsel %vm2677, %v2613, %v1928
    %v2679 = vsel %vm2677, %v2614, %v1930
    %v2680 = vsel %vm2677, %v2615, %v1932
    %v2681 = vsel %vm2677, %v2616, %v1934
    %v2682 = vsel %vm2677, %v2617, %v1936
    %v2683 = vsel %vm2677, %v2618, %v1938
    %v2684 = vsel %vm2677, %v2619, %v1940
    %v2685 = vsel %vm2677, %v2620, %v1942
    %v2686 = vsel %vm2677, %v2621, %v1944
    %v2687 = vsel %vm2677, %v2622, %v1946
    %v2688 = vsel %vm2677, %v2623, %v1948
    %v2689 = vsel %vm2677, %v2624, %v1950
    %v2690 = vsel %vm2677, %v2625, %v1952
    %v2691 = vsel %vm2677, %v2626, %v1954
    %v2692 = vsel %vm2677, %v2627, %v1956
    %v2693 = vsel %vm2677, %v2628, %v1958
    %v2694 = vsel %vm2677, %v2629, %v1960
    %v2695 = vsel %vm2677, %v2630, %v1962
    %v2696 = vsel %vm2677, %v2631, %v1964
    %v2697 = vsel %vm2677, %v2632, %v1966
    %v2698 = vsel %vm2677, %v2633, %v1968
    %v2699 = vsel %vm2677, %v2634, %v1970
    %v2700 = vsel %vm2677, %v2635, %v1972
    %v2701 = vsel %vm2677, %v2636, %v1974
    %v2702 = vsel %vm2677, %v2637, %v1976
    %v2703 = vsel %vm2677, %v2638, %v1978
    %v2704 = vsel %vm2677, %v2639, %v1980
    %v2705 = vsel %vm2677, %v2640, %v1982
    %v2706 = vsel %vm2677, %v2641, %v1984
    %v2707 = vsel %vm2677, %v2642, %v1986
    %v2708 = vsel %vm2677, %v2643, %v1988
    %v2709 = vsel %vm2677, %v2644, %v1988
    %v2710 = vsel %vm2677, %v2645, %v1990
    %v2711 = vsel %vm2677, %v2646, %v1992
    %v2712 = vsel %vm2677, %v2647, %v1994
    %v2713 = vsel %vm2677, %v2648, %v1996
    %v2714 = vsel %vm2677, %v2649, %v1998
    %v2715 = vsel %vm2677, %v2650, %v2000
    %v2716 = vsel %vm2677, %v2651, %v2002
    %v2717 = vsel %vm2677, %v2652, %v2004
    %v2718 = vsel %vm2677, %v2653, %v2006
    %v2719 = vsel %vm2677, %v2654, %v2008
    %v2720 = vsel %vm2677, %v2655, %v2010
    %v2721 = vsel %vm2677, %v2656, %v2012
    %v2722 = vsel %vm2677, %v2657, %v2014
    %v2723 = vsel %vm2677, %v2658, %v2016
    %v2724 = vsel %vm2677, %v2659, %v2018
    %v2725 = vsel %vm2677, %v2660, %v2020
    %v2726 = vsel %vm2677, %v2661, %v2022
    %v2727 = vsel %vm2677, %v2662, %v2024
    %v2728 = vsel %vm2677, %v2663, %v2026
    %v2729 = vsel %vm2677, %v2664, %v2028
    %v2730 = vsel %vm2677, %v2665, %v2030
    %v2731 = vsel %vm2677, %v2666, %v2032
    %v2732 = vsel %vm2677, %v2667, %v2034
    %v2733 = vsel %vm2677, %v2668, %v2036
    %v2734 = vsel %vm2677, %v2669, %v2038
    %v2735 = vsel %vm2677, %v2670, %v2040
    %v2736 = vsel %vm2677, %v2671, %v2042
    %v2737 = vsel %vm2677, %v2672, %v2044
    %v2738 = vsel %vm2677, %v2673, %v2046
    %v2739 = vsel %vm2677, %v2674, %v2048
    %v2740 = vsel %vm2677, %v2675, %v1988
    %v2741 = vsel %vm2677, %v2676, %v1988
    %vm2742 = vcmask 261120
    %v2743 = vsel %vm2742, %v2678, %v2111
    %v2744 = vsel %vm2742, %v2679, %v2113
    %v2745 = vsel %vm2742, %v2680, %v2115
    %v2746 = vsel %vm2742, %v2681, %v2117
    %v2747 = vsel %vm2742, %v2682, %v2119
    %v2748 = vsel %vm2742, %v2683, %v2121
    %v2749 = vsel %vm2742, %v2684, %v2123
    %v2750 = vsel %vm2742, %v2685, %v2125
    %v2751 = vsel %vm2742, %v2686, %v2127
    %v2752 = vsel %vm2742, %v2687, %v2129
    %v2753 = vsel %vm2742, %v2688, %v2131
    %v2754 = vsel %vm2742, %v2689, %v2133
    %v2755 = vsel %vm2742, %v2690, %v2135
    %v2756 = vsel %vm2742, %v2691, %v2137
    %v2757 = vsel %vm2742, %v2692, %v2139
    %v2758 = vsel %vm2742, %v2693, %v2141
    %v2759 = vsel %vm2742, %v2694, %v2143
    %v2760 = vsel %vm2742, %v2695, %v2145
    %v2761 = vsel %vm2742, %v2696, %v2147
    %v2762 = vsel %vm2742, %v2697, %v2149
    %v2763 = vsel %vm2742, %v2698, %v2151
    %v2764 = vsel %vm2742, %v2699, %v2153
    %v2765 = vsel %vm2742, %v2700, %v2155
    %v2766 = vsel %vm2742, %v2701, %v2157
    %v2767 = vsel %vm2742, %v2702, %v2159
    %v2768 = vsel %vm2742, %v2703, %v2161
    %v2769 = vsel %vm2742, %v2704, %v2163
    %v2770 = vsel %vm2742, %v2705, %v2165
    %v2771 = vsel %vm2742, %v2706, %v2167
    %v2772 = vsel %vm2742, %v2707, %v2169
    %v2773 = vsel %vm2742, %v2708, %v2171
    %v2774 = vsel %vm2742, %v2709, %v2171
    %v2775 = vsel %vm2742, %v2710, %v2173
    %v2776 = vsel %vm2742, %v2711, %v2175
    %v2777 = vsel %vm2742, %v2712, %v2177
    %v2778 = vsel %vm2742, %v2713, %v2179
    %v2779 = vsel %vm2742, %v2714, %v2181
    %v2780 = vsel %vm2742, %v2715, %v2183
    %v2781 = vsel %vm2742, %v2716, %v2185
    %v2782 = vsel %vm2742, %v2717, %v2187
    %v2783 = vsel %vm2742, %v2718, %v2189
    %v2784 = vsel %vm2742, %v2719, %v2191
    %v2785 = vsel %vm2742, %v2720, %v2193
    %v2786 = vsel %vm2742, %v2721, %v2195
    %v2787 = vsel %vm2742, %v2722, %v2197
    %v2788 = vsel %vm2742, %v2723, %v2199
    %v2789 = vsel %vm2742, %v2724, %v2201
    %v2790 = vsel %vm2742, %v2725, %v2203
    %v2791 = vsel %vm2742, %v2726, %v2205
    %v2792 = vsel %vm2742, %v2727, %v2207
    %v2793 = vsel %vm2742, %v2728, %v2209
    %v2794 = vsel %vm2742, %v2729, %v2211
    %v2795 = vsel %vm2742, %v2730, %v2213
    %v2796 = vsel %vm2742, %v2731, %v2215
    %v2797 = vsel %vm2742, %v2732, %v2217
    %v2798 = vsel %vm2742, %v2733, %v2219
    %v2799 = vsel %vm2742, %v2734, %v2221
    %v2800 = vsel %vm2742, %v2735, %v2223
    %v2801 = vsel %vm2742, %v2736, %v2225
    %v2802 = vsel %vm2742, %v2737, %v2227
    %v2803 = vsel %vm2742, %v2738, %v2229
    %v2804 = vsel %vm2742, %v2739, %v2231
    %v2805 = vsel %vm2742, %v2740, %v2171
    %v2806 = vsel %vm2742, %v2741, %v2171
    %vm2807 = vcmask 293888
    %v2808 = vsel %vm2807, %v2743, 0.0
    %v2809 = vsel %vm2807, %v2744, 0.0
    %v2810 = vsel %vm2807, %v2745, 0.0
    %v2811 = vsel %vm2807, %v2746, 0.0
    %v2812 = vsel %vm2807, %v2747, 0.0
    %v2813 = vsel %vm2807, %v2748, 0.0
    %v2814 = vsel %vm2807, %v2749, 0.0
    %v2815 = vsel %vm2807, %v2750, 0.0
    %v2816 = vsel %vm2807, %v2751, 0.0
    %v2817 = vsel %vm2807, %v2752, 0.0
    %v2818 = vsel %vm2807, %v2753, 0.0
    %v2819 = vsel %vm2807, %v2754, 0.0
    %v2820 = vsel %vm2807, %v2755, 0.0
    %v2821 = vsel %vm2807, %v2756, 0.0
    %v2822 = vsel %vm2807, %v2757, 0.0
    %v2823 = vsel %vm2807, %v2758, 0.0
    %v2824 = vsel %vm2807, %v2759, 0.0
    %v2825 = vsel %vm2807, %v2760, 0.0
    %v2826 = vsel %vm2807, %v2761, 0.0
    %v2827 = vsel %vm2807, %v2762, 0.0
    %v2828 = vsel %vm2807, %v2763, 0.0
    %v2829 = vsel %vm2807, %v2764, 0.0
    %v2830 = vsel %vm2807, %v2765, 0.0
    %v2831 = vsel %vm2807, %v2766, 0.0
    %v2832 = vsel %vm2807, %v2767, 0.0
    %v2833 = vsel %vm2807, %v2768, 0.0
    %v2834 = vsel %vm2807, %v2769, 0.0
    %v2835 = vsel %vm2807, %v2770, 0.0
    %v2836 = vsel %vm2807, %v2771, 0.0
    %v2837 = vsel %vm2807, %v2772, 0.0
    %v2838 = vsel %vm2807, %v2773, 0.0
    %v2839 = vsel %vm2807, %v2774, 0.0
    %v2840 = vsel %vm2807, %v2775, 0.0
    %v2841 = vsel %vm2807, %v2776, 0.0
    %v2842 = vsel %vm2807, %v2777, 0.0
    %v2843 = vsel %vm2807, %v2778, 0.0
    %v2844 = vsel %vm2807, %v2779, 0.0
    %v2845 = vsel %vm2807, %v2780, 0.0
    %v2846 = vsel %vm2807, %v2781, 0.0
    %v2847 = vsel %vm2807, %v2782, 0.0
    %v2848 = vsel %vm2807, %v2783, 0.0
    %v2849 = vsel %vm2807, %v2784, 0.0
    %v2850 = vsel %vm2807, %v2785, 0.0
    %v2851 = vsel %vm2807, %v2786, 0.0
    %v2852 = vsel %vm2807, %v2787, 0.0
    %v2853 = vsel %vm2807, %v2788, 0.0
    %v2854 = vsel %vm2807, %v2789, 0.0
    %v2855 = vsel %vm2807, %v2790, 0.0
    %v2856 = vsel %vm2807, %v2791, 0.0
    %v2857 = vsel %vm2807, %v2792, 0.0
    %v2858 = vsel %vm2807, %v2793, 0.0
    %v2859 = vsel %vm2807, %v2794, 0.0
    %v2860 = vsel %vm2807, %v2795, 0.0
    %v2861 = vsel %vm2807, %v2796, 0.0
    %v2862 = vsel %vm2807, %v2797, 0.0
    %v2863 = vsel %vm2807, %v2798, 0.0
    %v2864 = vsel %vm2807, %v2799, 0.0
    %v2865 = vsel %vm2807, %v2800, 0.0
    %v2866 = vsel %vm2807, %v2801, 0.0
    %v2867 = vsel %vm2807, %v2802, 0.0
    %v2868 = vsel %vm2807, %v2803, 0.0
    %v2869 = vsel %vm2807, %v2804, 0.0
    %v2870 = vsel %vm2807, %v2805, 0.0
    %v2871 = vsel %vm2807, %v2806, 0.0
    %v2872 = vpack.c.bf16 %v2809, %v2808
    %v2873 = vpack.c.bf16 %v2811, %v2810
    %v2874 = vpack.c.bf16 %v2813, %v2812
    %v2875 = vpack.c.bf16 %v2815, %v2814
    %v2876 = vpack.c.bf16 %v2817, %v2816
    %v2877 = vpack.c.bf16 %v2819, %v2818
    %v2878 = vpack.c.bf16 %v2821, %v2820
    %v2879 = vpack.c.bf16 %v2823, %v2822
    %v2880 = vpack.c.bf16 %v2825, %v2824
    %v2881 = vpack.c.bf16 %v2827, %v2826
    %v2882 = vpack.c.bf16 %v2829, %v2828
    %v2883 = vpack.c.bf16 %v2831, %v2830
    %v2884 = vpack.c.bf16 %v2833, %v2832
    %v2885 = vpack.c.bf16 %v2835, %v2834
    %v2886 = vpack.c.bf16 %v2837, %v2836
    %v2887 = vpack.c.bf16 %v2839, %v2838
    %v2888 = vpack.c.bf16 %v2841, %v2840
    %v2889 = vpack.c.bf16 %v2843, %v2842
    %v2890 = vpack.c.bf16 %v2845, %v2844
    %v2891 = vpack.c.bf16 %v2847, %v2846
    %v2892 = vpack.c.bf16 %v2849, %v2848
    %v2893 = vpack.c.bf16 %v2851, %v2850
    %v2894 = vpack.c.bf16 %v2853, %v2852
    %v2895 = vpack.c.bf16 %v2855, %v2854
    %v2896 = vpack.c.bf16 %v2857, %v2856
    %v2897 = vpack.c.bf16 %v2859, %v2858
    %v2898 = vpack.c.bf16 %v2861, %v2860
    %v2899 = vpack.c.bf16 %v2863, %v2862
    %v2900 = vpack.c.bf16 %v2865, %v2864
    %v2901 = vpack.c.bf16 %v2867, %v2866
    %v2902 = vpack.c.bf16 %v2869, %v2868
    %v2903 = vpack.c.bf16 %v2871, %v2870
    %v2904 = vld [vmem:[%s1] sm:$0xf]
    %v2905 = vld [vmem:[%s1 + $0x4] sm:$0xf]
    %v2906 = vld [vmem:[%s1 + $0x8] sm:$0xf]
    %v2907 = vld [vmem:[%s1 + $0xc] sm:$0xf]
    %v2908 = vld [vmem:[%s1 + $0x10] sm:$0xf]
    %v2909 = vld [vmem:[%s1 + $0x14] sm:$0xf]
    %v2910 = vld [vmem:[%s1 + $0x18] sm:$0xf]
    %v2911 = vld [vmem:[%s1 + $0x1c] sm:$0xf]
    %v2912 = vld [vmem:[%s1 + $0x20] sm:$0xf]
    %v2913 = vld [vmem:[%s1 + $0x24] sm:$0xf]
    %v2914 = vld [vmem:[%s1 + $0x28] sm:$0xf]
    %v2915 = vld [vmem:[%s1 + $0x2c] sm:$0xf]
    %v2916 = vld [vmem:[%s1 + $0x30] sm:$0xf]
    %v2917 = vld [vmem:[%s1 + $0x34] sm:$0xf]
    %v2918 = vld [vmem:[%s1 + $0x38] sm:$0xf]
    %v2919 = vld [vmem:[%s1 + $0x3c] sm:$0xf]
    %v2936 = vunpack.c.l.b16 %v2904
    %v2937 = vunpack.c.l.b16 %v2905
    %v2938 = vunpack.c.l.b16 %v2906
    %v2939 = vunpack.c.l.b16 %v2907
    %v2940 = vunpack.c.l.b16 %v2908
    %v2941 = vunpack.c.l.b16 %v2909
    %v2942 = vunpack.c.l.b16 %v2910
    %v2943 = vunpack.c.l.b16 %v2911
    %v2944 = vunpack.c.l.b16 %v2912
    %v2945 = vunpack.c.l.b16 %v2913
    %v2946 = vunpack.c.l.b16 %v2914
    %v2947 = vunpack.c.l.b16 %v2915
    %v2948 = vunpack.c.l.b16 %v2916
    %v2949 = vunpack.c.l.b16 %v2917
    %v2950 = vunpack.c.l.b16 %v2918
    %v2951 = vunpack.c.l.b16 %v2919
    %v2952 = vpack.c.b16 %v2937, %v2936
    %v2953 = vpack.c.b16 %v2939, %v2938
    %v2954 = vpack.c.b16 %v2941, %v2940
    %v2955 = vpack.c.b16 %v2943, %v2942
    %v2956 = vpack.c.b16 %v2945, %v2944
    %v2957 = vpack.c.b16 %v2947, %v2946
    %v2958 = vpack.c.b16 %v2949, %v2948
    %v2959 = vpack.c.b16 %v2951, %v2950
    %2968 = vmatprep.subr.bf16.mxu0 0
    %2969 = vmatpush1.bf16.msra.mxu0 %v2952
    %2970 = vmatprep.subr.bf16.mxu0 0
    %2971 = vmatpush1.bf16.msra.mxu0 %v2953
    %2972 = vmatprep.subr.bf16.mxu0 0
    %2973 = vmatpush1.bf16.msra.mxu0 %v2954
    %2974 = vmatprep.subr.bf16.mxu0 0
    %2975 = vmatpush1.bf16.msra.mxu0 %v2955
    %2976 = vmatprep.subr.bf16.mxu0 0
    %2977 = vmatpush1.bf16.msra.mxu0 %v2956
    %2978 = vmatprep.subr.bf16.mxu0 0
    %2979 = vmatpush1.bf16.msra.mxu0 %v2957
    %2980 = vmatprep.subr.bf16.mxu0 0
    %2981 = vmatpush1.bf16.msra.mxu0 %v2958
    %2982 = vmatprep.subr.bf16.mxu0 0
    %2983 = vmatpush1.bf16.msra.mxu0 %v2959
    %2984 = vmatprep.subr.bf16.mxu0 0
    %2985 = vmatpush1.bf16.msra.mxu0 0
    %2986 = vmatprep.subr.bf16.mxu0 0
    %2987 = vmatpush1.bf16.msra.mxu0 0
    %2988 = vmatprep.subr.bf16.mxu0 0
    %2989 = vmatpush1.bf16.msra.mxu0 0
    %2990 = vmatprep.subr.bf16.mxu0 0
    %2991 = vmatpush1.bf16.msra.mxu0 0
    %2992 = vmatprep.subr.bf16.mxu0 0
    %2993 = vmatpush1.bf16.msra.mxu0 0
    %2994 = vmatprep.subr.bf16.mxu0 0
    %2995 = vmatpush1.bf16.msra.mxu0 0
    %2996 = vmatprep.subr.bf16.mxu0 0
    %2997 = vmatpush1.bf16.msra.mxu0 0
    %2998 = vmatprep.subr.bf16.mxu0 0
    %2999 = vmatpush1.bf16.msra.mxu0 0
    %3000 = vmatprep.mubr.bf16.mxu0 0
    %3001 = vmatmul.mubr.bf16.gmra.mrb[0].mxu0 %v2872
    %v3002 = vpop.f32.mrb[0].mxu0
    %v3003 = vadd.f32 0.0, %v3002
    %v3004 = vpop.f32.mrb[0].mxu0
    %v3005 = vpop.f32.mrb[0].mxu0
    %v3006 = vadd.f32 0.0, %v3005
    %v3007 = vpop.f32.mrb[0].mxu0
    %3008 = vmatprep.mubr.bf16.mxu0 0
    %3009 = vmatmul.mubr.bf16.gmra.mrb[0].mxu0 %v2873
    %v3010 = vpop.f32.mrb[0].mxu0
    %v3011 = vadd.f32 0.0, %v3010
    %v3012 = vpop.f32.mrb[0].mxu0
    %v3013 = vpop.f32.mrb[0].mxu0
    %v3014 = vadd.f32 0.0, %v3013
    %v3015 = vpop.f32.mrb[0].mxu0
    %3016 = vmatprep.mubr.bf16.mxu0 0
    %3017 = vmatmul.mubr.bf16.gmra.mrb[0].mxu0 %v2874
    %v3018 = vpop.f32.mrb[0].mxu0
    %v3019 = vadd.f32 0.0, %v3018
    %v3020 = vpop.f32.mrb[0].mxu0
    %v3021 = vpop.f32.mrb[0].mxu0
    %v3022 = vadd.f32 0.0, %v3021
    %v3023 = vpop.f32.mrb[0].mxu0
    %3024 = vmatprep.mubr.bf16.mxu0 0
    %3025 = vmatmul.mubr.bf16.gmra.mrb[0].mxu0 %v2875
    %v3026 = vpop.f32.mrb[0].mxu0
    %v3027 = vadd.f32 0.0, %v3026
    %v3028 = vpop.f32.mrb[0].mxu0
    %v3029 = vpop.f32.mrb[0].mxu0
    %v3030 = vadd.f32 0.0, %v3029
    %v3031 = vpop.f32.mrb[0].mxu0
    %3032 = vmatprep.mubr.bf16.mxu0 0
    %3033 = vmatmul.mubr.bf16.gmra.mrb[0].mxu0 %v2876
    %v3034 = vpop.f32.mrb[0].mxu0
    %v3035 = vadd.f32 0.0, %v3034
    %v3036 = vpop.f32.mrb[0].mxu0
    %v3037 = vpop.f32.mrb[0].mxu0
    %v3038 = vadd.f32 0.0, %v3037
    %v3039 = vpop.f32.mrb[0].mxu0
    %3040 = vmatprep.mubr.bf16.mxu0 0
    %3041 = vmatmul.mubr.bf16.gmra.mrb[0].mxu0 %v2877
    %v3042 = vpop.f32.mrb[0].mxu0
    %v3043 = vadd.f32 0.0, %v3042
    %v3044 = vpop.f32.mrb[0].mxu0
    %v3045 = vpop.f32.mrb[0].mxu0
    %v3046 = vadd.f32 0.0, %v3045
    %v3047 = vpop.f32.mrb[0].mxu0
    %3048 = vmatprep.mubr.bf16.mxu0 0
    %3049 = vmatmul.mubr.bf16.gmra.mrb[0].mxu0 %v2878
    %v3050 = vpop.f32.mrb[0].mxu0
    %v3051 = vadd.f32 0.0, %v3050
    %v3052 = vpop.f32.mrb[0].mxu0
    %v3053 = vpop.f32.mrb[0].mxu0
    %v3054 = vadd.f32 0.0, %v3053
    %v3055 = vpop.f32.mrb[0].mxu0
    %3056 = vmatprep.mubr.bf16.mxu0 0
    %3057 = vmatmul.mubr.bf16.gmra.mrb[0].mxu0 %v2879
    %v3058 = vpop.f32.mrb[0].mxu0
    %v3059 = vadd.f32 0.0, %v3058
    %v3060 = vpop.f32.mrb[0].mxu0
    %v3061 = vpop.f32.mrb[0].mxu0
    %v3062 = vadd.f32 0.0, %v3061
    %v3063 = vpop.f32.mrb[0].mxu0
    %3064 = vmatprep.mubr.bf16.mxu0 0
    %3065 = vmatmul.mubr.bf16.gmra.mrb[0].mxu0 %v2880
    %v3066 = vpop.f32.mrb[0].mxu0
    %v3067 = vadd.f32 0.0, %v3066
    %v3068 = vpop.f32.mrb[0].mxu0
    %v3069 = vpop.f32.mrb[0].mxu0
    %v3070 = vadd.f32 0.0, %v3069
    %v3071 = vpop.f32.mrb[0].mxu0
    %3072 = vmatprep.mubr.bf16.mxu0 0
    %3073 = vmatmul.mubr.bf16.gmra.mrb[0].mxu0 %v2881
    %v3074 = vpop.f32.mrb[0].mxu0
    %v3075 = vadd.f32 0.0, %v3074
    %v3076 = vpop.f32.mrb[0].mxu0
    %v3077 = vpop.f32.mrb[0].mxu0
    %v3078 = vadd.f32 0.0, %v3077
    %v3079 = vpop.f32.mrb[0].mxu0
    %3080 = vmatprep.mubr.bf16.mxu0 0
    %3081 = vmatmul.mubr.bf16.gmra.mrb[0].mxu0 %v2882
    %v3082 = vpop.f32.mrb[0].mxu0
    %v3083 = vadd.f32 0.0, %v3082
    %v3084 = vpop.f32.mrb[0].mxu0
    %v3085 = vpop.f32.mrb[0].mxu0
    %v3086 = vadd.f32 0.0, %v3085
    %v3087 = vpop.f32.mrb[0].mxu0
    %3088 = vmatprep.mubr.bf16.mxu0 0
    %3089 = vmatmul.mubr.bf16.gmra.mrb[0].mxu0 %v2883
    %v3090 = vpop.f32.mrb[0].mxu0
    %v3091 = vadd.f32 0.0, %v3090
    %v3092 = vpop.f32.mrb[0].mxu0
    %v3093 = vpop.f32.mrb[0].mxu0
    %v3094 = vadd.f32 0.0, %v3093
    %v3095 = vpop.f32.mrb[0].mxu0
    %3096 = vmatprep.mubr.bf16.mxu0 0
    %3097 = vmatmul.mubr.bf16.gmra.mrb[0].mxu0 %v2884
    %v3098 = vpop.f32.mrb[0].mxu0
    %v3099 = vadd.f32 0.0, %v3098
    %v3100 = vpop.f32.mrb[0].mxu0
    %v3101 = vpop.f32.mrb[0].mxu0
    %v3102 = vadd.f32 0.0, %v3101
    %v3103 = vpop.f32.mrb[0].mxu0
    %3104 = vmatprep.mubr.bf16.mxu0 0
    %3105 = vmatmul.mubr.bf16.gmra.mrb[0].mxu0 %v2885
    %v3106 = vpop.f32.mrb[0].mxu0
    %v3107 = vadd.f32 0.0, %v3106
    %v3108 = vpop.f32.mrb[0].mxu0
    %v3109 = vpop.f32.mrb[0].mxu0
    %v3110 = vadd.f32 0.0, %v3109
    %v3111 = vpop.f32.mrb[0].mxu0
    %3112 = vmatprep.mubr.bf16.mxu0 0
    %3113 = vmatmul.mubr.bf16.gmra.mrb[0].mxu0 %v2886
    %v3114 = vpop.f32.mrb[0].mxu0
    %v3115 = vadd.f32 0.0, %v3114
    %v3116 = vpop.f32.mrb[0].mxu0
    %v3117 = vpop.f32.mrb[0].mxu0
    %v3118 = vadd.f32 0.0, %v3117
    %v3119 = vpop.f32.mrb[0].mxu0
    %3120 = vmatprep.mubr.bf16.mxu0 0
    %3121 = vmatmul.mubr.bf16.gmra.mrb[0].mxu0 %v2887
    %v3122 = vpop.f32.mrb[0].mxu0
    %v3123 = vadd.f32 0.0, %v3122
    %v3124 = vpop.f32.mrb[0].mxu0
    %v3125 = vpop.f32.mrb[0].mxu0
    %v3126 = vadd.f32 0.0, %v3125
    %v3127 = vpop.f32.mrb[0].mxu0
    %3128 = vmatprep.mubr.bf16.mxu0 0
    %3129 = vmatmul.mubr.bf16.gmra.mrb[0].mxu0 %v2888
    %v3130 = vpop.f32.mrb[0].mxu0
    %v3131 = vadd.f32 0.0, %v3130
    %v3132 = vpop.f32.mrb[0].mxu0
    %v3133 = vpop.f32.mrb[0].mxu0
    %v3134 = vadd.f32 0.0, %v3133
    %v3135 = vpop.f32.mrb[0].mxu0
    %3136 = vmatprep.mubr.bf16.mxu0 0
    %3137 = vmatmul.mubr.bf16.gmra.mrb[0].mxu0 %v2889
    %v3138 = vpop.f32.mrb[0].mxu0
    %v3139 = vadd.f32 0.0, %v3138
    %v3140 = vpop.f32.mrb[0].mxu0
    %v3141 = vpop.f32.mrb[0].mxu0
    %v3142 = vadd.f32 0.0, %v3141
    %v3143 = vpop.f32.mrb[0].mxu0
    %3144 = vmatprep.mubr.bf16.mxu0 0
    %3145 = vmatmul.mubr.bf16.gmra.mrb[0].mxu0 %v2890
    %v3146 = vpop.f32.mrb[0].mxu0
    %v3147 = vadd.f32 0.0, %v3146
    %v3148 = vpop.f32.mrb[0].mxu0
    %v3149 = vpop.f32.mrb[0].mxu0
    %v3150 = vadd.f32 0.0, %v3149
    %v3151 = vpop.f32.mrb[0].mxu0
    %3152 = vmatprep.mubr.bf16.mxu0 0
    %3153 = vmatmul.mubr.bf16.gmra.mrb[0].mxu0 %v2891
    %v3154 = vpop.f32.mrb[0].mxu0
    %v3155 = vadd.f32 0.0, %v3154
    %v3156 = vpop.f32.mrb[0].mxu0
    %v3157 = vpop.f32.mrb[0].mxu0
    %v3158 = vadd.f32 0.0, %v3157
    %v3159 = vpop.f32.mrb[0].mxu0
    %3160 = vmatprep.mubr.bf16.mxu0 0
    %3161 = vmatmul.mubr.bf16.gmra.mrb[0].mxu0 %v2892
    %v3162 = vpop.f32.mrb[0].mxu0
    %v3163 = vadd.f32 0.0, %v3162
    %v3164 = vpop.f32.mrb[0].mxu0
    %v3165 = vpop.f32.mrb[0].mxu0
    %v3166 = vadd.f32 0.0, %v3165
    %v3167 = vpop.f32.mrb[0].mxu0
    %3168 = vmatprep.mubr.bf16.mxu0 0
    %3169 = vmatmul.mubr.bf16.gmra.mrb[0].mxu0 %v2893
    %v3170 = vpop.f32.mrb[0].mxu0
    %v3171 = vadd.f32 0.0, %v3170
    %v3172 = vpop.f32.mrb[0].mxu0
    %v3173 = vpop.f32.mrb[0].mxu0
    %v3174 = vadd.f32 0.0, %v3173
    %v3175 = vpop.f32.mrb[0].mxu0
    %3176 = vmatprep.mubr.bf16.mxu0 0
    %3177 = vmatmul.mubr.bf16.gmra.mrb[0].mxu0 %v2894
    %v3178 = vpop.f32.mrb[0].mxu0
    %v3179 = vadd.f32 0.0, %v3178
    %v3180 = vpop.f32.mrb[0].mxu0
    %v3181 = vpop.f32.mrb[0].mxu0
    %v3182 = vadd.f32 0.0, %v3181
    %v3183 = vpop.f32.mrb[0].mxu0
    %3184 = vmatprep.mubr.bf16.mxu0 0
    %3185 = vmatmul.mubr.bf16.gmra.mrb[0].mxu0 %v2895
    %v3186 = vpop.f32.mrb[0].mxu0
    %v3187 = vadd.f32 0.0, %v3186
    %v3188 = vpop.f32.mrb[0].mxu0
    %v3189 = vpop.f32.mrb[0].mxu0
    %v3190 = vadd.f32 0.0, %v3189
    %v3191 = vpop.f32.mrb[0].mxu0
    %3192 = vmatprep.mubr.bf16.mxu0 0
    %3193 = vmatmul.mubr.bf16.gmra.mrb[0].mxu0 %v2896
    %v3194 = vpop.f32.mrb[0].mxu0
    %v3195 = vadd.f32 0.0, %v3194
    %v3196 = vpop.f32.mrb[0].mxu0
    %v3197 = vpop.f32.mrb[0].mxu0
    %v3198 = vadd.f32 0.0, %v3197
    %v3199 = vpop.f32.mrb[0].mxu0
    %3200 = vmatprep.mubr.bf16.mxu0 0
    %3201 = vmatmul.mubr.bf16.gmra.mrb[0].mxu0 %v2897
    %v3202 = vpop.f32.mrb[0].mxu0
    %v3203 = vadd.f32 0.0, %v3202
    %v3204 = vpop.f32.mrb[0].mxu0
    %v3205 = vpop.f32.mrb[0].mxu0
    %v3206 = vadd.f32 0.0, %v3205
    %v3207 = vpop.f32.mrb[0].mxu0
    %3208 = vmatprep.mubr.bf16.mxu0 0
    %3209 = vmatmul.mubr.bf16.gmra.mrb[0].mxu0 %v2898
    %v3210 = vpop.f32.mrb[0].mxu0
    %v3211 = vadd.f32 0.0, %v3210
    %v3212 = vpop.f32.mrb[0].mxu0
    %v3213 = vpop.f32.mrb[0].mxu0
    %v3214 = vadd.f32 0.0, %v3213
    %v3215 = vpop.f32.mrb[0].mxu0
    %3216 = vmatprep.mubr.bf16.mxu0 0
    %3217 = vmatmul.mubr.bf16.gmra.mrb[0].mxu0 %v2899
    %v3218 = vpop.f32.mrb[0].mxu0
    %v3219 = vadd.f32 0.0, %v3218
    %v3220 = vpop.f32.mrb[0].mxu0
    %v3221 = vpop.f32.mrb[0].mxu0
    %v3222 = vadd.f32 0.0, %v3221
    %v3223 = vpop.f32.mrb[0].mxu0
    %3224 = vmatprep.mubr.bf16.mxu0 0
    %3225 = vmatmul.mubr.bf16.gmra.mrb[0].mxu0 %v2900
    %v3226 = vpop.f32.mrb[0].mxu0
    %v3227 = vadd.f32 0.0, %v3226
    %v3228 = vpop.f32.mrb[0].mxu0
    %v3229 = vpop.f32.mrb[0].mxu0
    %v3230 = vadd.f32 0.0, %v3229
    %v3231 = vpop.f32.mrb[0].mxu0
    %3232 = vmatprep.mubr.bf16.mxu0 0
    %3233 = vmatmul.mubr.bf16.gmra.mrb[0].mxu0 %v2901
    %v3234 = vpop.f32.mrb[0].mxu0
    %v3235 = vadd.f32 0.0, %v3234
    %v3236 = vpop.f32.mrb[0].mxu0
    %v3237 = vpop.f32.mrb[0].mxu0
    %v3238 = vadd.f32 0.0, %v3237
    %v3239 = vpop.f32.mrb[0].mxu0
    %3240 = vmatprep.mubr.bf16.mxu0 0
    %3241 = vmatmul.mubr.bf16.gmra.mrb[0].mxu0 %v2902
    %v3242 = vpop.f32.mrb[0].mxu0
    %v3243 = vadd.f32 0.0, %v3242
    %v3244 = vpop.f32.mrb[0].mxu0
    %v3245 = vpop.f32.mrb[0].mxu0
    %v3246 = vadd.f32 0.0, %v3245
    %v3247 = vpop.f32.mrb[0].mxu0
    %3248 = vmatprep.mubr.bf16.mxu0 0
    %3249 = vmatmul.mubr.bf16.gmra.mrb[0].mxu0 %v2903
    %v3250 = vpop.f32.mrb[0].mxu0
    %v3251 = vadd.f32 0.0, %v3250
    %v3252 = vpop.f32.mrb[0].mxu0
    %v3253 = vpop.f32.mrb[0].mxu0
    %v3254 = vadd.f32 0.0, %v3253
    %v3255 = vpop.f32.mrb[0].mxu0
    %3256 = vdwg.mxu0
    %v3257 = vld [vmem:[%s2] sm:$0x1]
    %v3258 = vld [vmem:[%s3] sm:$0x1]
    %v3259 = vadd.f32 %v3003, %v3006
    %v3260 = vadd.f32 %v3259, %v3011
    %v3261 = vadd.f32 %v3260, %v3014
    %v3262 = vadd.f32 %v3261, %v3019
    %v3263 = vadd.f32 %v3262, %v3022
    %v3264 = vadd.f32 %v3263, %v3027
    %v3265 = vadd.f32 %v3264, %v3030
    %v3266 = vadd.f32 %v3265, %v3035
    %v3267 = vadd.f32 %v3266, %v3038
    %v3268 = vadd.f32 %v3267, %v3043
    %v3269 = vadd.f32 %v3268, %v3046
    %v3270 = vadd.f32 %v3269, %v3051
    %v3271 = vadd.f32 %v3270, %v3054
    %v3272 = vadd.f32 %v3271, %v3059
    %v3273 = vadd.f32 %v3272, %v3062
    %v3274 = vadd.f32 %v3273, %v3067
    %v3275 = vadd.f32 %v3274, %v3070
    %v3276 = vadd.f32 %v3275, %v3075
    %v3277 = vadd.f32 %v3276, %v3078
    %v3278 = vadd.f32 %v3277, %v3083
    %v3279 = vadd.f32 %v3278, %v3086
    %v3280 = vadd.f32 %v3279, %v3091
    %v3281 = vadd.f32 %v3280, %v3094
    %v3282 = vadd.f32 %v3281, %v3099
    %v3283 = vadd.f32 %v3282, %v3102
    %v3284 = vadd.f32 %v3283, %v3107
    %v3285 = vadd.f32 %v3284, %v3110
    %v3286 = vadd.f32 %v3285, %v3115
    %v3287 = vadd.f32 %v3286, %v3118
    %v3288 = vadd.f32 %v3287, %v3123
    %v3289 = vadd.f32 %v3288, %v3126
    %v3290 = vadd.f32 %v3289, %v3131
    %v3291 = vadd.f32 %v3290, %v3134
    %v3292 = vadd.f32 %v3291, %v3139
    %v3293 = vadd.f32 %v3292, %v3142
    %v3294 = vadd.f32 %v3293, %v3147
    %v3295 = vadd.f32 %v3294, %v3150
    %v3296 = vadd.f32 %v3295, %v3155
    %v3297 = vadd.f32 %v3296, %v3158
    %v3298 = vadd.f32 %v3297, %v3163
    %v3299 = vadd.f32 %v3298, %v3166
    %v3300 = vadd.f32 %v3299, %v3171
    %v3301 = vadd.f32 %v3300, %v3174
    %v3302 = vadd.f32 %v3301, %v3179
    %v3303 = vadd.f32 %v3302, %v3182
    %v3304 = vadd.f32 %v3303, %v3187
    %v3305 = vadd.f32 %v3304, %v3190
    %v3306 = vadd.f32 %v3305, %v3195
    %v3307 = vadd.f32 %v3306, %v3198
    %v3308 = vadd.f32 %v3307, %v3203
    %v3309 = vadd.f32 %v3308, %v3206
    %v3310 = vadd.f32 %v3309, %v3211
    %v3311 = vadd.f32 %v3310, %v3214
    %v3312 = vadd.f32 %v3311, %v3219
    %v3313 = vadd.f32 %v3312, %v3222
    %v3314 = vadd.f32 %v3313, %v3227
    %v3315 = vadd.f32 %v3314, %v3230
    %v3316 = vadd.f32 %v3315, %v3235
    %v3317 = vadd.f32 %v3316, %v3238
    %v3318 = vadd.f32 %v3317, %v3243
    %v3319 = vadd.f32 %v3318, %v3246
    %v3320 = vadd.f32 %v3319, %v3251
    %v3321 = vadd.f32 %v3320, %v3254
    %v3322 = vrot.slane %v3321, 4
    %v3323 = vadd.f32 %v3321, %v3322
    %v3324 = vrot.slane %v3323, 2
    %v3325 = vadd.f32 %v3323, %v3324
    %v3326 = vrot.slane %v3325, 1
    %v3327 = vadd.f32 %v3325, %v3326
    %v3328 = vrcp.pop 512.0
    %v3329 = vmul.f32 %v3327, %v3328
    %v3330 = vsub.f32 %v3003, %v3329
    %v3331 = vsub.f32 %v3006, %v3329
    %v3332 = vsub.f32 %v3011, %v3329
    %v3333 = vsub.f32 %v3014, %v3329
    %v3334 = vsub.f32 %v3019, %v3329
    %v3335 = vsub.f32 %v3022, %v3329
    %v3336 = vsub.f32 %v3027, %v3329
    %v3337 = vsub.f32 %v3030, %v3329
    %v3338 = vsub.f32 %v3035, %v3329
    %v3339 = vsub.f32 %v3038, %v3329
    %v3340 = vsub.f32 %v3043, %v3329
    %v3341 = vsub.f32 %v3046, %v3329
    %v3342 = vsub.f32 %v3051, %v3329
    %v3343 = vsub.f32 %v3054, %v3329
    %v3344 = vsub.f32 %v3059, %v3329
    %v3345 = vsub.f32 %v3062, %v3329
    %v3346 = vsub.f32 %v3067, %v3329
    %v3347 = vsub.f32 %v3070, %v3329
    %v3348 = vsub.f32 %v3075, %v3329
    %v3349 = vsub.f32 %v3078, %v3329
    %v3350 = vsub.f32 %v3083, %v3329
    %v3351 = vsub.f32 %v3086, %v3329
    %v3352 = vsub.f32 %v3091, %v3329
    %v3353 = vsub.f32 %v3094, %v3329
    %v3354 = vsub.f32 %v3099, %v3329
    %v3355 = vsub.f32 %v3102, %v3329
    %v3356 = vsub.f32 %v3107, %v3329
    %v3357 = vsub.f32 %v3110, %v3329
    %v3358 = vsub.f32 %v3115, %v3329
    %v3359 = vsub.f32 %v3118, %v3329
    %v3360 = vsub.f32 %v3123, %v3329
    %v3361 = vsub.f32 %v3126, %v3329
    %v3362 = vsub.f32 %v3131, %v3329
    %v3363 = vsub.f32 %v3134, %v3329
    %v3364 = vsub.f32 %v3139, %v3329
    %v3365 = vsub.f32 %v3142, %v3329
    %v3366 = vsub.f32 %v3147, %v3329
    %v3367 = vsub.f32 %v3150, %v3329
    %v3368 = vsub.f32 %v3155, %v3329
    %v3369 = vsub.f32 %v3158, %v3329
    %v3370 = vsub.f32 %v3163, %v3329
    %v3371 = vsub.f32 %v3166, %v3329
    %v3372 = vsub.f32 %v3171, %v3329
    %v3373 = vsub.f32 %v3174, %v3329
    %v3374 = vsub.f32 %v3179, %v3329
    %v3375 = vsub.f32 %v3182, %v3329
    %v3376 = vsub.f32 %v3187, %v3329
    %v3377 = vsub.f32 %v3190, %v3329
    %v3378 = vsub.f32 %v3195, %v3329
    %v3379 = vsub.f32 %v3198, %v3329
    %v3380 = vsub.f32 %v3203, %v3329
    %v3381 = vsub.f32 %v3206, %v3329
    %v3382 = vsub.f32 %v3211, %v3329
    %v3383 = vsub.f32 %v3214, %v3329
    %v3384 = vsub.f32 %v3219, %v3329
    %v3385 = vsub.f32 %v3222, %v3329
    %v3386 = vsub.f32 %v3227, %v3329
    %v3387 = vsub.f32 %v3230, %v3329
    %v3388 = vsub.f32 %v3235, %v3329
    %v3389 = vsub.f32 %v3238, %v3329
    %v3390 = vsub.f32 %v3243, %v3329
    %v3391 = vsub.f32 %v3246, %v3329
    %v3392 = vsub.f32 %v3251, %v3329
    %v3393 = vsub.f32 %v3254, %v3329
    %v3394 = vmul.f32 %v3330, %v3330
    %v3395 = vmul.f32 %v3331, %v3331
    %v3396 = vmul.f32 %v3332, %v3332
    %v3397 = vmul.f32 %v3333, %v3333
    %v3398 = vmul.f32 %v3334, %v3334
    %v3399 = vmul.f32 %v3335, %v3335
    %v3400 = vmul.f32 %v3336, %v3336
    %v3401 = vmul.f32 %v3337, %v3337
    %v3402 = vmul.f32 %v3338, %v3338
    %v3403 = vmul.f32 %v3339, %v3339
    %v3404 = vmul.f32 %v3340, %v3340
    %v3405 = vmul.f32 %v3341, %v3341
    %v3406 = vmul.f32 %v3342, %v3342
    %v3407 = vmul.f32 %v3343, %v3343
    %v3408 = vmul.f32 %v3344, %v3344
    %v3409 = vmul.f32 %v3345, %v3345
    %v3410 = vmul.f32 %v3346, %v3346
    %v3411 = vmul.f32 %v3347, %v3347
    %v3412 = vmul.f32 %v3348, %v3348
    %v3413 = vmul.f32 %v3349, %v3349
    %v3414 = vmul.f32 %v3350, %v3350
    %v3415 = vmul.f32 %v3351, %v3351
    %v3416 = vmul.f32 %v3352, %v3352
    %v3417 = vmul.f32 %v3353, %v3353
    %v3418 = vmul.f32 %v3354, %v3354
    %v3419 = vmul.f32 %v3355, %v3355
    %v3420 = vmul.f32 %v3356, %v3356
    %v3421 = vmul.f32 %v3357, %v3357
    %v3422 = vmul.f32 %v3358, %v3358
    %v3423 = vmul.f32 %v3359, %v3359
    %v3424 = vmul.f32 %v3360, %v3360
    %v3425 = vmul.f32 %v3361, %v3361
    %v3426 = vmul.f32 %v3362, %v3362
    %v3427 = vmul.f32 %v3363, %v3363
    %v3428 = vmul.f32 %v3364, %v3364
    %v3429 = vmul.f32 %v3365, %v3365
    %v3430 = vmul.f32 %v3366, %v3366
    %v3431 = vmul.f32 %v3367, %v3367
    %v3432 = vmul.f32 %v3368, %v3368
    %v3433 = vmul.f32 %v3369, %v3369
    %v3434 = vmul.f32 %v3370, %v3370
    %v3435 = vmul.f32 %v3371, %v3371
    %v3436 = vmul.f32 %v3372, %v3372
    %v3437 = vmul.f32 %v3373, %v3373
    %v3438 = vmul.f32 %v3374, %v3374
    %v3439 = vmul.f32 %v3375, %v3375
    %v3440 = vmul.f32 %v3376, %v3376
    %v3441 = vmul.f32 %v3377, %v3377
    %v3442 = vmul.f32 %v3378, %v3378
    %v3443 = vmul.f32 %v3379, %v3379
    %v3444 = vmul.f32 %v3380, %v3380
    %v3445 = vmul.f32 %v3381, %v3381
    %v3446 = vmul.f32 %v3382, %v3382
    %v3447 = vmul.f32 %v3383, %v3383
    %v3448 = vmul.f32 %v3384, %v3384
    %v3449 = vmul.f32 %v3385, %v3385
    %v3450 = vmul.f32 %v3386, %v3386
    %v3451 = vmul.f32 %v3387, %v3387
    %v3452 = vmul.f32 %v3388, %v3388
    %v3453 = vmul.f32 %v3389, %v3389
    %v3454 = vmul.f32 %v3390, %v3390
    %v3455 = vmul.f32 %v3391, %v3391
    %v3456 = vmul.f32 %v3392, %v3392
    %v3457 = vmul.f32 %v3393, %v3393
    %v3458 = vadd.f32 %v3394, %v3395
    %v3459 = vadd.f32 %v3458, %v3396
    %v3460 = vadd.f32 %v3459, %v3397
    %v3461 = vadd.f32 %v3460, %v3398
    %v3462 = vadd.f32 %v3461, %v3399
    %v3463 = vadd.f32 %v3462, %v3400
    %v3464 = vadd.f32 %v3463, %v3401
    %v3465 = vadd.f32 %v3464, %v3402
    %v3466 = vadd.f32 %v3465, %v3403
    %v3467 = vadd.f32 %v3466, %v3404
    %v3468 = vadd.f32 %v3467, %v3405
    %v3469 = vadd.f32 %v3468, %v3406
    %v3470 = vadd.f32 %v3469, %v3407
    %v3471 = vadd.f32 %v3470, %v3408
    %v3472 = vadd.f32 %v3471, %v3409
    %v3473 = vadd.f32 %v3472, %v3410
    %v3474 = vadd.f32 %v3473, %v3411
    %v3475 = vadd.f32 %v3474, %v3412
    %v3476 = vadd.f32 %v3475, %v3413
    %v3477 = vadd.f32 %v3476, %v3414
    %v3478 = vadd.f32 %v3477, %v3415
    %v3479 = vadd.f32 %v3478, %v3416
    %v3480 = vadd.f32 %v3479, %v3417
    %v3481 = vadd.f32 %v3480, %v3418
    %v3482 = vadd.f32 %v3481, %v3419
    %v3483 = vadd.f32 %v3482, %v3420
    %v3484 = vadd.f32 %v3483, %v3421
    %v3485 = vadd.f32 %v3484, %v3422
    %v3486 = vadd.f32 %v3485, %v3423
    %v3487 = vadd.f32 %v3486, %v3424
    %v3488 = vadd.f32 %v3487, %v3425
    %v3489 = vadd.f32 %v3488, %v3426
    %v3490 = vadd.f32 %v3489, %v3427
    %v3491 = vadd.f32 %v3490, %v3428
    %v3492 = vadd.f32 %v3491, %v3429
    %v3493 = vadd.f32 %v3492, %v3430
    %v3494 = vadd.f32 %v3493, %v3431
    %v3495 = vadd.f32 %v3494, %v3432
    %v3496 = vadd.f32 %v3495, %v3433
    %v3497 = vadd.f32 %v3496, %v3434
    %v3498 = vadd.f32 %v3497, %v3435
    %v3499 = vadd.f32 %v3498, %v3436
    %v3500 = vadd.f32 %v3499, %v3437
    %v3501 = vadd.f32 %v3500, %v3438
    %v3502 = vadd.f32 %v3501, %v3439
    %v3503 = vadd.f32 %v3502, %v3440
    %v3504 = vadd.f32 %v3503, %v3441
    %v3505 = vadd.f32 %v3504, %v3442
    %v3506 = vadd.f32 %v3505, %v3443
    %v3507 = vadd.f32 %v3506, %v3444
    %v3508 = vadd.f32 %v3507, %v3445
    %v3509 = vadd.f32 %v3508, %v3446
    %v3510 = vadd.f32 %v3509, %v3447
    %v3511 = vadd.f32 %v3510, %v3448
    %v3512 = vadd.f32 %v3511, %v3449
    %v3513 = vadd.f32 %v3512, %v3450
    %v3514 = vadd.f32 %v3513, %v3451
    %v3515 = vadd.f32 %v3514, %v3452
    %v3516 = vadd.f32 %v3515, %v3453
    %v3517 = vadd.f32 %v3516, %v3454
    %v3518 = vadd.f32 %v3517, %v3455
    %v3519 = vadd.f32 %v3518, %v3456
    %v3520 = vadd.f32 %v3519, %v3457
    %v3521 = vrot.slane %v3520, 4
    %v3522 = vadd.f32 %v3520, %v3521
    %v3523 = vrot.slane %v3522, 2
    %v3524 = vadd.f32 %v3522, %v3523
    %v3525 = vrot.slane %v3524, 1
    %v3526 = vadd.f32 %v3524, %v3525
    %v3527 = vmul.f32 %v3526, %v3328
    %v3528 = vadd.f32 %v3527, 1e-05
    %v3529 = vrsqrt.pop %v3528
    %v3530 = vmul.f32 %v3330, %v3529
    %v3531 = vmul.f32 %v3331, %v3529
    %v3532 = vmul.f32 %v3332, %v3529
    %v3533 = vmul.f32 %v3333, %v3529
    %v3534 = vmul.f32 %v3334, %v3529
    %v3535 = vmul.f32 %v3335, %v3529
    %v3536 = vmul.f32 %v3336, %v3529
    %v3537 = vmul.f32 %v3337, %v3529
    %v3538 = vmul.f32 %v3338, %v3529
    %v3539 = vmul.f32 %v3339, %v3529
    %v3540 = vmul.f32 %v3340, %v3529
    %v3541 = vmul.f32 %v3341, %v3529
    %v3542 = vmul.f32 %v3342, %v3529
    %v3543 = vmul.f32 %v3343, %v3529
    %v3544 = vmul.f32 %v3344, %v3529
    %v3545 = vmul.f32 %v3345, %v3529
    %v3546 = vmul.f32 %v3346, %v3529
    %v3547 = vmul.f32 %v3347, %v3529
    %v3548 = vmul.f32 %v3348, %v3529
    %v3549 = vmul.f32 %v3349, %v3529
    %v3550 = vmul.f32 %v3350, %v3529
    %v3551 = vmul.f32 %v3351, %v3529
    %v3552 = vmul.f32 %v3352, %v3529
    %v3553 = vmul.f32 %v3353, %v3529
    %v3554 = vmul.f32 %v3354, %v3529
    %v3555 = vmul.f32 %v3355, %v3529
    %v3556 = vmul.f32 %v3356, %v3529
    %v3557 = vmul.f32 %v3357, %v3529
    %v3558 = vmul.f32 %v3358, %v3529
    %v3559 = vmul.f32 %v3359, %v3529
    %v3560 = vmul.f32 %v3360, %v3529
    %v3561 = vmul.f32 %v3361, %v3529
    %v3562 = vmul.f32 %v3362, %v3529
    %v3563 = vmul.f32 %v3363, %v3529
    %v3564 = vmul.f32 %v3364, %v3529
    %v3565 = vmul.f32 %v3365, %v3529
    %v3566 = vmul.f32 %v3366, %v3529
    %v3567 = vmul.f32 %v3367, %v3529
    %v3568 = vmul.f32 %v3368, %v3529
    %v3569 = vmul.f32 %v3369, %v3529
    %v3570 = vmul.f32 %v3370, %v3529
    %v3571 = vmul.f32 %v3371, %v3529
    %v3572 = vmul.f32 %v3372, %v3529
    %v3573 = vmul.f32 %v3373, %v3529
    %v3574 = vmul.f32 %v3374, %v3529
    %v3575 = vmul.f32 %v3375, %v3529
    %v3576 = vmul.f32 %v3376, %v3529
    %v3577 = vmul.f32 %v3377, %v3529
    %v3578 = vmul.f32 %v3378, %v3529
    %v3579 = vmul.f32 %v3379, %v3529
    %v3580 = vmul.f32 %v3380, %v3529
    %v3581 = vmul.f32 %v3381, %v3529
    %v3582 = vmul.f32 %v3382, %v3529
    %v3583 = vmul.f32 %v3383, %v3529
    %v3584 = vmul.f32 %v3384, %v3529
    %v3585 = vmul.f32 %v3385, %v3529
    %v3586 = vmul.f32 %v3386, %v3529
    %v3587 = vmul.f32 %v3387, %v3529
    %v3588 = vmul.f32 %v3388, %v3529
    %v3589 = vmul.f32 %v3389, %v3529
    %v3590 = vmul.f32 %v3390, %v3529
    %v3591 = vmul.f32 %v3391, %v3529
    %v3592 = vmul.f32 %v3392, %v3529
    %v3593 = vmul.f32 %v3393, %v3529
    %v3595 = vlaneseq
    %v3596 = vshrl.u32 %v3595, 7
    %v3597 = vsub.s32 0, %v3596
    %v3598 = vrot.slane %v3257, %v3597
    %v3600 = vmul.f32 %v3530, %v3598
    %v3601 = vmul.f32 %v3531, %v3598
    %v3602 = vmul.f32 %v3532, %v3598
    %v3603 = vmul.f32 %v3533, %v3598
    %v3604 = vmul.f32 %v3534, %v3598
    %v3605 = vmul.f32 %v3535, %v3598
    %v3606 = vmul.f32 %v3536, %v3598
    %v3607 = vmul.f32 %v3537, %v3598
    %v3608 = vmul.f32 %v3538, %v3598
    %v3609 = vmul.f32 %v3539, %v3598
    %v3610 = vmul.f32 %v3540, %v3598
    %v3611 = vmul.f32 %v3541, %v3598
    %v3612 = vmul.f32 %v3542, %v3598
    %v3613 = vmul.f32 %v3543, %v3598
    %v3614 = vmul.f32 %v3544, %v3598
    %v3615 = vmul.f32 %v3545, %v3598
    %v3616 = vmul.f32 %v3546, %v3598
    %v3617 = vmul.f32 %v3547, %v3598
    %v3618 = vmul.f32 %v3548, %v3598
    %v3619 = vmul.f32 %v3549, %v3598
    %v3620 = vmul.f32 %v3550, %v3598
    %v3621 = vmul.f32 %v3551, %v3598
    %v3622 = vmul.f32 %v3552, %v3598
    %v3623 = vmul.f32 %v3553, %v3598
    %v3624 = vmul.f32 %v3554, %v3598
    %v3625 = vmul.f32 %v3555, %v3598
    %v3626 = vmul.f32 %v3556, %v3598
    %v3627 = vmul.f32 %v3557, %v3598
    %v3628 = vmul.f32 %v3558, %v3598
    %v3629 = vmul.f32 %v3559, %v3598
    %v3630 = vmul.f32 %v3560, %v3598
    %v3631 = vmul.f32 %v3561, %v3598
    %v3632 = vmul.f32 %v3562, %v3598
    %v3633 = vmul.f32 %v3563, %v3598
    %v3634 = vmul.f32 %v3564, %v3598
    %v3635 = vmul.f32 %v3565, %v3598
    %v3636 = vmul.f32 %v3566, %v3598
    %v3637 = vmul.f32 %v3567, %v3598
    %v3638 = vmul.f32 %v3568, %v3598
    %v3639 = vmul.f32 %v3569, %v3598
    %v3640 = vmul.f32 %v3570, %v3598
    %v3641 = vmul.f32 %v3571, %v3598
    %v3642 = vmul.f32 %v3572, %v3598
    %v3643 = vmul.f32 %v3573, %v3598
    %v3644 = vmul.f32 %v3574, %v3598
    %v3645 = vmul.f32 %v3575, %v3598
    %v3646 = vmul.f32 %v3576, %v3598
    %v3647 = vmul.f32 %v3577, %v3598
    %v3648 = vmul.f32 %v3578, %v3598
    %v3649 = vmul.f32 %v3579, %v3598
    %v3650 = vmul.f32 %v3580, %v3598
    %v3651 = vmul.f32 %v3581, %v3598
    %v3652 = vmul.f32 %v3582, %v3598
    %v3653 = vmul.f32 %v3583, %v3598
    %v3654 = vmul.f32 %v3584, %v3598
    %v3655 = vmul.f32 %v3585, %v3598
    %v3656 = vmul.f32 %v3586, %v3598
    %v3657 = vmul.f32 %v3587, %v3598
    %v3658 = vmul.f32 %v3588, %v3598
    %v3659 = vmul.f32 %v3589, %v3598
    %v3660 = vmul.f32 %v3590, %v3598
    %v3661 = vmul.f32 %v3591, %v3598
    %v3662 = vmul.f32 %v3592, %v3598
    %v3663 = vmul.f32 %v3593, %v3598
    %v3665 = vlaneseq
    %v3666 = vshrl.u32 %v3665, 7
    %v3667 = vsub.s32 0, %v3666
    %v3668 = vrot.slane %v3258, %v3667
    %v3670 = vadd.f32 %v3600, %v3668
    %v3671 = vadd.f32 %v3601, %v3668
    %v3672 = vadd.f32 %v3602, %v3668
    %v3673 = vadd.f32 %v3603, %v3668
    %v3674 = vadd.f32 %v3604, %v3668
    %v3675 = vadd.f32 %v3605, %v3668
    %v3676 = vadd.f32 %v3606, %v3668
    %v3677 = vadd.f32 %v3607, %v3668
    %v3678 = vadd.f32 %v3608, %v3668
    %v3679 = vadd.f32 %v3609, %v3668
    %v3680 = vadd.f32 %v3610, %v3668
    %v3681 = vadd.f32 %v3611, %v3668
    %v3682 = vadd.f32 %v3612, %v3668
    %v3683 = vadd.f32 %v3613, %v3668
    %v3684 = vadd.f32 %v3614, %v3668
    %v3685 = vadd.f32 %v3615, %v3668
    %v3686 = vadd.f32 %v3616, %v3668
    %v3687 = vadd.f32 %v3617, %v3668
    %v3688 = vadd.f32 %v3618, %v3668
    %v3689 = vadd.f32 %v3619, %v3668
    %v3690 = vadd.f32 %v3620, %v3668
    %v3691 = vadd.f32 %v3621, %v3668
    %v3692 = vadd.f32 %v3622, %v3668
    %v3693 = vadd.f32 %v3623, %v3668
    %v3694 = vadd.f32 %v3624, %v3668
    %v3695 = vadd.f32 %v3625, %v3668
    %v3696 = vadd.f32 %v3626, %v3668
    %v3697 = vadd.f32 %v3627, %v3668
    %v3698 = vadd.f32 %v3628, %v3668
    %v3699 = vadd.f32 %v3629, %v3668
    %v3700 = vadd.f32 %v3630, %v3668
    %v3701 = vadd.f32 %v3631, %v3668
    %v3702 = vadd.f32 %v3632, %v3668
    %v3703 = vadd.f32 %v3633, %v3668
    %v3704 = vadd.f32 %v3634, %v3668
    %v3705 = vadd.f32 %v3635, %v3668
    %v3706 = vadd.f32 %v3636, %v3668
    %v3707 = vadd.f32 %v3637, %v3668
    %v3708 = vadd.f32 %v3638, %v3668
    %v3709 = vadd.f32 %v3639, %v3668
    %v3710 = vadd.f32 %v3640, %v3668
    %v3711 = vadd.f32 %v3641, %v3668
    %v3712 = vadd.f32 %v3642, %v3668
    %v3713 = vadd.f32 %v3643, %v3668
    %v3714 = vadd.f32 %v3644, %v3668
    %v3715 = vadd.f32 %v3645, %v3668
    %v3716 = vadd.f32 %v3646, %v3668
    %v3717 = vadd.f32 %v3647, %v3668
    %v3718 = vadd.f32 %v3648, %v3668
    %v3719 = vadd.f32 %v3649, %v3668
    %v3720 = vadd.f32 %v3650, %v3668
    %v3721 = vadd.f32 %v3651, %v3668
    %v3722 = vadd.f32 %v3652, %v3668
    %v3723 = vadd.f32 %v3653, %v3668
    %v3724 = vadd.f32 %v3654, %v3668
    %v3725 = vadd.f32 %v3655, %v3668
    %v3726 = vadd.f32 %v3656, %v3668
    %v3727 = vadd.f32 %v3657, %v3668
    %v3728 = vadd.f32 %v3658, %v3668
    %v3729 = vadd.f32 %v3659, %v3668
    %v3730 = vadd.f32 %v3660, %v3668
    %v3731 = vadd.f32 %v3661, %v3668
    %v3732 = vadd.f32 %v3662, %v3668
    %v3733 = vadd.f32 %v3663, %v3668
    %v3734 = vmax.f32 %v3670, 0.0
    %v3735 = vmax.f32 %v3671, 0.0
    %v3736 = vmax.f32 %v3672, 0.0
    %v3737 = vmax.f32 %v3673, 0.0
    %v3738 = vmax.f32 %v3674, 0.0
    %v3739 = vmax.f32 %v3675, 0.0
    %v3740 = vmax.f32 %v3676, 0.0
    %v3741 = vmax.f32 %v3677, 0.0
    %v3742 = vmax.f32 %v3678, 0.0
    %v3743 = vmax.f32 %v3679, 0.0
    %v3744 = vmax.f32 %v3680, 0.0
    %v3745 = vmax.f32 %v3681, 0.0
    %v3746 = vmax.f32 %v3682, 0.0
    %v3747 = vmax.f32 %v3683, 0.0
    %v3748 = vmax.f32 %v3684, 0.0
    %v3749 = vmax.f32 %v3685, 0.0
    %v3750 = vmax.f32 %v3686, 0.0
    %v3751 = vmax.f32 %v3687, 0.0
    %v3752 = vmax.f32 %v3688, 0.0
    %v3753 = vmax.f32 %v3689, 0.0
    %v3754 = vmax.f32 %v3690, 0.0
    %v3755 = vmax.f32 %v3691, 0.0
    %v3756 = vmax.f32 %v3692, 0.0
    %v3757 = vmax.f32 %v3693, 0.0
    %v3758 = vmax.f32 %v3694, 0.0
    %v3759 = vmax.f32 %v3695, 0.0
    %v3760 = vmax.f32 %v3696, 0.0
    %v3761 = vmax.f32 %v3697, 0.0
    %v3762 = vmax.f32 %v3698, 0.0
    %v3763 = vmax.f32 %v3699, 0.0
    %v3764 = vmax.f32 %v3700, 0.0
    %v3765 = vmax.f32 %v3701, 0.0
    %v3766 = vmax.f32 %v3702, 0.0
    %v3767 = vmax.f32 %v3703, 0.0
    %v3768 = vmax.f32 %v3704, 0.0
    %v3769 = vmax.f32 %v3705, 0.0
    %v3770 = vmax.f32 %v3706, 0.0
    %v3771 = vmax.f32 %v3707, 0.0
    %v3772 = vmax.f32 %v3708, 0.0
    %v3773 = vmax.f32 %v3709, 0.0
    %v3774 = vmax.f32 %v3710, 0.0
    %v3775 = vmax.f32 %v3711, 0.0
    %v3776 = vmax.f32 %v3712, 0.0
    %v3777 = vmax.f32 %v3713, 0.0
    %v3778 = vmax.f32 %v3714, 0.0
    %v3779 = vmax.f32 %v3715, 0.0
    %v3780 = vmax.f32 %v3716, 0.0
    %v3781 = vmax.f32 %v3717, 0.0
    %v3782 = vmax.f32 %v3718, 0.0
    %v3783 = vmax.f32 %v3719, 0.0
    %v3784 = vmax.f32 %v3720, 0.0
    %v3785 = vmax.f32 %v3721, 0.0
    %v3786 = vmax.f32 %v3722, 0.0
    %v3787 = vmax.f32 %v3723, 0.0
    %v3788 = vmax.f32 %v3724, 0.0
    %v3789 = vmax.f32 %v3725, 0.0
    %v3790 = vmax.f32 %v3726, 0.0
    %v3791 = vmax.f32 %v3727, 0.0
    %v3792 = vmax.f32 %v3728, 0.0
    %v3793 = vmax.f32 %v3729, 0.0
    %v3794 = vmax.f32 %v3730, 0.0
    %v3795 = vmax.f32 %v3731, 0.0
    %v3796 = vmax.f32 %v3732, 0.0
    %v3797 = vmax.f32 %v3733, 0.0
    %v3862 = vrot.slane %v3734, 7
    %v3863 = vrot.slane %v3735, 7
    %v3864 = vsel %vm156, %v3862, %v3863
    %v3865 = vrot.slane %v3736, 7
    %v3866 = vrot.slane %v3737, 7
    %v3867 = vsel %vm156, %v3865, %v3866
    %v3868 = vrot.slane %v3738, 7
    %v3869 = vrot.slane %v3739, 7
    %v3870 = vsel %vm156, %v3868, %v3869
    %v3871 = vrot.slane %v3740, 7
    %v3872 = vrot.slane %v3741, 7
    %v3873 = vsel %vm156, %v3871, %v3872
    %v3874 = vrot.slane %v3742, 7
    %v3875 = vrot.slane %v3743, 7
    %v3876 = vsel %vm156, %v3874, %v3875
    %v3877 = vrot.slane %v3744, 7
    %v3878 = vrot.slane %v3745, 7
    %v3879 = vsel %vm156, %v3877, %v3878
    %v3880 = vrot.slane %v3746, 7
    %v3881 = vrot.slane %v3747, 7
    %v3882 = vsel %vm156, %v3880, %v3881
    %v3883 = vrot.slane %v3748, 7
    %v3884 = vrot.slane %v3749, 7
    %v3885 = vsel %vm156, %v3883, %v3884
    %v3886 = vrot.slane %v3750, 7
    %v3887 = vrot.slane %v3751, 7
    %v3888 = vsel %vm156, %v3886, %v3887
    %v3889 = vrot.slane %v3752, 7
    %v3890 = vrot.slane %v3753, 7
    %v3891 = vsel %vm156, %v3889, %v3890
    %v3892 = vrot.slane %v3754, 7
    %v3893 = vrot.slane %v3755, 7
    %v3894 = vsel %vm156, %v3892, %v3893
    %v3895 = vrot.slane %v3756, 7
    %v3896 = vrot.slane %v3757, 7
    %v3897 = vsel %vm156, %v3895, %v3896
    %v3898 = vrot.slane %v3758, 7
    %v3899 = vrot.slane %v3759, 7
    %v3900 = vsel %vm156, %v3898, %v3899
    %v3901 = vrot.slane %v3760, 7
    %v3902 = vrot.slane %v3761, 7
    %v3903 = vsel %vm156, %v3901, %v3902
    %v3904 = vrot.slane %v3762, 7
    %v3905 = vrot.slane %v3763, 7
    %v3906 = vsel %vm156, %v3904, %v3905
    %v3907 = vrot.slane %v3764, 7
    %v3908 = vrot.slane %v3765, 7
    %v3909 = vsel %vm156, %v3907, %v3908
    %v3910 = vrot.slane %v3766, 7
    %v3911 = vrot.slane %v3767, 7
    %v3912 = vsel %vm156, %v3910, %v3911
    %v3913 = vrot.slane %v3768, 7
    %v3914 = vrot.slane %v3769, 7
    %v3915 = vsel %vm156, %v3913, %v3914
    %v3916 = vrot.slane %v3770, 7
    %v3917 = vrot.slane %v3771, 7
    %v3918 = vsel %vm156, %v3916, %v3917
    %v3919 = vrot.slane %v3772, 7
    %v3920 = vrot.slane %v3773, 7
    %v3921 = vsel %vm156, %v3919, %v3920
    %v3922 = vrot.slane %v3774, 7
    %v3923 = vrot.slane %v3775, 7
    %v3924 = vsel %vm156, %v3922, %v3923
    %v3925 = vrot.slane %v3776, 7
    %v3926 = vrot.slane %v3777, 7
    %v3927 = vsel %vm156, %v3925, %v3926
    %v3928 = vrot.slane %v3778, 7
    %v3929 = vrot.slane %v3779, 7
    %v3930 = vsel %vm156, %v3928, %v3929
    %v3931 = vrot.slane %v3780, 7
    %v3932 = vrot.slane %v3781, 7
    %v3933 = vsel %vm156, %v3931, %v3932
    %v3934 = vrot.slane %v3782, 7
    %v3935 = vrot.slane %v3783, 7
    %v3936 = vsel %vm156, %v3934, %v3935
    %v3937 = vrot.slane %v3784, 7
    %v3938 = vrot.slane %v3785, 7
    %v3939 = vsel %vm156, %v3937, %v3938
    %v3940 = vrot.slane %v3786, 7
    %v3941 = vrot.slane %v3787, 7
    %v3942 = vsel %vm156, %v3940, %v3941
    %v3943 = vrot.slane %v3788, 7
    %v3944 = vrot.slane %v3789, 7
    %v3945 = vsel %vm156, %v3943, %v3944
    %v3946 = vrot.slane %v3790, 7
    %v3947 = vrot.slane %v3791, 7
    %v3948 = vsel %vm156, %v3946, %v3947
    %v3949 = vrot.slane %v3792, 7
    %v3950 = vrot.slane %v3793, 7
    %v3951 = vsel %vm156, %v3949, %v3950
    %v3952 = vrot.slane %v3794, 7
    %v3953 = vrot.slane %v3795, 7
    %v3954 = vsel %vm156, %v3952, %v3953
    %v3955 = vrot.slane %v3796, 7
    %v3956 = vrot.slane %v3797, 7
    %v3957 = vsel %vm156, %v3955, %v3956
    %v4052 = vsel %vm156, 0.0, %v3862
    %v4053 = vsel %vm156, 0.0, %v3865
    %v4054 = vsel %vm156, 0.0, %v3868
    %v4055 = vsel %vm156, 0.0, %v3871
    %v4056 = vsel %vm156, 0.0, %v3874
    %v4057 = vsel %vm156, 0.0, %v3877
    %v4058 = vsel %vm156, 0.0, %v3880
    %v4059 = vsel %vm156, 0.0, %v3883
    %v4060 = vsel %vm156, 0.0, %v3886
    %v4061 = vsel %vm156, 0.0, %v3889
    %v4062 = vsel %vm156, 0.0, %v3892
    %v4063 = vsel %vm156, 0.0, %v3895
    %v4064 = vsel %vm156, 0.0, %v3898
    %v4065 = vsel %vm156, 0.0, %v3901
    %v4066 = vsel %vm156, 0.0, %v3904
    %v4067 = vsel %vm156, 0.0, %v3907
    %v4068 = vsel %vm156, 0.0, %v3910
    %v4069 = vsel %vm156, 0.0, %v3913
    %v4070 = vsel %vm156, 0.0, %v3916
    %v4071 = vsel %vm156, 0.0, %v3919
    %v4072 = vsel %vm156, 0.0, %v3922
    %v4073 = vsel %vm156, 0.0, %v3925
    %v4074 = vsel %vm156, 0.0, %v3928
    %v4075 = vsel %vm156, 0.0, %v3931
    %v4076 = vsel %vm156, 0.0, %v3934
    %v4077 = vsel %vm156, 0.0, %v3937
    %v4078 = vsel %vm156, 0.0, %v3940
    %v4079 = vsel %vm156, 0.0, %v3943
    %v4080 = vsel %vm156, 0.0, %v3946
    %v4081 = vsel %vm156, 0.0, %v3949
    %v4082 = vsel %vm156, 0.0, %v3952
    %v4083 = vsel %vm156, 0.0, %v3955
    %v4084 = vsel %vm156, %v3863, 0.0
    %v4085 = vsel %vm156, %v3866, 0.0
    %v4086 = vsel %vm156, %v3869, 0.0
    %v4087 = vsel %vm156, %v3872, 0.0
    %v4088 = vsel %vm156, %v3875, 0.0
    %v4089 = vsel %vm156, %v3878, 0.0
    %v4090 = vsel %vm156, %v3881, 0.0
    %v4091 = vsel %vm156, %v3884, 0.0
    %v4092 = vsel %vm156, %v3887, 0.0
    %v4093 = vsel %vm156, %v3890, 0.0
    %v4094 = vsel %vm156, %v3893, 0.0
    %v4095 = vsel %vm156, %v3896, 0.0
    %v4096 = vsel %vm156, %v3899, 0.0
    %v4097 = vsel %vm156, %v3902, 0.0
    %v4098 = vsel %vm156, %v3905, 0.0
    %v4099 = vsel %vm156, %v3908, 0.0
    %v4100 = vsel %vm156, %v3911, 0.0
    %v4101 = vsel %vm156, %v3914, 0.0
    %v4102 = vsel %vm156, %v3917, 0.0
    %v4103 = vsel %vm156, %v3920, 0.0
    %v4104 = vsel %vm156, %v3923, 0.0
    %v4105 = vsel %vm156, %v3926, 0.0
    %v4106 = vsel %vm156, %v3929, 0.0
    %v4107 = vsel %vm156, %v3932, 0.0
    %v4108 = vsel %vm156, %v3935, 0.0
    %v4109 = vsel %vm156, %v3938, 0.0
    %v4110 = vsel %vm156, %v3941, 0.0
    %v4111 = vsel %vm156, %v3944, 0.0
    %v4112 = vsel %vm156, %v3947, 0.0
    %v4113 = vsel %vm156, %v3950, 0.0
    %v4114 = vsel %vm156, %v3953, 0.0
    %v4115 = vsel %vm156, %v3956, 0.0
    %v4176 = vrot.slane %v4052, 1
    %v4177 = vrot.slane %v3864, 1
    %v4178 = vsel %vm472, %v4176, %v4177
    %v4179 = vrot.slane %v4084, 1
    %v4180 = vsel %vm472, %v4177, %v4179
    %v4181 = vrot.slane %v4053, 1
    %v4182 = vrot.slane %v3867, 1
    %v4183 = vsel %vm472, %v4181, %v4182
    %v4184 = vrot.slane %v4085, 1
    %v4185 = vsel %vm472, %v4182, %v4184
    %v4186 = vrot.slane %v4054, 1
    %v4187 = vrot.slane %v3870, 1
    %v4188 = vsel %vm472, %v4186, %v4187
    %v4189 = vrot.slane %v4086, 1
    %v4190 = vsel %vm472, %v4187, %v4189
    %v4191 = vrot.slane %v4055, 1
    %v4192 = vrot.slane %v3873, 1
    %v4193 = vsel %vm472, %v4191, %v4192
    %v4194 = vrot.slane %v4087, 1
    %v4195 = vsel %vm472, %v4192, %v4194
    %v4196 = vrot.slane %v4056, 1
    %v4197 = vrot.slane %v3876, 1
    %v4198 = vsel %vm472, %v4196, %v4197
    %v4199 = vrot.slane %v4088, 1
    %v4200 = vsel %vm472, %v4197, %v4199
    %v4201 = vrot.slane %v4057, 1
    %v4202 = vrot.slane %v3879, 1
    %v4203 = vsel %vm472, %v4201, %v4202
    %v4204 = vrot.slane %v4089, 1
    %v4205 = vsel %vm472, %v4202, %v4204
    %v4206 = vrot.slane %v4058, 1
    %v4207 = vrot.slane %v3882, 1
    %v4208 = vsel %vm472, %v4206, %v4207
    %v4209 = vrot.slane %v4090, 1
    %v4210 = vsel %vm472, %v4207, %v4209
    %v4211 = vrot.slane %v4059, 1
    %v4212 = vrot.slane %v3885, 1
    %v4213 = vsel %vm472, %v4211, %v4212
    %v4214 = vrot.slane %v4091, 1
    %v4215 = vsel %vm472, %v4212, %v4214
    %v4216 = vrot.slane %v4060, 1
    %v4217 = vrot.slane %v3888, 1
    %v4218 = vsel %vm472, %v4216, %v4217
    %v4219 = vrot.slane %v4092, 1
    %v4220 = vsel %vm472, %v4217, %v4219
    %v4221 = vrot.slane %v4061, 1
    %v4222 = vrot.slane %v3891, 1
    %v4223 = vsel %vm472, %v4221, %v4222
    %v4224 = vrot.slane %v4093, 1
    %v4225 = vsel %vm472, %v4222, %v4224
    %v4226 = vrot.slane %v4062, 1
    %v4227 = vrot.slane %v3894, 1
    %v4228 = vsel %vm472, %v4226, %v4227
    %v4229 = vrot.slane %v4094, 1
    %v4230 = vsel %vm472, %v4227, %v4229
    %v4231 = vrot.slane %v4063, 1
    %v4232 = vrot.slane %v3897, 1
    %v4233 = vsel %vm472, %v4231, %v4232
    %v4234 = vrot.slane %v4095, 1
    %v4235 = vsel %vm472, %v4232, %v4234
    %v4236 = vrot.slane %v4064, 1
    %v4237 = vrot.slane %v3900, 1
    %v4238 = vsel %vm472, %v4236, %v4237
    %v4239 = vrot.slane %v4096, 1
    %v4240 = vsel %vm472, %v4237, %v4239
    %v4241 = vrot.slane %v4065, 1
    %v4242 = vrot.slane %v3903, 1
    %v4243 = vsel %vm472, %v4241, %v4242
    %v4244 = vrot.slane %v4097, 1
    %v4245 = vsel %vm472, %v4242, %v4244
    %v4246 = vrot.slane %v4066, 1
    %v4247 = vrot.slane %v3906, 1
    %v4248 = vsel %vm472, %v4246, %v4247
    %v4249 = vrot.slane %v4098, 1
    %v4250 = vsel %vm472, %v4247, %v4249
    %v4251 = vrot.slane %v4068, 1
    %v4252 = vrot.slane %v3912, 1
    %v4253 = vsel %vm472, %v4251, %v4252
    %v4254 = vrot.slane %v4100, 1
    %v4255 = vsel %vm472, %v4252, %v4254
    %v4256 = vrot.slane %v4069, 1
    %v4257 = vrot.slane %v3915, 1
    %v4258 = vsel %vm472, %v4256, %v4257
    %v4259 = vrot.slane %v4101, 1
    %v4260 = vsel %vm472, %v4257, %v4259
    %v4261 = vrot.slane %v4070, 1
    %v4262 = vrot.slane %v3918, 1
    %v4263 = vsel %vm472, %v4261, %v4262
    %v4264 = vrot.slane %v4102, 1
    %v4265 = vsel %vm472, %v4262, %v4264
    %v4266 = vrot.slane %v4071, 1
    %v4267 = vrot.slane %v3921, 1
    %v4268 = vsel %vm472, %v4266, %v4267
    %v4269 = vrot.slane %v4103, 1
    %v4270 = vsel %vm472, %v4267, %v4269
    %v4271 = vrot.slane %v4072, 1
    %v4272 = vrot.slane %v3924, 1
    %v4273 = vsel %vm472, %v4271, %v4272
    %v4274 = vrot.slane %v4104, 1
    %v4275 = vsel %vm472, %v4272, %v4274
    %v4276 = vrot.slane %v4073, 1
    %v4277 = vrot.slane %v3927, 1
    %v4278 = vsel %vm472, %v4276, %v4277
    %v4279 = vrot.slane %v4105, 1
    %v4280 = vsel %vm472, %v4277, %v4279
    %v4281 = vrot.slane %v4074, 1
    %v4282 = vrot.slane %v3930, 1
    %v4283 = vsel %vm472, %v4281, %v4282
    %v4284 = vrot.slane %v4106, 1
    %v4285 = vsel %vm472, %v4282, %v4284
    %v4286 = vrot.slane %v4075, 1
    %v4287 = vrot.slane %v3933, 1
    %v4288 = vsel %vm472, %v4286, %v4287
    %v4289 = vrot.slane %v4107, 1
    %v4290 = vsel %vm472, %v4287, %v4289
    %v4291 = vrot.slane %v4076, 1
    %v4292 = vrot.slane %v3936, 1
    %v4293 = vsel %vm472, %v4291, %v4292
    %v4294 = vrot.slane %v4108, 1
    %v4295 = vsel %vm472, %v4292, %v4294
    %v4296 = vrot.slane %v4077, 1
    %v4297 = vrot.slane %v3939, 1
    %v4298 = vsel %vm472, %v4296, %v4297
    %v4299 = vrot.slane %v4109, 1
    %v4300 = vsel %vm472, %v4297, %v4299
    %v4301 = vrot.slane %v4078, 1
    %v4302 = vrot.slane %v3942, 1
    %v4303 = vsel %vm472, %v4301, %v4302
    %v4304 = vrot.slane %v4110, 1
    %v4305 = vsel %vm472, %v4302, %v4304
    %v4306 = vrot.slane %v4079, 1
    %v4307 = vrot.slane %v3945, 1
    %v4308 = vsel %vm472, %v4306, %v4307
    %v4309 = vrot.slane %v4111, 1
    %v4310 = vsel %vm472, %v4307, %v4309
    %v4311 = vrot.slane %v4080, 1
    %v4312 = vrot.slane %v3948, 1
    %v4313 = vsel %vm472, %v4311, %v4312
    %v4314 = vrot.slane %v4112, 1
    %v4315 = vsel %vm472, %v4312, %v4314
    %v4316 = vrot.slane %v4081, 1
    %v4317 = vrot.slane %v3951, 1
    %v4318 = vsel %vm472, %v4316, %v4317
    %v4319 = vrot.slane %v4113, 1
    %v4320 = vsel %vm472, %v4317, %v4319
    %v4321 = vrot.slane %v4082, 1
    %v4322 = vrot.slane %v3954, 1
    %v4323 = vsel %vm472, %v4321, %v4322
    %v4324 = vrot.slane %v4114, 1
    %v4325 = vsel %vm472, %v4322, %v4324
    %4326 = vrot.lane.b32.xlu0 %v4178, 4
    %v4327 = vpop.permute.xlu0 %4326
    %4328 = vrot.lane.b32.xlu0 %v4180, 4
    %v4329 = vpop.permute.xlu0 %4328
    %4330 = vrot.lane.b32.xlu0 %v4183, 4
    %v4331 = vpop.permute.xlu0 %4330
    %4332 = vrot.lane.b32.xlu0 %v4185, 4
    %v4333 = vpop.permute.xlu0 %4332
    %4334 = vrot.lane.b32.xlu0 %v4188, 4
    %v4335 = vpop.permute.xlu0 %4334
    %4336 = vrot.lane.b32.xlu0 %v4190, 4
    %v4337 = vpop.permute.xlu0 %4336
    %4338 = vrot.lane.b32.xlu0 %v4193, 4
    %v4339 = vpop.permute.xlu0 %4338
    %4340 = vrot.lane.b32.xlu0 %v4195, 4
    %v4341 = vpop.permute.xlu0 %4340
    %4342 = vrot.lane.b32.xlu0 %v4198, 4
    %v4343 = vpop.permute.xlu0 %4342
    %4344 = vrot.lane.b32.xlu0 %v4200, 4
    %v4345 = vpop.permute.xlu0 %4344
    %4346 = vrot.lane.b32.xlu0 %v4203, 4
    %v4347 = vpop.permute.xlu0 %4346
    %4348 = vrot.lane.b32.xlu0 %v4205, 4
    %v4349 = vpop.permute.xlu0 %4348
    %4350 = vrot.lane.b32.xlu0 %v4208, 4
    %v4351 = vpop.permute.xlu0 %4350
    %4352 = vrot.lane.b32.xlu0 %v4210, 4
    %v4353 = vpop.permute.xlu0 %4352
    %4354 = vrot.lane.b32.xlu0 %v4213, 4
    %v4355 = vpop.permute.xlu0 %4354
    %4356 = vrot.lane.b32.xlu0 %v4215, 4
    %v4357 = vpop.permute.xlu0 %4356
    %4358 = vrot.lane.b32.xlu0 %v4218, 4
    %v4359 = vpop.permute.xlu0 %4358
    %4360 = vrot.lane.b32.xlu0 %v4220, 4
    %v4361 = vpop.permute.xlu0 %4360
    %4362 = vrot.lane.b32.xlu0 %v4223, 4
    %v4363 = vpop.permute.xlu0 %4362
    %4364 = vrot.lane.b32.xlu0 %v4225, 4
    %v4365 = vpop.permute.xlu0 %4364
    %4366 = vrot.lane.b32.xlu0 %v4228, 4
    %v4367 = vpop.permute.xlu0 %4366
    %4368 = vrot.lane.b32.xlu0 %v4230, 4
    %v4369 = vpop.permute.xlu0 %4368
    %4370 = vrot.lane.b32.xlu0 %v4233, 4
    %v4371 = vpop.permute.xlu0 %4370
    %4372 = vrot.lane.b32.xlu0 %v4235, 4
    %v4373 = vpop.permute.xlu0 %4372
    %4374 = vrot.lane.b32.xlu0 %v4238, 4
    %v4375 = vpop.permute.xlu0 %4374
    %4376 = vrot.lane.b32.xlu0 %v4240, 4
    %v4377 = vpop.permute.xlu0 %4376
    %4378 = vrot.lane.b32.xlu0 %v4243, 4
    %v4379 = vpop.permute.xlu0 %4378
    %4380 = vrot.lane.b32.xlu0 %v4245, 4
    %v4381 = vpop.permute.xlu0 %4380
    %4382 = vrot.lane.b32.xlu0 %v4248, 4
    %v4383 = vpop.permute.xlu0 %4382
    %4384 = vrot.lane.b32.xlu0 %v4250, 4
    %v4385 = vpop.permute.xlu0 %4384
    %4386 = vrot.lane.b32.xlu0 %v4253, 4
    %v4387 = vpop.permute.xlu0 %4386
    %4388 = vrot.lane.b32.xlu0 %v4255, 4
    %v4389 = vpop.permute.xlu0 %4388
    %4390 = vrot.lane.b32.xlu0 %v4258, 4
    %v4391 = vpop.permute.xlu0 %4390
    %4392 = vrot.lane.b32.xlu0 %v4260, 4
    %v4393 = vpop.permute.xlu0 %4392
    %4394 = vrot.lane.b32.xlu0 %v4263, 4
    %v4395 = vpop.permute.xlu0 %4394
    %4396 = vrot.lane.b32.xlu0 %v4265, 4
    %v4397 = vpop.permute.xlu0 %4396
    %4398 = vrot.lane.b32.xlu0 %v4268, 4
    %v4399 = vpop.permute.xlu0 %4398
    %4400 = vrot.lane.b32.xlu0 %v4270, 4
    %v4401 = vpop.permute.xlu0 %4400
    %4402 = vrot.lane.b32.xlu0 %v4273, 4
    %v4403 = vpop.permute.xlu0 %4402
    %4404 = vrot.lane.b32.xlu0 %v4275, 4
    %v4405 = vpop.permute.xlu0 %4404
    %4406 = vrot.lane.b32.xlu0 %v4278, 4
    %v4407 = vpop.permute.xlu0 %4406
    %4408 = vrot.lane.b32.xlu0 %v4280, 4
    %v4409 = vpop.permute.xlu0 %4408
    %4410 = vrot.lane.b32.xlu0 %v4283, 4
    %v4411 = vpop.permute.xlu0 %4410
    %4412 = vrot.lane.b32.xlu0 %v4285, 4
    %v4413 = vpop.permute.xlu0 %4412
    %4414 = vrot.lane.b32.xlu0 %v4288, 4
    %v4415 = vpop.permute.xlu0 %4414
    %4416 = vrot.lane.b32.xlu0 %v4290, 4
    %v4417 = vpop.permute.xlu0 %4416
    %4418 = vrot.lane.b32.xlu0 %v4293, 4
    %v4419 = vpop.permute.xlu0 %4418
    %4420 = vrot.lane.b32.xlu0 %v4295, 4
    %v4421 = vpop.permute.xlu0 %4420
    %4422 = vrot.lane.b32.xlu0 %v4298, 4
    %v4423 = vpop.permute.xlu0 %4422
    %4424 = vrot.lane.b32.xlu0 %v4300, 4
    %v4425 = vpop.permute.xlu0 %4424
    %4426 = vrot.lane.b32.xlu0 %v4303, 4
    %v4427 = vpop.permute.xlu0 %4426
    %4428 = vrot.lane.b32.xlu0 %v4305, 4
    %v4429 = vpop.permute.xlu0 %4428
    %4430 = vrot.lane.b32.xlu0 %v4308, 4
    %v4431 = vpop.permute.xlu0 %4430
    %4432 = vrot.lane.b32.xlu0 %v4310, 4
    %v4433 = vpop.permute.xlu0 %4432
    %4434 = vrot.lane.b32.xlu0 %v4313, 4
    %v4435 = vpop.permute.xlu0 %4434
    %4436 = vrot.lane.b32.xlu0 %v4315, 4
    %v4437 = vpop.permute.xlu0 %4436
    %4438 = vrot.lane.b32.xlu0 %v4318, 4
    %v4439 = vpop.permute.xlu0 %4438
    %4440 = vrot.lane.b32.xlu0 %v4320, 4
    %v4441 = vpop.permute.xlu0 %4440
    %4442 = vrot.lane.b32.xlu0 %v4323, 4
    %v4443 = vpop.permute.xlu0 %4442
    %4444 = vrot.lane.b32.xlu0 %v4325, 4
    %v4445 = vpop.permute.xlu0 %4444
    %v4506 = vrot.slane %v4052, 2
    %v4507 = vrot.slane %v3864, 2
    %v4508 = vsel %vm808, %v4506, %v4507
    %v4509 = vrot.slane %v4084, 2
    %v4510 = vsel %vm808, %v4507, %v4509
    %v4511 = vrot.slane %v4053, 2
    %v4512 = vrot.slane %v3867, 2
    %v4513 = vsel %vm808, %v4511, %v4512
    %v4514 = vrot.slane %v4085, 2
    %v4515 = vsel %vm808, %v4512, %v4514
    %v4516 = vrot.slane %v4054, 2
    %v4517 = vrot.slane %v3870, 2
    %v4518 = vsel %vm808, %v4516, %v4517
    %v4519 = vrot.slane %v4086, 2
    %v4520 = vsel %vm808, %v4517, %v4519
    %v4521 = vrot.slane %v4055, 2
    %v4522 = vrot.slane %v3873, 2
    %v4523 = vsel %vm808, %v4521, %v4522
    %v4524 = vrot.slane %v4087, 2
    %v4525 = vsel %vm808, %v4522, %v4524
    %v4526 = vrot.slane %v4056, 2
    %v4527 = vrot.slane %v3876, 2
    %v4528 = vsel %vm808, %v4526, %v4527
    %v4529 = vrot.slane %v4088, 2
    %v4530 = vsel %vm808, %v4527, %v4529
    %v4531 = vrot.slane %v4057, 2
    %v4532 = vrot.slane %v3879, 2
    %v4533 = vsel %vm808, %v4531, %v4532
    %v4534 = vrot.slane %v4089, 2
    %v4535 = vsel %vm808, %v4532, %v4534
    %v4536 = vrot.slane %v4058, 2
    %v4537 = vrot.slane %v3882, 2
    %v4538 = vsel %vm808, %v4536, %v4537
    %v4539 = vrot.slane %v4090, 2
    %v4540 = vsel %vm808, %v4537, %v4539
    %v4541 = vrot.slane %v4059, 2
    %v4542 = vrot.slane %v3885, 2
    %v4543 = vsel %vm808, %v4541, %v4542
    %v4544 = vrot.slane %v4091, 2
    %v4545 = vsel %vm808, %v4542, %v4544
    %v4546 = vrot.slane %v4060, 2
    %v4547 = vrot.slane %v3888, 2
    %v4548 = vsel %vm808, %v4546, %v4547
    %v4549 = vrot.slane %v4092, 2
    %v4550 = vsel %vm808, %v4547, %v4549
    %v4551 = vrot.slane %v4061, 2
    %v4552 = vrot.slane %v3891, 2
    %v4553 = vsel %vm808, %v4551, %v4552
    %v4554 = vrot.slane %v4093, 2
    %v4555 = vsel %vm808, %v4552, %v4554
    %v4556 = vrot.slane %v4062, 2
    %v4557 = vrot.slane %v3894, 2
    %v4558 = vsel %vm808, %v4556, %v4557
    %v4559 = vrot.slane %v4094, 2
    %v4560 = vsel %vm808, %v4557, %v4559
    %v4561 = vrot.slane %v4063, 2
    %v4562 = vrot.slane %v3897, 2
    %v4563 = vsel %vm808, %v4561, %v4562
    %v4564 = vrot.slane %v4095, 2
    %v4565 = vsel %vm808, %v4562, %v4564
    %v4566 = vrot.slane %v4064, 2
    %v4567 = vrot.slane %v3900, 2
    %v4568 = vsel %vm808, %v4566, %v4567
    %v4569 = vrot.slane %v4096, 2
    %v4570 = vsel %vm808, %v4567, %v4569
    %v4571 = vrot.slane %v4065, 2
    %v4572 = vrot.slane %v3903, 2
    %v4573 = vsel %vm808, %v4571, %v4572
    %v4574 = vrot.slane %v4097, 2
    %v4575 = vsel %vm808, %v4572, %v4574
    %v4576 = vrot.slane %v4066, 2
    %v4577 = vrot.slane %v3906, 2
    %v4578 = vsel %vm808, %v4576, %v4577
    %v4579 = vrot.slane %v4098, 2
    %v4580 = vsel %vm808, %v4577, %v4579
    %v4581 = vrot.slane %v4068, 2
    %v4582 = vrot.slane %v3912, 2
    %v4583 = vsel %vm808, %v4581, %v4582
    %v4584 = vrot.slane %v4100, 2
    %v4585 = vsel %vm808, %v4582, %v4584
    %v4586 = vrot.slane %v4069, 2
    %v4587 = vrot.slane %v3915, 2
    %v4588 = vsel %vm808, %v4586, %v4587
    %v4589 = vrot.slane %v4101, 2
    %v4590 = vsel %vm808, %v4587, %v4589
    %v4591 = vrot.slane %v4070, 2
    %v4592 = vrot.slane %v3918, 2
    %v4593 = vsel %vm808, %v4591, %v4592
    %v4594 = vrot.slane %v4102, 2
    %v4595 = vsel %vm808, %v4592, %v4594
    %v4596 = vrot.slane %v4071, 2
    %v4597 = vrot.slane %v3921, 2
    %v4598 = vsel %vm808, %v4596, %v4597
    %v4599 = vrot.slane %v4103, 2
    %v4600 = vsel %vm808, %v4597, %v4599
    %v4601 = vrot.slane %v4072, 2
    %v4602 = vrot.slane %v3924, 2
    %v4603 = vsel %vm808, %v4601, %v4602
    %v4604 = vrot.slane %v4104, 2
    %v4605 = vsel %vm808, %v4602, %v4604
    %v4606 = vrot.slane %v4073, 2
    %v4607 = vrot.slane %v3927, 2
    %v4608 = vsel %vm808, %v4606, %v4607
    %v4609 = vrot.slane %v4105, 2
    %v4610 = vsel %vm808, %v4607, %v4609
    %v4611 = vrot.slane %v4074, 2
    %v4612 = vrot.slane %v3930, 2
    %v4613 = vsel %vm808, %v4611, %v4612
    %v4614 = vrot.slane %v4106, 2
    %v4615 = vsel %vm808, %v4612, %v4614
    %v4616 = vrot.slane %v4075, 2
    %v4617 = vrot.slane %v3933, 2
    %v4618 = vsel %vm808, %v4616, %v4617
    %v4619 = vrot.slane %v4107, 2
    %v4620 = vsel %vm808, %v4617, %v4619
    %v4621 = vrot.slane %v4076, 2
    %v4622 = vrot.slane %v3936, 2
    %v4623 = vsel %vm808, %v4621, %v4622
    %v4624 = vrot.slane %v4108, 2
    %v4625 = vsel %vm808, %v4622, %v4624
    %v4626 = vrot.slane %v4077, 2
    %v4627 = vrot.slane %v3939, 2
    %v4628 = vsel %vm808, %v4626, %v4627
    %v4629 = vrot.slane %v4109, 2
    %v4630 = vsel %vm808, %v4627, %v4629
    %v4631 = vrot.slane %v4078, 2
    %v4632 = vrot.slane %v3942, 2
    %v4633 = vsel %vm808, %v4631, %v4632
    %v4634 = vrot.slane %v4110, 2
    %v4635 = vsel %vm808, %v4632, %v4634
    %v4636 = vrot.slane %v4079, 2
    %v4637 = vrot.slane %v3945, 2
    %v4638 = vsel %vm808, %v4636, %v4637
    %v4639 = vrot.slane %v4111, 2
    %v4640 = vsel %vm808, %v4637, %v4639
    %v4641 = vrot.slane %v4080, 2
    %v4642 = vrot.slane %v3948, 2
    %v4643 = vsel %vm808, %v4641, %v4642
    %v4644 = vrot.slane %v4112, 2
    %v4645 = vsel %vm808, %v4642, %v4644
    %v4646 = vrot.slane %v4081, 2
    %v4647 = vrot.slane %v3951, 2
    %v4648 = vsel %vm808, %v4646, %v4647
    %v4649 = vrot.slane %v4113, 2
    %v4650 = vsel %vm808, %v4647, %v4649
    %v4651 = vrot.slane %v4082, 2
    %v4652 = vrot.slane %v3954, 2
    %v4653 = vsel %vm808, %v4651, %v4652
    %v4654 = vrot.slane %v4114, 2
    %v4655 = vsel %vm808, %v4652, %v4654
    %4656 = vrot.lane.b32.xlu0 %v4508, 8
    %v4657 = vpop.permute.xlu0 %4656
    %4658 = vrot.lane.b32.xlu0 %v4510, 8
    %v4659 = vpop.permute.xlu0 %4658
    %4660 = vrot.lane.b32.xlu0 %v4513, 8
    %v4661 = vpop.permute.xlu0 %4660
    %4662 = vrot.lane.b32.xlu0 %v4515, 8
    %v4663 = vpop.permute.xlu0 %4662
    %4664 = vrot.lane.b32.xlu0 %v4518, 8
    %v4665 = vpop.permute.xlu0 %4664
    %4666 = vrot.lane.b32.xlu0 %v4520, 8
    %v4667 = vpop.permute.xlu0 %4666
    %4668 = vrot.lane.b32.xlu0 %v4523, 8
    %v4669 = vpop.permute.xlu0 %4668
    %4670 = vrot.lane.b32.xlu0 %v4525, 8
    %v4671 = vpop.permute.xlu0 %4670
    %4672 = vrot.lane.b32.xlu0 %v4528, 8
    %v4673 = vpop.permute.xlu0 %4672
    %4674 = vrot.lane.b32.xlu0 %v4530, 8
    %v4675 = vpop.permute.xlu0 %4674
    %4676 = vrot.lane.b32.xlu0 %v4533, 8
    %v4677 = vpop.permute.xlu0 %4676
    %4678 = vrot.lane.b32.xlu0 %v4535, 8
    %v4679 = vpop.permute.xlu0 %4678
    %4680 = vrot.lane.b32.xlu0 %v4538, 8
    %v4681 = vpop.permute.xlu0 %4680
    %4682 = vrot.lane.b32.xlu0 %v4540, 8
    %v4683 = vpop.permute.xlu0 %4682
    %4684 = vrot.lane.b32.xlu0 %v4543, 8
    %v4685 = vpop.permute.xlu0 %4684
    %4686 = vrot.lane.b32.xlu0 %v4545, 8
    %v4687 = vpop.permute.xlu0 %4686
    %4688 = vrot.lane.b32.xlu0 %v4548, 8
    %v4689 = vpop.permute.xlu0 %4688
    %4690 = vrot.lane.b32.xlu0 %v4550, 8
    %v4691 = vpop.permute.xlu0 %4690
    %4692 = vrot.lane.b32.xlu0 %v4553, 8
    %v4693 = vpop.permute.xlu0 %4692
    %4694 = vrot.lane.b32.xlu0 %v4555, 8
    %v4695 = vpop.permute.xlu0 %4694
    %4696 = vrot.lane.b32.xlu0 %v4558, 8
    %v4697 = vpop.permute.xlu0 %4696
    %4698 = vrot.lane.b32.xlu0 %v4560, 8
    %v4699 = vpop.permute.xlu0 %4698
    %4700 = vrot.lane.b32.xlu0 %v4563, 8
    %v4701 = vpop.permute.xlu0 %4700
    %4702 = vrot.lane.b32.xlu0 %v4565, 8
    %v4703 = vpop.permute.xlu0 %4702
    %4704 = vrot.lane.b32.xlu0 %v4568, 8
    %v4705 = vpop.permute.xlu0 %4704
    %4706 = vrot.lane.b32.xlu0 %v4570, 8
    %v4707 = vpop.permute.xlu0 %4706
    %4708 = vrot.lane.b32.xlu0 %v4573, 8
    %v4709 = vpop.permute.xlu0 %4708
    %4710 = vrot.lane.b32.xlu0 %v4575, 8
    %v4711 = vpop.permute.xlu0 %4710
    %4712 = vrot.lane.b32.xlu0 %v4578, 8
    %v4713 = vpop.permute.xlu0 %4712
    %4714 = vrot.lane.b32.xlu0 %v4580, 8
    %v4715 = vpop.permute.xlu0 %4714
    %4716 = vrot.lane.b32.xlu0 %v4583, 8
    %v4717 = vpop.permute.xlu0 %4716
    %4718 = vrot.lane.b32.xlu0 %v4585, 8
    %v4719 = vpop.permute.xlu0 %4718
    %4720 = vrot.lane.b32.xlu0 %v4588, 8
    %v4721 = vpop.permute.xlu0 %4720
    %4722 = vrot.lane.b32.xlu0 %v4590, 8
    %v4723 = vpop.permute.xlu0 %4722
    %4724 = vrot.lane.b32.xlu0 %v4593, 8
    %v4725 = vpop.permute.xlu0 %4724
    %4726 = vrot.lane.b32.xlu0 %v4595, 8
    %v4727 = vpop.permute.xlu0 %4726
    %4728 = vrot.lane.b32.xlu0 %v4598, 8
    %v4729 = vpop.permute.xlu0 %4728
    %4730 = vrot.lane.b32.xlu0 %v4600, 8
    %v4731 = vpop.permute.xlu0 %4730
    %4732 = vrot.lane.b32.xlu0 %v4603, 8
    %v4733 = vpop.permute.xlu0 %4732
    %4734 = vrot.lane.b32.xlu0 %v4605, 8
    %v4735 = vpop.permute.xlu0 %4734
    %4736 = vrot.lane.b32.xlu0 %v4608, 8
    %v4737 = vpop.permute.xlu0 %4736
    %4738 = vrot.lane.b32.xlu0 %v4610, 8
    %v4739 = vpop.permute.xlu0 %4738
    %4740 = vrot.lane.b32.xlu0 %v4613, 8
    %v4741 = vpop.permute.xlu0 %4740
    %4742 = vrot.lane.b32.xlu0 %v4615, 8
    %v4743 = vpop.permute.xlu0 %4742
    %4744 = vrot.lane.b32.xlu0 %v4618, 8
    %v4745 = vpop.permute.xlu0 %4744
    %4746 = vrot.lane.b32.xlu0 %v4620, 8
    %v4747 = vpop.permute.xlu0 %4746
    %4748 = vrot.lane.b32.xlu0 %v4623, 8
    %v4749 = vpop.permute.xlu0 %4748
    %4750 = vrot.lane.b32.xlu0 %v4625, 8
    %v4751 = vpop.permute.xlu0 %4750
    %4752 = vrot.lane.b32.xlu0 %v4628, 8
    %v4753 = vpop.permute.xlu0 %4752
    %4754 = vrot.lane.b32.xlu0 %v4630, 8
    %v4755 = vpop.permute.xlu0 %4754
    %4756 = vrot.lane.b32.xlu0 %v4633, 8
    %v4757 = vpop.permute.xlu0 %4756
    %4758 = vrot.lane.b32.xlu0 %v4635, 8
    %v4759 = vpop.permute.xlu0 %4758
    %4760 = vrot.lane.b32.xlu0 %v4638, 8
    %v4761 = vpop.permute.xlu0 %4760
    %4762 = vrot.lane.b32.xlu0 %v4640, 8
    %v4763 = vpop.permute.xlu0 %4762
    %4764 = vrot.lane.b32.xlu0 %v4643, 8
    %v4765 = vpop.permute.xlu0 %4764
    %4766 = vrot.lane.b32.xlu0 %v4645, 8
    %v4767 = vpop.permute.xlu0 %4766
    %4768 = vrot.lane.b32.xlu0 %v4648, 8
    %v4769 = vpop.permute.xlu0 %4768
    %4770 = vrot.lane.b32.xlu0 %v4650, 8
    %v4771 = vpop.permute.xlu0 %4770
    %4772 = vrot.lane.b32.xlu0 %v4653, 8
    %v4773 = vpop.permute.xlu0 %4772
    %4774 = vrot.lane.b32.xlu0 %v4655, 8
    %v4775 = vpop.permute.xlu0 %4774
    %4838 = vrot.lane.b32.xlu0 %v4052, 12
    %v4839 = vpop.permute.xlu0 %4838
    %4840 = vrot.lane.b32.xlu0 %v3864, 12
    %v4841 = vpop.permute.xlu0 %4840
    %4842 = vrot.lane.b32.xlu0 %v4053, 12
    %v4843 = vpop.permute.xlu0 %4842
    %4844 = vrot.lane.b32.xlu0 %v3867, 12
    %v4845 = vpop.permute.xlu0 %4844
    %4846 = vrot.lane.b32.xlu0 %v4054, 12
    %v4847 = vpop.permute.xlu0 %4846
    %4848 = vrot.lane.b32.xlu0 %v3870, 12
    %v4849 = vpop.permute.xlu0 %4848
    %4850 = vrot.lane.b32.xlu0 %v4055, 12
    %v4851 = vpop.permute.xlu0 %4850
    %4852 = vrot.lane.b32.xlu0 %v3873, 12
    %v4853 = vpop.permute.xlu0 %4852
    %4854 = vrot.lane.b32.xlu0 %v4056, 12
    %v4855 = vpop.permute.xlu0 %4854
    %4856 = vrot.lane.b32.xlu0 %v3876, 12
    %v4857 = vpop.permute.xlu0 %4856
    %4858 = vrot.lane.b32.xlu0 %v4057, 12
    %v4859 = vpop.permute.xlu0 %4858
    %4860 = vrot.lane.b32.xlu0 %v3879, 12
    %v4861 = vpop.permute.xlu0 %4860
    %4862 = vrot.lane.b32.xlu0 %v4058, 12
    %v4863 = vpop.permute.xlu0 %4862
    %4864 = vrot.lane.b32.xlu0 %v3882, 12
    %v4865 = vpop.permute.xlu0 %4864
    %4866 = vrot.lane.b32.xlu0 %v4059, 12
    %v4867 = vpop.permute.xlu0 %4866
    %4868 = vrot.lane.b32.xlu0 %v3885, 12
    %v4869 = vpop.permute.xlu0 %4868
    %4870 = vrot.lane.b32.xlu0 %v4060, 12
    %v4871 = vpop.permute.xlu0 %4870
    %4872 = vrot.lane.b32.xlu0 %v3888, 12
    %v4873 = vpop.permute.xlu0 %4872
    %4874 = vrot.lane.b32.xlu0 %v4061, 12
    %v4875 = vpop.permute.xlu0 %4874
    %4876 = vrot.lane.b32.xlu0 %v3891, 12
    %v4877 = vpop.permute.xlu0 %4876
    %4878 = vrot.lane.b32.xlu0 %v4062, 12
    %v4879 = vpop.permute.xlu0 %4878
    %4880 = vrot.lane.b32.xlu0 %v3894, 12
    %v4881 = vpop.permute.xlu0 %4880
    %4882 = vrot.lane.b32.xlu0 %v4063, 12
    %v4883 = vpop.permute.xlu0 %4882
    %4884 = vrot.lane.b32.xlu0 %v3897, 12
    %v4885 = vpop.permute.xlu0 %4884
    %4886 = vrot.lane.b32.xlu0 %v4064, 12
    %v4887 = vpop.permute.xlu0 %4886
    %4888 = vrot.lane.b32.xlu0 %v3900, 12
    %v4889 = vpop.permute.xlu0 %4888
    %4890 = vrot.lane.b32.xlu0 %v4065, 12
    %v4891 = vpop.permute.xlu0 %4890
    %4892 = vrot.lane.b32.xlu0 %v3903, 12
    %v4893 = vpop.permute.xlu0 %4892
    %4894 = vrot.lane.b32.xlu0 %v4066, 12
    %v4895 = vpop.permute.xlu0 %4894
    %4896 = vrot.lane.b32.xlu0 %v3906, 12
    %v4897 = vpop.permute.xlu0 %4896
    %4898 = vrot.lane.b32.xlu0 %v4067, 12
    %v4899 = vpop.permute.xlu0 %4898
    %4900 = vrot.lane.b32.xlu0 %v3909, 12
    %v4901 = vpop.permute.xlu0 %4900
    %4902 = vrot.lane.b32.xlu0 %v4068, 12
    %v4903 = vpop.permute.xlu0 %4902
    %4904 = vrot.lane.b32.xlu0 %v3912, 12
    %v4905 = vpop.permute.xlu0 %4904
    %4906 = vrot.lane.b32.xlu0 %v4069, 12
    %v4907 = vpop.permute.xlu0 %4906
    %4908 = vrot.lane.b32.xlu0 %v3915, 12
    %v4909 = vpop.permute.xlu0 %4908
    %4910 = vrot.lane.b32.xlu0 %v4070, 12
    %v4911 = vpop.permute.xlu0 %4910
    %4912 = vrot.lane.b32.xlu0 %v3918, 12
    %v4913 = vpop.permute.xlu0 %4912
    %4914 = vrot.lane.b32.xlu0 %v4071, 12
    %v4915 = vpop.permute.xlu0 %4914
    %4916 = vrot.lane.b32.xlu0 %v3921, 12
    %v4917 = vpop.permute.xlu0 %4916
    %4918 = vrot.lane.b32.xlu0 %v4072, 12
    %v4919 = vpop.permute.xlu0 %4918
    %4920 = vrot.lane.b32.xlu0 %v3924, 12
    %v4921 = vpop.permute.xlu0 %4920
    %4922 = vrot.lane.b32.xlu0 %v4073, 12
    %v4923 = vpop.permute.xlu0 %4922
    %4924 = vrot.lane.b32.xlu0 %v3927, 12
    %v4925 = vpop.permute.xlu0 %4924
    %4926 = vrot.lane.b32.xlu0 %v4074, 12
    %v4927 = vpop.permute.xlu0 %4926
    %4928 = vrot.lane.b32.xlu0 %v3930, 12
    %v4929 = vpop.permute.xlu0 %4928
    %4930 = vrot.lane.b32.xlu0 %v4075, 12
    %v4931 = vpop.permute.xlu0 %4930
    %4932 = vrot.lane.b32.xlu0 %v3933, 12
    %v4933 = vpop.permute.xlu0 %4932
    %4934 = vrot.lane.b32.xlu0 %v4076, 12
    %v4935 = vpop.permute.xlu0 %4934
    %4936 = vrot.lane.b32.xlu0 %v3936, 12
    %v4937 = vpop.permute.xlu0 %4936
    %4938 = vrot.lane.b32.xlu0 %v4077, 12
    %v4939 = vpop.permute.xlu0 %4938
    %4940 = vrot.lane.b32.xlu0 %v3939, 12
    %v4941 = vpop.permute.xlu0 %4940
    %4942 = vrot.lane.b32.xlu0 %v4078, 12
    %v4943 = vpop.permute.xlu0 %4942
    %4944 = vrot.lane.b32.xlu0 %v3942, 12
    %v4945 = vpop.permute.xlu0 %4944
    %4946 = vrot.lane.b32.xlu0 %v4079, 12
    %v4947 = vpop.permute.xlu0 %4946
    %4948 = vrot.lane.b32.xlu0 %v3945, 12
    %v4949 = vpop.permute.xlu0 %4948
    %4950 = vrot.lane.b32.xlu0 %v4080, 12
    %v4951 = vpop.permute.xlu0 %4950
    %4952 = vrot.lane.b32.xlu0 %v3948, 12
    %v4953 = vpop.permute.xlu0 %4952
    %4954 = vrot.lane.b32.xlu0 %v4081, 12
    %v4955 = vpop.permute.xlu0 %4954
    %4956 = vrot.lane.b32.xlu0 %v3951, 12
    %v4957 = vpop.permute.xlu0 %4956
    %4958 = vrot.lane.b32.xlu0 %v4082, 12
    %v4959 = vpop.permute.xlu0 %4958
    %4960 = vrot.lane.b32.xlu0 %v3954, 12
    %v4961 = vpop.permute.xlu0 %4960
    %4962 = vrot.lane.b32.xlu0 %v4083, 12
    %v4963 = vpop.permute.xlu0 %4962
    %4964 = vrot.lane.b32.xlu0 %v3957, 12
    %v4965 = vpop.permute.xlu0 %4964
    %v5032 = vrot.slane %v4067, 1
    %v5033 = vrot.slane %v3909, 1
    %v5034 = vsel %vm472, %v5032, %v5033
    %v5035 = vrot.slane %v4099, 1
    %v5036 = vsel %vm472, %v5033, %v5035
    %v5037 = vrot.slane %v4083, 1
    %v5038 = vrot.slane %v3957, 1
    %v5039 = vsel %vm472, %v5037, %v5038
    %v5040 = vrot.slane %v4115, 1
    %v5041 = vsel %vm472, %v5038, %v5040
    %5042 = vrot.lane.b32.xlu0 %v4178, 16
    %v5043 = vpop.permute.xlu0 %5042
    %5044 = vrot.lane.b32.xlu0 %v4180, 16
    %v5045 = vpop.permute.xlu0 %5044
    %5046 = vrot.lane.b32.xlu0 %v4183, 16
    %v5047 = vpop.permute.xlu0 %5046
    %5048 = vrot.lane.b32.xlu0 %v4185, 16
    %v5049 = vpop.permute.xlu0 %5048
    %5050 = vrot.lane.b32.xlu0 %v4188, 16
    %v5051 = vpop.permute.xlu0 %5050
    %5052 = vrot.lane.b32.xlu0 %v4190, 16
    %v5053 = vpop.permute.xlu0 %5052
    %5054 = vrot.lane.b32.xlu0 %v4193, 16
    %v5055 = vpop.permute.xlu0 %5054
    %5056 = vrot.lane.b32.xlu0 %v4195, 16
    %v5057 = vpop.permute.xlu0 %5056
    %5058 = vrot.lane.b32.xlu0 %v4198, 16
    %v5059 = vpop.permute.xlu0 %5058
    %5060 = vrot.lane.b32.xlu0 %v4200, 16
    %v5061 = vpop.permute.xlu0 %5060
    %5062 = vrot.lane.b32.xlu0 %v4203, 16
    %v5063 = vpop.permute.xlu0 %5062
    %5064 = vrot.lane.b32.xlu0 %v4205, 16
    %v5065 = vpop.permute.xlu0 %5064
    %5066 = vrot.lane.b32.xlu0 %v4208, 16
    %v5067 = vpop.permute.xlu0 %5066
    %5068 = vrot.lane.b32.xlu0 %v4210, 16
    %v5069 = vpop.permute.xlu0 %5068
    %5070 = vrot.lane.b32.xlu0 %v4213, 16
    %v5071 = vpop.permute.xlu0 %5070
    %5072 = vrot.lane.b32.xlu0 %v4215, 16
    %v5073 = vpop.permute.xlu0 %5072
    %5074 = vrot.lane.b32.xlu0 %v4218, 16
    %v5075 = vpop.permute.xlu0 %5074
    %5076 = vrot.lane.b32.xlu0 %v4220, 16
    %v5077 = vpop.permute.xlu0 %5076
    %5078 = vrot.lane.b32.xlu0 %v4223, 16
    %v5079 = vpop.permute.xlu0 %5078
    %5080 = vrot.lane.b32.xlu0 %v4225, 16
    %v5081 = vpop.permute.xlu0 %5080
    %5082 = vrot.lane.b32.xlu0 %v4228, 16
    %v5083 = vpop.permute.xlu0 %5082
    %5084 = vrot.lane.b32.xlu0 %v4230, 16
    %v5085 = vpop.permute.xlu0 %5084
    %5086 = vrot.lane.b32.xlu0 %v4233, 16
    %v5087 = vpop.permute.xlu0 %5086
    %5088 = vrot.lane.b32.xlu0 %v4235, 16
    %v5089 = vpop.permute.xlu0 %5088
    %5090 = vrot.lane.b32.xlu0 %v4238, 16
    %v5091 = vpop.permute.xlu0 %5090
    %5092 = vrot.lane.b32.xlu0 %v4240, 16
    %v5093 = vpop.permute.xlu0 %5092
    %5094 = vrot.lane.b32.xlu0 %v4243, 16
    %v5095 = vpop.permute.xlu0 %5094
    %5096 = vrot.lane.b32.xlu0 %v4245, 16
    %v5097 = vpop.permute.xlu0 %5096
    %5098 = vrot.lane.b32.xlu0 %v4248, 16
    %v5099 = vpop.permute.xlu0 %5098
    %5100 = vrot.lane.b32.xlu0 %v4250, 16
    %v5101 = vpop.permute.xlu0 %5100
    %5102 = vrot.lane.b32.xlu0 %v5034, 16
    %v5103 = vpop.permute.xlu0 %5102
    %5104 = vrot.lane.b32.xlu0 %v5036, 16
    %v5105 = vpop.permute.xlu0 %5104
    %5106 = vrot.lane.b32.xlu0 %v4253, 16
    %v5107 = vpop.permute.xlu0 %5106
    %5108 = vrot.lane.b32.xlu0 %v4255, 16
    %v5109 = vpop.permute.xlu0 %5108
    %5110 = vrot.lane.b32.xlu0 %v4258, 16
    %v5111 = vpop.permute.xlu0 %5110
    %5112 = vrot.lane.b32.xlu0 %v4260, 16
    %v5113 = vpop.permute.xlu0 %5112
    %5114 = vrot.lane.b32.xlu0 %v4263, 16
    %v5115 = vpop.permute.xlu0 %5114
    %5116 = vrot.lane.b32.xlu0 %v4265, 16
    %v5117 = vpop.permute.xlu0 %5116
    %5118 = vrot.lane.b32.xlu0 %v4268, 16
    %v5119 = vpop.permute.xlu0 %5118
    %5120 = vrot.lane.b32.xlu0 %v4270, 16
    %v5121 = vpop.permute.xlu0 %5120
    %5122 = vrot.lane.b32.xlu0 %v4273, 16
    %v5123 = vpop.permute.xlu0 %5122
    %5124 = vrot.lane.b32.xlu0 %v4275, 16
    %v5125 = vpop.permute.xlu0 %5124
    %5126 = vrot.lane.b32.xlu0 %v4278, 16
    %v5127 = vpop.permute.xlu0 %5126
    %5128 = vrot.lane.b32.xlu0 %v4280, 16
    %v5129 = vpop.permute.xlu0 %5128
    %5130 = vrot.lane.b32.xlu0 %v4283, 16
    %v5131 = vpop.permute.xlu0 %5130
    %5132 = vrot.lane.b32.xlu0 %v4285, 16
    %v5133 = vpop.permute.xlu0 %5132
    %5134 = vrot.lane.b32.xlu0 %v4288, 16
    %v5135 = vpop.permute.xlu0 %5134
    %5136 = vrot.lane.b32.xlu0 %v4290, 16
    %v5137 = vpop.permute.xlu0 %5136
    %5138 = vrot.lane.b32.xlu0 %v4293, 16
    %v5139 = vpop.permute.xlu0 %5138
    %5140 = vrot.lane.b32.xlu0 %v4295, 16
    %v5141 = vpop.permute.xlu0 %5140
    %5142 = vrot.lane.b32.xlu0 %v4298, 16
    %v5143 = vpop.permute.xlu0 %5142
    %5144 = vrot.lane.b32.xlu0 %v4300, 16
    %v5145 = vpop.permute.xlu0 %5144
    %5146 = vrot.lane.b32.xlu0 %v4303, 16
    %v5147 = vpop.permute.xlu0 %5146
    %5148 = vrot.lane.b32.xlu0 %v4305, 16
    %v5149 = vpop.permute.xlu0 %5148
    %5150 = vrot.lane.b32.xlu0 %v4308, 16
    %v5151 = vpop.permute.xlu0 %5150
    %5152 = vrot.lane.b32.xlu0 %v4310, 16
    %v5153 = vpop.permute.xlu0 %5152
    %5154 = vrot.lane.b32.xlu0 %v4313, 16
    %v5155 = vpop.permute.xlu0 %5154
    %5156 = vrot.lane.b32.xlu0 %v4315, 16
    %v5157 = vpop.permute.xlu0 %5156
    %5158 = vrot.lane.b32.xlu0 %v4318, 16
    %v5159 = vpop.permute.xlu0 %5158
    %5160 = vrot.lane.b32.xlu0 %v4320, 16
    %v5161 = vpop.permute.xlu0 %5160
    %5162 = vrot.lane.b32.xlu0 %v4323, 16
    %v5163 = vpop.permute.xlu0 %5162
    %5164 = vrot.lane.b32.xlu0 %v4325, 16
    %v5165 = vpop.permute.xlu0 %5164
    %5166 = vrot.lane.b32.xlu0 %v5039, 16
    %v5167 = vpop.permute.xlu0 %5166
    %5168 = vrot.lane.b32.xlu0 %v5041, 16
    %v5169 = vpop.permute.xlu0 %5168
    %v5234 = vrot.slane %v4067, 2
    %v5235 = vrot.slane %v3909, 2
    %v5236 = vsel %vm808, %v5234, %v5235
    %v5237 = vrot.slane %v4099, 2
    %v5238 = vsel %vm808, %v5235, %v5237
    %v5239 = vrot.slane %v4083, 2
    %v5240 = vrot.slane %v3957, 2
    %v5241 = vsel %vm808, %v5239, %v5240
    %v5242 = vrot.slane %v4115, 2
    %v5243 = vsel %vm808, %v5240, %v5242
    %5244 = vrot.lane.b32.xlu0 %v4508, 20
    %v5245 = vpop.permute.xlu0 %5244
    %5246 = vrot.lane.b32.xlu0 %v4510, 20
    %v5247 = vpop.permute.xlu0 %5246
    %5248 = vrot.lane.b32.xlu0 %v4513, 20
    %v5249 = vpop.permute.xlu0 %5248
    %5250 = vrot.lane.b32.xlu0 %v4515, 20
    %v5251 = vpop.permute.xlu0 %5250
    %5252 = vrot.lane.b32.xlu0 %v4518, 20
    %v5253 = vpop.permute.xlu0 %5252
    %5254 = vrot.lane.b32.xlu0 %v4520, 20
    %v5255 = vpop.permute.xlu0 %5254
    %5256 = vrot.lane.b32.xlu0 %v4523, 20
    %v5257 = vpop.permute.xlu0 %5256
    %5258 = vrot.lane.b32.xlu0 %v4525, 20
    %v5259 = vpop.permute.xlu0 %5258
    %5260 = vrot.lane.b32.xlu0 %v4528, 20
    %v5261 = vpop.permute.xlu0 %5260
    %5262 = vrot.lane.b32.xlu0 %v4530, 20
    %v5263 = vpop.permute.xlu0 %5262
    %5264 = vrot.lane.b32.xlu0 %v4533, 20
    %v5265 = vpop.permute.xlu0 %5264
    %5266 = vrot.lane.b32.xlu0 %v4535, 20
    %v5267 = vpop.permute.xlu0 %5266
    %5268 = vrot.lane.b32.xlu0 %v4538, 20
    %v5269 = vpop.permute.xlu0 %5268
    %5270 = vrot.lane.b32.xlu0 %v4540, 20
    %v5271 = vpop.permute.xlu0 %5270
    %5272 = vrot.lane.b32.xlu0 %v4543, 20
    %v5273 = vpop.permute.xlu0 %5272
    %5274 = vrot.lane.b32.xlu0 %v4545, 20
    %v5275 = vpop.permute.xlu0 %5274
    %5276 = vrot.lane.b32.xlu0 %v4548, 20
    %v5277 = vpop.permute.xlu0 %5276
    %5278 = vrot.lane.b32.xlu0 %v4550, 20
    %v5279 = vpop.permute.xlu0 %5278
    %5280 = vrot.lane.b32.xlu0 %v4553, 20
    %v5281 = vpop.permute.xlu0 %5280
    %5282 = vrot.lane.b32.xlu0 %v4555, 20
    %v5283 = vpop.permute.xlu0 %5282
    %5284 = vrot.lane.b32.xlu0 %v4558, 20
    %v5285 = vpop.permute.xlu0 %5284
    %5286 = vrot.lane.b32.xlu0 %v4560, 20
    %v5287 = vpop.permute.xlu0 %5286
    %5288 = vrot.lane.b32.xlu0 %v4563, 20
    %v5289 = vpop.permute.xlu0 %5288
    %5290 = vrot.lane.b32.xlu0 %v4565, 20
    %v5291 = vpop.permute.xlu0 %5290
    %5292 = vrot.lane.b32.xlu0 %v4568, 20
    %v5293 = vpop.permute.xlu0 %5292
    %5294 = vrot.lane.b32.xlu0 %v4570, 20
    %v5295 = vpop.permute.xlu0 %5294
    %5296 = vrot.lane.b32.xlu0 %v4573, 20
    %v5297 = vpop.permute.xlu0 %5296
    %5298 = vrot.lane.b32.xlu0 %v4575, 20
    %v5299 = vpop.permute.xlu0 %5298
    %5300 = vrot.lane.b32.xlu0 %v4578, 20
    %v5301 = vpop.permute.xlu0 %5300
    %5302 = vrot.lane.b32.xlu0 %v4580, 20
    %v5303 = vpop.permute.xlu0 %5302
    %5304 = vrot.lane.b32.xlu0 %v5236, 20
    %v5305 = vpop.permute.xlu0 %5304
    %5306 = vrot.lane.b32.xlu0 %v5238, 20
    %v5307 = vpop.permute.xlu0 %5306
    %5308 = vrot.lane.b32.xlu0 %v4583, 20
    %v5309 = vpop.permute.xlu0 %5308
    %5310 = vrot.lane.b32.xlu0 %v4585, 20
    %v5311 = vpop.permute.xlu0 %5310
    %5312 = vrot.lane.b32.xlu0 %v4588, 20
    %v5313 = vpop.permute.xlu0 %5312
    %5314 = vrot.lane.b32.xlu0 %v4590, 20
    %v5315 = vpop.permute.xlu0 %5314
    %5316 = vrot.lane.b32.xlu0 %v4593, 20
    %v5317 = vpop.permute.xlu0 %5316
    %5318 = vrot.lane.b32.xlu0 %v4595, 20
    %v5319 = vpop.permute.xlu0 %5318
    %5320 = vrot.lane.b32.xlu0 %v4598, 20
    %v5321 = vpop.permute.xlu0 %5320
    %5322 = vrot.lane.b32.xlu0 %v4600, 20
    %v5323 = vpop.permute.xlu0 %5322
    %5324 = vrot.lane.b32.xlu0 %v4603, 20
    %v5325 = vpop.permute.xlu0 %5324
    %5326 = vrot.lane.b32.xlu0 %v4605, 20
    %v5327 = vpop.permute.xlu0 %5326
    %5328 = vrot.lane.b32.xlu0 %v4608, 20
    %v5329 = vpop.permute.xlu0 %5328
    %5330 = vrot.lane.b32.xlu0 %v4610, 20
    %v5331 = vpop.permute.xlu0 %5330
    %5332 = vrot.lane.b32.xlu0 %v4613, 20
    %v5333 = vpop.permute.xlu0 %5332
    %5334 = vrot.lane.b32.xlu0 %v4615, 20
    %v5335 = vpop.permute.xlu0 %5334
    %5336 = vrot.lane.b32.xlu0 %v4618, 20
    %v5337 = vpop.permute.xlu0 %5336
    %5338 = vrot.lane.b32.xlu0 %v4620, 20
    %v5339 = vpop.permute.xlu0 %5338
    %5340 = vrot.lane.b32.xlu0 %v4623, 20
    %v5341 = vpop.permute.xlu0 %5340
    %5342 = vrot.lane.b32.xlu0 %v4625, 20
    %v5343 = vpop.permute.xlu0 %5342
    %5344 = vrot.lane.b32.xlu0 %v4628, 20
    %v5345 = vpop.permute.xlu0 %5344
    %5346 = vrot.lane.b32.xlu0 %v4630, 20
    %v5347 = vpop.permute.xlu0 %5346
    %5348 = vrot.lane.b32.xlu0 %v4633, 20
    %v5349 = vpop.permute.xlu0 %5348
    %5350 = vrot.lane.b32.xlu0 %v4635, 20
    %v5351 = vpop.permute.xlu0 %5350
    %5352 = vrot.lane.b32.xlu0 %v4638, 20
    %v5353 = vpop.permute.xlu0 %5352
    %5354 = vrot.lane.b32.xlu0 %v4640, 20
    %v5355 = vpop.permute.xlu0 %5354
    %5356 = vrot.lane.b32.xlu0 %v4643, 20
    %v5357 = vpop.permute.xlu0 %5356
    %5358 = vrot.lane.b32.xlu0 %v4645, 20
    %v5359 = vpop.permute.xlu0 %5358
    %5360 = vrot.lane.b32.xlu0 %v4648, 20
    %v5361 = vpop.permute.xlu0 %5360
    %5362 = vrot.lane.b32.xlu0 %v4650, 20
    %v5363 = vpop.permute.xlu0 %5362
    %5364 = vrot.lane.b32.xlu0 %v4653, 20
    %v5365 = vpop.permute.xlu0 %5364
    %5366 = vrot.lane.b32.xlu0 %v4655, 20
    %v5367 = vpop.permute.xlu0 %5366
    %5368 = vrot.lane.b32.xlu0 %v5241, 20
    %v5369 = vpop.permute.xlu0 %5368
    %5370 = vrot.lane.b32.xlu0 %v5243, 20
    %v5371 = vpop.permute.xlu0 %5370
    %5436 = vrot.lane.b32.xlu0 %v4053, 24
    %v5437 = vpop.permute.xlu0 %5436
    %5438 = vrot.lane.b32.xlu0 %v3867, 24
    %v5439 = vpop.permute.xlu0 %5438
    %5440 = vrot.lane.b32.xlu0 %v4054, 24
    %v5441 = vpop.permute.xlu0 %5440
    %5442 = vrot.lane.b32.xlu0 %v3870, 24
    %v5443 = vpop.permute.xlu0 %5442
    %5444 = vrot.lane.b32.xlu0 %v4055, 24
    %v5445 = vpop.permute.xlu0 %5444
    %5446 = vrot.lane.b32.xlu0 %v3873, 24
    %v5447 = vpop.permute.xlu0 %5446
    %5448 = vrot.lane.b32.xlu0 %v4056, 24
    %v5449 = vpop.permute.xlu0 %5448
    %5450 = vrot.lane.b32.xlu0 %v3876, 24
    %v5451 = vpop.permute.xlu0 %5450
    %5452 = vrot.lane.b32.xlu0 %v4057, 24
    %v5453 = vpop.permute.xlu0 %5452
    %5454 = vrot.lane.b32.xlu0 %v3879, 24
    %v5455 = vpop.permute.xlu0 %5454
    %5456 = vrot.lane.b32.xlu0 %v4058, 24
    %v5457 = vpop.permute.xlu0 %5456
    %5458 = vrot.lane.b32.xlu0 %v3882, 24
    %v5459 = vpop.permute.xlu0 %5458
    %5460 = vrot.lane.b32.xlu0 %v4059, 24
    %v5461 = vpop.permute.xlu0 %5460
    %5462 = vrot.lane.b32.xlu0 %v3885, 24
    %v5463 = vpop.permute.xlu0 %5462
    %5464 = vrot.lane.b32.xlu0 %v4060, 24
    %v5465 = vpop.permute.xlu0 %5464
    %5466 = vrot.lane.b32.xlu0 %v3888, 24
    %v5467 = vpop.permute.xlu0 %5466
    %5468 = vrot.lane.b32.xlu0 %v4061, 24
    %v5469 = vpop.permute.xlu0 %5468
    %5470 = vrot.lane.b32.xlu0 %v3891, 24
    %v5471 = vpop.permute.xlu0 %5470
    %5472 = vrot.lane.b32.xlu0 %v4062, 24
    %v5473 = vpop.permute.xlu0 %5472
    %5474 = vrot.lane.b32.xlu0 %v3894, 24
    %v5475 = vpop.permute.xlu0 %5474
    %5476 = vrot.lane.b32.xlu0 %v4063, 24
    %v5477 = vpop.permute.xlu0 %5476
    %5478 = vrot.lane.b32.xlu0 %v3897, 24
    %v5479 = vpop.permute.xlu0 %5478
    %5480 = vrot.lane.b32.xlu0 %v4064, 24
    %v5481 = vpop.permute.xlu0 %5480
    %5482 = vrot.lane.b32.xlu0 %v3900, 24
    %v5483 = vpop.permute.xlu0 %5482
    %5484 = vrot.lane.b32.xlu0 %v4065, 24
    %v5485 = vpop.permute.xlu0 %5484
    %5486 = vrot.lane.b32.xlu0 %v3903, 24
    %v5487 = vpop.permute.xlu0 %5486
    %5488 = vrot.lane.b32.xlu0 %v4066, 24
    %v5489 = vpop.permute.xlu0 %5488
    %5490 = vrot.lane.b32.xlu0 %v3906, 24
    %v5491 = vpop.permute.xlu0 %5490
    %5492 = vrot.lane.b32.xlu0 %v4067, 24
    %v5493 = vpop.permute.xlu0 %5492
    %5494 = vrot.lane.b32.xlu0 %v3909, 24
    %v5495 = vpop.permute.xlu0 %5494
    %5496 = vrot.lane.b32.xlu0 %v4069, 24
    %v5497 = vpop.permute.xlu0 %5496
    %5498 = vrot.lane.b32.xlu0 %v3915, 24
    %v5499 = vpop.permute.xlu0 %5498
    %5500 = vrot.lane.b32.xlu0 %v4070, 24
    %v5501 = vpop.permute.xlu0 %5500
    %5502 = vrot.lane.b32.xlu0 %v3918, 24
    %v5503 = vpop.permute.xlu0 %5502
    %5504 = vrot.lane.b32.xlu0 %v4071, 24
    %v5505 = vpop.permute.xlu0 %5504
    %5506 = vrot.lane.b32.xlu0 %v3921, 24
    %v5507 = vpop.permute.xlu0 %5506
    %5508 = vrot.lane.b32.xlu0 %v4072, 24
    %v5509 = vpop.permute.xlu0 %5508
    %5510 = vrot.lane.b32.xlu0 %v3924, 24
    %v5511 = vpop.permute.xlu0 %5510
    %5512 = vrot.lane.b32.xlu0 %v4073, 24
    %v5513 = vpop.permute.xlu0 %5512
    %5514 = vrot.lane.b32.xlu0 %v3927, 24
    %v5515 = vpop.permute.xlu0 %5514
    %5516 = vrot.lane.b32.xlu0 %v4074, 24
    %v5517 = vpop.permute.xlu0 %5516
    %5518 = vrot.lane.b32.xlu0 %v3930, 24
    %v5519 = vpop.permute.xlu0 %5518
    %5520 = vrot.lane.b32.xlu0 %v4075, 24
    %v5521 = vpop.permute.xlu0 %5520
    %5522 = vrot.lane.b32.xlu0 %v3933, 24
    %v5523 = vpop.permute.xlu0 %5522
    %5524 = vrot.lane.b32.xlu0 %v4076, 24
    %v5525 = vpop.permute.xlu0 %5524
    %5526 = vrot.lane.b32.xlu0 %v3936, 24
    %v5527 = vpop.permute.xlu0 %5526
    %5528 = vrot.lane.b32.xlu0 %v4077, 24
    %v5529 = vpop.permute.xlu0 %5528
    %5530 = vrot.lane.b32.xlu0 %v3939, 24
    %v5531 = vpop.permute.xlu0 %5530
    %5532 = vrot.lane.b32.xlu0 %v4078, 24
    %v5533 = vpop.permute.xlu0 %5532
    %5534 = vrot.lane.b32.xlu0 %v3942, 24
    %v5535 = vpop.permute.xlu0 %5534
    %5536 = vrot.lane.b32.xlu0 %v4079, 24
    %v5537 = vpop.permute.xlu0 %5536
    %5538 = vrot.lane.b32.xlu0 %v3945, 24
    %v5539 = vpop.permute.xlu0 %5538
    %5540 = vrot.lane.b32.xlu0 %v4080, 24
    %v5541 = vpop.permute.xlu0 %5540
    %5542 = vrot.lane.b32.xlu0 %v3948, 24
    %v5543 = vpop.permute.xlu0 %5542
    %5544 = vrot.lane.b32.xlu0 %v4081, 24
    %v5545 = vpop.permute.xlu0 %5544
    %5546 = vrot.lane.b32.xlu0 %v3951, 24
    %v5547 = vpop.permute.xlu0 %5546
    %5548 = vrot.lane.b32.xlu0 %v4082, 24
    %v5549 = vpop.permute.xlu0 %5548
    %5550 = vrot.lane.b32.xlu0 %v3954, 24
    %v5551 = vpop.permute.xlu0 %5550
    %5552 = vrot.lane.b32.xlu0 %v4083, 24
    %v5553 = vpop.permute.xlu0 %5552
    %5554 = vrot.lane.b32.xlu0 %v3957, 24
    %v5555 = vpop.permute.xlu0 %5554
    %5616 = vrot.lane.b32.xlu0 %v4183, 28
    %v5617 = vpop.permute.xlu0 %5616
    %5618 = vrot.lane.b32.xlu0 %v4185, 28
    %v5619 = vpop.permute.xlu0 %5618
    %5620 = vrot.lane.b32.xlu0 %v4188, 28
    %v5621 = vpop.permute.xlu0 %5620
    %5622 = vrot.lane.b32.xlu0 %v4190, 28
    %v5623 = vpop.permute.xlu0 %5622
    %5624 = vrot.lane.b32.xlu0 %v4193, 28
    %v5625 = vpop.permute.xlu0 %5624
    %5626 = vrot.lane.b32.xlu0 %v4195, 28
    %v5627 = vpop.permute.xlu0 %5626
    %5628 = vrot.lane.b32.xlu0 %v4198, 28
    %v5629 = vpop.permute.xlu0 %5628
    %5630 = vrot.lane.b32.xlu0 %v4200, 28
    %v5631 = vpop.permute.xlu0 %5630
    %5632 = vrot.lane.b32.xlu0 %v4203, 28
    %v5633 = vpop.permute.xlu0 %5632
    %5634 = vrot.lane.b32.xlu0 %v4205, 28
    %v5635 = vpop.permute.xlu0 %5634
    %5636 = vrot.lane.b32.xlu0 %v4208, 28
    %v5637 = vpop.permute.xlu0 %5636
    %5638 = vrot.lane.b32.xlu0 %v4210, 28
    %v5639 = vpop.permute.xlu0 %5638
    %5640 = vrot.lane.b32.xlu0 %v4213, 28
    %v5641 = vpop.permute.xlu0 %5640
    %5642 = vrot.lane.b32.xlu0 %v4215, 28
    %v5643 = vpop.permute.xlu0 %5642
    %5644 = vrot.lane.b32.xlu0 %v4218, 28
    %v5645 = vpop.permute.xlu0 %5644
    %5646 = vrot.lane.b32.xlu0 %v4220, 28
    %v5647 = vpop.permute.xlu0 %5646
    %5648 = vrot.lane.b32.xlu0 %v4223, 28
    %v5649 = vpop.permute.xlu0 %5648
    %5650 = vrot.lane.b32.xlu0 %v4225, 28
    %v5651 = vpop.permute.xlu0 %5650
    %5652 = vrot.lane.b32.xlu0 %v4228, 28
    %v5653 = vpop.permute.xlu0 %5652
    %5654 = vrot.lane.b32.xlu0 %v4230, 28
    %v5655 = vpop.permute.xlu0 %5654
    %5656 = vrot.lane.b32.xlu0 %v4233, 28
    %v5657 = vpop.permute.xlu0 %5656
    %5658 = vrot.lane.b32.xlu0 %v4235, 28
    %v5659 = vpop.permute.xlu0 %5658
    %5660 = vrot.lane.b32.xlu0 %v4238, 28
    %v5661 = vpop.permute.xlu0 %5660
    %5662 = vrot.lane.b32.xlu0 %v4240, 28
    %v5663 = vpop.permute.xlu0 %5662
    %5664 = vrot.lane.b32.xlu0 %v4243, 28
    %v5665 = vpop.permute.xlu0 %5664
    %5666 = vrot.lane.b32.xlu0 %v4245, 28
    %v5667 = vpop.permute.xlu0 %5666
    %5668 = vrot.lane.b32.xlu0 %v4248, 28
    %v5669 = vpop.permute.xlu0 %5668
    %5670 = vrot.lane.b32.xlu0 %v4250, 28
    %v5671 = vpop.permute.xlu0 %5670
    %5672 = vrot.lane.b32.xlu0 %v5034, 28
    %v5673 = vpop.permute.xlu0 %5672
    %5674 = vrot.lane.b32.xlu0 %v5036, 28
    %v5675 = vpop.permute.xlu0 %5674
    %5676 = vrot.lane.b32.xlu0 %v4258, 28
    %v5677 = vpop.permute.xlu0 %5676
    %5678 = vrot.lane.b32.xlu0 %v4260, 28
    %v5679 = vpop.permute.xlu0 %5678
    %5680 = vrot.lane.b32.xlu0 %v4263, 28
    %v5681 = vpop.permute.xlu0 %5680
    %5682 = vrot.lane.b32.xlu0 %v4265, 28
    %v5683 = vpop.permute.xlu0 %5682
    %5684 = vrot.lane.b32.xlu0 %v4268, 28
    %v5685 = vpop.permute.xlu0 %5684
    %5686 = vrot.lane.b32.xlu0 %v4270, 28
    %v5687 = vpop.permute.xlu0 %5686
    %5688 = vrot.lane.b32.xlu0 %v4273, 28
    %v5689 = vpop.permute.xlu0 %5688
    %5690 = vrot.lane.b32.xlu0 %v4275, 28
    %v5691 = vpop.permute.xlu0 %5690
    %5692 = vrot.lane.b32.xlu0 %v4278, 28
    %v5693 = vpop.permute.xlu0 %5692
    %5694 = vrot.lane.b32.xlu0 %v4280, 28
    %v5695 = vpop.permute.xlu0 %5694
    %5696 = vrot.lane.b32.xlu0 %v4283, 28
    %v5697 = vpop.permute.xlu0 %5696
    %5698 = vrot.lane.b32.xlu0 %v4285, 28
    %v5699 = vpop.permute.xlu0 %5698
    %5700 = vrot.lane.b32.xlu0 %v4288, 28
    %v5701 = vpop.permute.xlu0 %5700
    %5702 = vrot.lane.b32.xlu0 %v4290, 28
    %v5703 = vpop.permute.xlu0 %5702
    %5704 = vrot.lane.b32.xlu0 %v4293, 28
    %v5705 = vpop.permute.xlu0 %5704
    %5706 = vrot.lane.b32.xlu0 %v4295, 28
    %v5707 = vpop.permute.xlu0 %5706
    %5708 = vrot.lane.b32.xlu0 %v4298, 28
    %v5709 = vpop.permute.xlu0 %5708
    %5710 = vrot.lane.b32.xlu0 %v4300, 28
    %v5711 = vpop.permute.xlu0 %5710
    %5712 = vrot.lane.b32.xlu0 %v4303, 28
    %v5713 = vpop.permute.xlu0 %5712
    %5714 = vrot.lane.b32.xlu0 %v4305, 28
    %v5715 = vpop.permute.xlu0 %5714
    %5716 = vrot.lane.b32.xlu0 %v4308, 28
    %v5717 = vpop.permute.xlu0 %5716
    %5718 = vrot.lane.b32.xlu0 %v4310, 28
    %v5719 = vpop.permute.xlu0 %5718
    %5720 = vrot.lane.b32.xlu0 %v4313, 28
    %v5721 = vpop.permute.xlu0 %5720
    %5722 = vrot.lane.b32.xlu0 %v4315, 28
    %v5723 = vpop.permute.xlu0 %5722
    %5724 = vrot.lane.b32.xlu0 %v4318, 28
    %v5725 = vpop.permute.xlu0 %5724
    %5726 = vrot.lane.b32.xlu0 %v4320, 28
    %v5727 = vpop.permute.xlu0 %5726
    %5728 = vrot.lane.b32.xlu0 %v4323, 28
    %v5729 = vpop.permute.xlu0 %5728
    %5730 = vrot.lane.b32.xlu0 %v4325, 28
    %v5731 = vpop.permute.xlu0 %5730
    %5732 = vrot.lane.b32.xlu0 %v5039, 28
    %v5733 = vpop.permute.xlu0 %5732
    %5734 = vrot.lane.b32.xlu0 %v5041, 28
    %v5735 = vpop.permute.xlu0 %5734
    %5796 = vrot.lane.b32.xlu0 %v4513, 32
    %v5797 = vpop.permute.xlu0 %5796
    %5798 = vrot.lane.b32.xlu0 %v4515, 32
    %v5799 = vpop.permute.xlu0 %5798
    %5800 = vrot.lane.b32.xlu0 %v4518, 32
    %v5801 = vpop.permute.xlu0 %5800
    %5802 = vrot.lane.b32.xlu0 %v4520, 32
    %v5803 = vpop.permute.xlu0 %5802
    %5804 = vrot.lane.b32.xlu0 %v4523, 32
    %v5805 = vpop.permute.xlu0 %5804
    %5806 = vrot.lane.b32.xlu0 %v4525, 32
    %v5807 = vpop.permute.xlu0 %5806
    %5808 = vrot.lane.b32.xlu0 %v4528, 32
    %v5809 = vpop.permute.xlu0 %5808
    %5810 = vrot.lane.b32.xlu0 %v4530, 32
    %v5811 = vpop.permute.xlu0 %5810
    %5812 = vrot.lane.b32.xlu0 %v4533, 32
    %v5813 = vpop.permute.xlu0 %5812
    %5814 = vrot.lane.b32.xlu0 %v4535, 32
    %v5815 = vpop.permute.xlu0 %5814
    %5816 = vrot.lane.b32.xlu0 %v4538, 32
    %v5817 = vpop.permute.xlu0 %5816
    %5818 = vrot.lane.b32.xlu0 %v4540, 32
    %v5819 = vpop.permute.xlu0 %5818
    %5820 = vrot.lane.b32.xlu0 %v4543, 32
    %v5821 = vpop.permute.xlu0 %5820
    %5822 = vrot.lane.b32.xlu0 %v4545, 32
    %v5823 = vpop.permute.xlu0 %5822
    %5824 = vrot.lane.b32.xlu0 %v4548, 32
    %v5825 = vpop.permute.xlu0 %5824
    %5826 = vrot.lane.b32.xlu0 %v4550, 32
    %v5827 = vpop.permute.xlu0 %5826
    %5828 = vrot.lane.b32.xlu0 %v4553, 32
    %v5829 = vpop.permute.xlu0 %5828
    %5830 = vrot.lane.b32.xlu0 %v4555, 32
    %v5831 = vpop.permute.xlu0 %5830
    %5832 = vrot.lane.b32.xlu0 %v4558, 32
    %v5833 = vpop.permute.xlu0 %5832
    %5834 = vrot.lane.b32.xlu0 %v4560, 32
    %v5835 = vpop.permute.xlu0 %5834
    %5836 = vrot.lane.b32.xlu0 %v4563, 32
    %v5837 = vpop.permute.xlu0 %5836
    %5838 = vrot.lane.b32.xlu0 %v4565, 32
    %v5839 = vpop.permute.xlu0 %5838
    %5840 = vrot.lane.b32.xlu0 %v4568, 32
    %v5841 = vpop.permute.xlu0 %5840
    %5842 = vrot.lane.b32.xlu0 %v4570, 32
    %v5843 = vpop.permute.xlu0 %5842
    %5844 = vrot.lane.b32.xlu0 %v4573, 32
    %v5845 = vpop.permute.xlu0 %5844
    %5846 = vrot.lane.b32.xlu0 %v4575, 32
    %v5847 = vpop.permute.xlu0 %5846
    %5848 = vrot.lane.b32.xlu0 %v4578, 32
    %v5849 = vpop.permute.xlu0 %5848
    %5850 = vrot.lane.b32.xlu0 %v4580, 32
    %v5851 = vpop.permute.xlu0 %5850
    %5852 = vrot.lane.b32.xlu0 %v5236, 32
    %v5853 = vpop.permute.xlu0 %5852
    %5854 = vrot.lane.b32.xlu0 %v5238, 32
    %v5855 = vpop.permute.xlu0 %5854
    %5856 = vrot.lane.b32.xlu0 %v4588, 32
    %v5857 = vpop.permute.xlu0 %5856
    %5858 = vrot.lane.b32.xlu0 %v4590, 32
    %v5859 = vpop.permute.xlu0 %5858
    %5860 = vrot.lane.b32.xlu0 %v4593, 32
    %v5861 = vpop.permute.xlu0 %5860
    %5862 = vrot.lane.b32.xlu0 %v4595, 32
    %v5863 = vpop.permute.xlu0 %5862
    %5864 = vrot.lane.b32.xlu0 %v4598, 32
    %v5865 = vpop.permute.xlu0 %5864
    %5866 = vrot.lane.b32.xlu0 %v4600, 32
    %v5867 = vpop.permute.xlu0 %5866
    %5868 = vrot.lane.b32.xlu0 %v4603, 32
    %v5869 = vpop.permute.xlu0 %5868
    %5870 = vrot.lane.b32.xlu0 %v4605, 32
    %v5871 = vpop.permute.xlu0 %5870
    %5872 = vrot.lane.b32.xlu0 %v4608, 32
    %v5873 = vpop.permute.xlu0 %5872
    %5874 = vrot.lane.b32.xlu0 %v4610, 32
    %v5875 = vpop.permute.xlu0 %5874
    %5876 = vrot.lane.b32.xlu0 %v4613, 32
    %v5877 = vpop.permute.xlu0 %5876
    %5878 = vrot.lane.b32.xlu0 %v4615, 32
    %v5879 = vpop.permute.xlu0 %5878
    %5880 = vrot.lane.b32.xlu0 %v4618, 32
    %v5881 = vpop.permute.xlu0 %5880
    %5882 = vrot.lane.b32.xlu0 %v4620, 32
    %v5883 = vpop.permute.xlu0 %5882
    %5884 = vrot.lane.b32.xlu0 %v4623, 32
    %v5885 = vpop.permute.xlu0 %5884
    %5886 = vrot.lane.b32.xlu0 %v4625, 32
    %v5887 = vpop.permute.xlu0 %5886
    %5888 = vrot.lane.b32.xlu0 %v4628, 32
    %v5889 = vpop.permute.xlu0 %5888
    %5890 = vrot.lane.b32.xlu0 %v4630, 32
    %v5891 = vpop.permute.xlu0 %5890
    %5892 = vrot.lane.b32.xlu0 %v4633, 32
    %v5893 = vpop.permute.xlu0 %5892
    %5894 = vrot.lane.b32.xlu0 %v4635, 32
    %v5895 = vpop.permute.xlu0 %5894
    %5896 = vrot.lane.b32.xlu0 %v4638, 32
    %v5897 = vpop.permute.xlu0 %5896
    %5898 = vrot.lane.b32.xlu0 %v4640, 32
    %v5899 = vpop.permute.xlu0 %5898
    %5900 = vrot.lane.b32.xlu0 %v4643, 32
    %v5901 = vpop.permute.xlu0 %5900
    %5902 = vrot.lane.b32.xlu0 %v4645, 32
    %v5903 = vpop.permute.xlu0 %5902
    %5904 = vrot.lane.b32.xlu0 %v4648, 32
    %v5905 = vpop.permute.xlu0 %5904
    %5906 = vrot.lane.b32.xlu0 %v4650, 32
    %v5907 = vpop.permute.xlu0 %5906
    %5908 = vrot.lane.b32.xlu0 %v4653, 32
    %v5909 = vpop.permute.xlu0 %5908
    %5910 = vrot.lane.b32.xlu0 %v4655, 32
    %v5911 = vpop.permute.xlu0 %5910
    %5912 = vrot.lane.b32.xlu0 %v5241, 32
    %v5913 = vpop.permute.xlu0 %5912
    %5914 = vrot.lane.b32.xlu0 %v5243, 32
    %v5915 = vpop.permute.xlu0 %5914
    %v5976 = vsel %vm2293, %v4052, %v4327
    %v5977 = vsel %vm2293, %v3864, %v4329
    %v5978 = vsel %vm2293, %v4053, %v4331
    %v5979 = vsel %vm2293, %v3867, %v4333
    %v5980 = vsel %vm2293, %v4054, %v4335
    %v5981 = vsel %vm2293, %v3870, %v4337
    %v5982 = vsel %vm2293, %v4055, %v4339
    %v5983 = vsel %vm2293, %v3873, %v4341
    %v5984 = vsel %vm2293, %v4056, %v4343
    %v5985 = vsel %vm2293, %v3876, %v4345
    %v5986 = vsel %vm2293, %v4057, %v4347
    %v5987 = vsel %vm2293, %v3879, %v4349
    %v5988 = vsel %vm2293, %v4058, %v4351
    %v5989 = vsel %vm2293, %v3882, %v4353
    %v5990 = vsel %vm2293, %v4059, %v4355
    %v5991 = vsel %vm2293, %v3885, %v4357
    %v5992 = vsel %vm2293, %v4060, %v4359
    %v5993 = vsel %vm2293, %v3888, %v4361
    %v5994 = vsel %vm2293, %v4061, %v4363
    %v5995 = vsel %vm2293, %v3891, %v4365
    %v5996 = vsel %vm2293, %v4062, %v4367
    %v5997 = vsel %vm2293, %v3894, %v4369
    %v5998 = vsel %vm2293, %v4063, %v4371
    %v5999 = vsel %vm2293, %v3897, %v4373
    %v6000 = vsel %vm2293, %v4064, %v4375
    %v6001 = vsel %vm2293, %v3900, %v4377
    %v6002 = vsel %vm2293, %v4065, %v4379
    %v6003 = vsel %vm2293, %v3903, %v4381
    %v6004 = vsel %vm2293, %v4066, %v4383
    %v6005 = vsel %vm2293, %v3906, %v4385
    %v6006 = vsel %vm2293, %v4068, %v4387
    %v6007 = vsel %vm2293, %v3912, %v4389
    %v6008 = vsel %vm2293, %v4069, %v4391
    %v6009 = vsel %vm2293, %v3915, %v4393
    %v6010 = vsel %vm2293, %v4070, %v4395
    %v6011 = vsel %vm2293, %v3918, %v4397
    %v6012 = vsel %vm2293, %v4071, %v4399
    %v6013 = vsel %vm2293, %v3921, %v4401
    %v6014 = vsel %vm2293, %v4072, %v4403
    %v6015 = vsel %vm2293, %v3924, %v4405
    %v6016 = vsel %vm2293, %v4073, %v4407
    %v6017 = vsel %vm2293, %v3927, %v4409
    %v6018 = vsel %vm2293, %v4074, %v4411
    %v6019 = vsel %vm2293, %v3930, %v4413
    %v6020 = vsel %vm2293, %v4075, %v4415
    %v6021 = vsel %vm2293, %v3933, %v4417
    %v6022 = vsel %vm2293, %v4076, %v4419
    %v6023 = vsel %vm2293, %v3936, %v4421
    %v6024 = vsel %vm2293, %v4077, %v4423
    %v6025 = vsel %vm2293, %v3939, %v4425
    %v6026 = vsel %vm2293, %v4078, %v4427
    %v6027 = vsel %vm2293, %v3942, %v4429
    %v6028 = vsel %vm2293, %v4079, %v4431
    %v6029 = vsel %vm2293, %v3945, %v4433
    %v6030 = vsel %vm2293, %v4080, %v4435
    %v6031 = vsel %vm2293, %v3948, %v4437
    %v6032 = vsel %vm2293, %v4081, %v4439
    %v6033 = vsel %vm2293, %v3951, %v4441
    %v6034 = vsel %vm2293, %v4082, %v4443
    %v6035 = vsel %vm2293, %v3954, %v4445
    %v6036 = vsel %vm2355, %v5976, %v4657
    %v6037 = vsel %vm2355, %v5977, %v4659
    %v6038 = vsel %vm2355, %v5978, %v4661
    %v6039 = vsel %vm2355, %v5979, %v4663
    %v6040 = vsel %vm2355, %v5980, %v4665
    %v6041 = vsel %vm2355, %v5981, %v4667
    %v6042 = vsel %vm2355, %v5982, %v4669
    %v6043 = vsel %vm2355, %v5983, %v4671
    %v6044 = vsel %vm2355, %v5984, %v4673
    %v6045 = vsel %vm2355, %v5985, %v4675
    %v6046 = vsel %vm2355, %v5986, %v4677
    %v6047 = vsel %vm2355, %v5987, %v4679
    %v6048 = vsel %vm2355, %v5988, %v4681
    %v6049 = vsel %vm2355, %v5989, %v4683
    %v6050 = vsel %vm2355, %v5990, %v4685
    %v6051 = vsel %vm2355, %v5991, %v4687
    %v6052 = vsel %vm2355, %v5992, %v4689
    %v6053 = vsel %vm2355, %v5993, %v4691
    %v6054 = vsel %vm2355, %v5994, %v4693
    %v6055 = vsel %vm2355, %v5995, %v4695
    %v6056 = vsel %vm2355, %v5996, %v4697
    %v6057 = vsel %vm2355, %v5997, %v4699
    %v6058 = vsel %vm2355, %v5998, %v4701
    %v6059 = vsel %vm2355, %v5999, %v4703
    %v6060 = vsel %vm2355, %v6000, %v4705
    %v6061 = vsel %vm2355, %v6001, %v4707
    %v6062 = vsel %vm2355, %v6002, %v4709
    %v6063 = vsel %vm2355, %v6003, %v4711
    %v6064 = vsel %vm2355, %v6004, %v4713
    %v6065 = vsel %vm2355, %v6005, %v4715
    %v6066 = vsel %vm2355, %v6006, %v4717
    %v6067 = vsel %vm2355, %v6007, %v4719
    %v6068 = vsel %vm2355, %v6008, %v4721
    %v6069 = vsel %vm2355, %v6009, %v4723
    %v6070 = vsel %vm2355, %v6010, %v4725
    %v6071 = vsel %vm2355, %v6011, %v4727
    %v6072 = vsel %vm2355, %v6012, %v4729
    %v6073 = vsel %vm2355, %v6013, %v4731
    %v6074 = vsel %vm2355, %v6014, %v4733
    %v6075 = vsel %vm2355, %v6015, %v4735
    %v6076 = vsel %vm2355, %v6016, %v4737
    %v6077 = vsel %vm2355, %v6017, %v4739
    %v6078 = vsel %vm2355, %v6018, %v4741
    %v6079 = vsel %vm2355, %v6019, %v4743
    %v6080 = vsel %vm2355, %v6020, %v4745
    %v6081 = vsel %vm2355, %v6021, %v4747
    %v6082 = vsel %vm2355, %v6022, %v4749
    %v6083 = vsel %vm2355, %v6023, %v4751
    %v6084 = vsel %vm2355, %v6024, %v4753
    %v6085 = vsel %vm2355, %v6025, %v4755
    %v6086 = vsel %vm2355, %v6026, %v4757
    %v6087 = vsel %vm2355, %v6027, %v4759
    %v6088 = vsel %vm2355, %v6028, %v4761
    %v6089 = vsel %vm2355, %v6029, %v4763
    %v6090 = vsel %vm2355, %v6030, %v4765
    %v6091 = vsel %vm2355, %v6031, %v4767
    %v6092 = vsel %vm2355, %v6032, %v4769
    %v6093 = vsel %vm2355, %v6033, %v4771
    %v6094 = vsel %vm2355, %v6034, %v4773
    %v6095 = vsel %vm2355, %v6035, %v4775
    %v6096 = vsel %vm2417, %v2356, %v4839
    %v6097 = vsel %vm2417, %v2356, %v4841
    %v6098 = vsel %vm2417, %v6036, %v4843
    %v6099 = vsel %vm2417, %v6037, %v4845
    %v6100 = vsel %vm2417, %v6038, %v4847
    %v6101 = vsel %vm2417, %v6039, %v4849
    %v6102 = vsel %vm2417, %v6040, %v4851
    %v6103 = vsel %vm2417, %v6041, %v4853
    %v6104 = vsel %vm2417, %v6042, %v4855
    %v6105 = vsel %vm2417, %v6043, %v4857
    %v6106 = vsel %vm2417, %v6044, %v4859
    %v6107 = vsel %vm2417, %v6045, %v4861
    %v6108 = vsel %vm2417, %v6046, %v4863
    %v6109 = vsel %vm2417, %v6047, %v4865
    %v6110 = vsel %vm2417, %v6048, %v4867
    %v6111 = vsel %vm2417, %v6049, %v4869
    %v6112 = vsel %vm2417, %v6050, %v4871
    %v6113 = vsel %vm2417, %v6051, %v4873
    %v6114 = vsel %vm2417, %v6052, %v4875
    %v6115 = vsel %vm2417, %v6053, %v4877
    %v6116 = vsel %vm2417, %v6054, %v4879
    %v6117 = vsel %vm2417, %v6055, %v4881
    %v6118 = vsel %vm2417, %v6056, %v4883
    %v6119 = vsel %vm2417, %v6057, %v4885
    %v6120 = vsel %vm2417, %v6058, %v4887
    %v6121 = vsel %vm2417, %v6059, %v4889
    %v6122 = vsel %vm2417, %v6060, %v4891
    %v6123 = vsel %vm2417, %v6061, %v4893
    %v6124 = vsel %vm2417, %v6062, %v4895
    %v6125 = vsel %vm2417, %v6063, %v4897
    %v6126 = vsel %vm2417, %v6064, %v4899
    %v6127 = vsel %vm2417, %v6065, %v4901
    %v6128 = vsel %vm2417, %v2356, %v4903
    %v6129 = vsel %vm2417, %v2356, %v4905
    %v6130 = vsel %vm2417, %v6066, %v4907
    %v6131 = vsel %vm2417, %v6067, %v4909
    %v6132 = vsel %vm2417, %v6068, %v4911
    %v6133 = vsel %vm2417, %v6069, %v4913
    %v6134 = vsel %vm2417, %v6070, %v4915
    %v6135 = vsel %vm2417, %v6071, %v4917
    %v6136 = vsel %vm2417, %v6072, %v4919
    %v6137 = vsel %vm2417, %v6073, %v4921
    %v6138 = vsel %vm2417, %v6074, %v4923
    %v6139 = vsel %vm2417, %v6075, %v4925
    %v6140 = vsel %vm2417, %v6076, %v4927
    %v6141 = vsel %vm2417, %v6077, %v4929
    %v6142 = vsel %vm2417, %v6078, %v4931
    %v6143 = vsel %vm2417, %v6079, %v4933
    %v6144 = vsel %vm2417, %v6080, %v4935
    %v6145 = vsel %vm2417, %v6081, %v4937
    %v6146 = vsel %vm2417, %v6082, %v4939
    %v6147 = vsel %vm2417, %v6083, %v4941
    %v6148 = vsel %vm2417, %v6084, %v4943
    %v6149 = vsel %vm2417, %v6085, %v4945
    %v6150 = vsel %vm2417, %v6086, %v4947
    %v6151 = vsel %vm2417, %v6087, %v4949
    %v6152 = vsel %vm2417, %v6088, %v4951
    %v6153 = vsel %vm2417, %v6089, %v4953
    %v6154 = vsel %vm2417, %v6090, %v4955
    %v6155 = vsel %vm2417, %v6091, %v4957
    %v6156 = vsel %vm2417, %v6092, %v4959
    %v6157 = vsel %vm2417, %v6093, %v4961
    %v6158 = vsel %vm2417, %v6094, %v4963
    %v6159 = vsel %vm2417, %v6095, %v4965
    %v6160 = vsel %vm2482, %v6096, %v5043
    %v6161 = vsel %vm2482, %v6097, %v5045
    %v6162 = vsel %vm2482, %v6098, %v5047
    %v6163 = vsel %vm2482, %v6099, %v5049
    %v6164 = vsel %vm2482, %v6100, %v5051
    %v6165 = vsel %vm2482, %v6101, %v5053
    %v6166 = vsel %vm2482, %v6102, %v5055
    %v6167 = vsel %vm2482, %v6103, %v5057
    %v6168 = vsel %vm2482, %v6104, %v5059
    %v6169 = vsel %vm2482, %v6105, %v5061
    %v6170 = vsel %vm2482, %v6106, %v5063
    %v6171 = vsel %vm2482, %v6107, %v5065
    %v6172 = vsel %vm2482, %v6108, %v5067
    %v6173 = vsel %vm2482, %v6109, %v5069
    %v6174 = vsel %vm2482, %v6110, %v5071
    %v6175 = vsel %vm2482, %v6111, %v5073
    %v6176 = vsel %vm2482, %v6112, %v5075
    %v6177 = vsel %vm2482, %v6113, %v5077
    %v6178 = vsel %vm2482, %v6114, %v5079
    %v6179 = vsel %vm2482, %v6115, %v5081
    %v6180 = vsel %vm2482, %v6116, %v5083
    %v6181 = vsel %vm2482, %v6117, %v5085
    %v6182 = vsel %vm2482, %v6118, %v5087
    %v6183 = vsel %vm2482, %v6119, %v5089
    %v6184 = vsel %vm2482, %v6120, %v5091
    %v6185 = vsel %vm2482, %v6121, %v5093
    %v6186 = vsel %vm2482, %v6122, %v5095
    %v6187 = vsel %vm2482, %v6123, %v5097
    %v6188 = vsel %vm2482, %v6124, %v5099
    %v6189 = vsel %vm2482, %v6125, %v5101
    %v6190 = vsel %vm2482, %v6126, %v5103
    %v6191 = vsel %vm2482, %v6127, %v5105
    %v6192 = vsel %vm2482, %v6128, %v5107
    %v6193 = vsel %vm2482, %v6129, %v5109
    %v6194 = vsel %vm2482, %v6130, %v5111
    %v6195 = vsel %vm2482, %v6131, %v5113
    %v6196 = vsel %vm2482, %v6132, %v5115
    %v6197 = vsel %vm2482, %v6133, %v5117
    %v6198 = vsel %vm2482, %v6134, %v5119
    %v6199 = vsel %vm2482, %v6135, %v5121
    %v6200 = vsel %vm2482, %v6136, %v5123
    %v6201 = vsel %vm2482, %v6137, %v5125
    %v6202 = vsel %vm2482, %v6138, %v5127
    %v6203 = vsel %vm2482, %v6139, %v5129
    %v6204 = vsel %vm2482, %v6140, %v5131
    %v6205 = vsel %vm2482, %v6141, %v5133
    %v6206 = vsel %vm2482, %v6142, %v5135
    %v6207 = vsel %vm2482, %v6143, %v5137
    %v6208 = vsel %vm2482, %v6144, %v5139
    %v6209 = vsel %vm2482, %v6145, %v5141
    %v6210 = vsel %vm2482, %v6146, %v5143
    %v6211 = vsel %vm2482, %v6147, %v5145
    %v6212 = vsel %vm2482, %v6148, %v5147
    %v6213 = vsel %vm2482, %v6149, %v5149
    %v6214 = vsel %vm2482, %v6150, %v5151
    %v6215 = vsel %vm2482, %v6151, %v5153
    %v6216 = vsel %vm2482, %v6152, %v5155
    %v6217 = vsel %vm2482, %v6153, %v5157
    %v6218 = vsel %vm2482, %v6154, %v5159
    %v6219 = vsel %vm2482, %v6155, %v5161
    %v6220 = vsel %vm2482, %v6156, %v5163
    %v6221 = vsel %vm2482, %v6157, %v5165
    %v6222 = vsel %vm2482, %v6158, %v5167
    %v6223 = vsel %vm2482, %v6159, %v5169
    %v6224 = vsel %vm2547, %v6160, %v5245
    %v6225 = vsel %vm2547, %v6161, %v5247
    %v6226 = vsel %vm2547, %v6162, %v5249
    %v6227 = vsel %vm2547, %v6163, %v5251
    %v6228 = vsel %vm2547, %v6164, %v5253
    %v6229 = vsel %vm2547, %v6165, %v5255
    %v6230 = vsel %vm2547, %v6166, %v5257
    %v6231 = vsel %vm2547, %v6167, %v5259
    %v6232 = vsel %vm2547, %v6168, %v5261
    %v6233 = vsel %vm2547, %v6169, %v5263
    %v6234 = vsel %vm2547, %v6170, %v5265
    %v6235 = vsel %vm2547, %v6171, %v5267
    %v6236 = vsel %vm2547, %v6172, %v5269
    %v6237 = vsel %vm2547, %v6173, %v5271
    %v6238 = vsel %vm2547, %v6174, %v5273
    %v6239 = vsel %vm2547, %v6175, %v5275
    %v6240 = vsel %vm2547, %v6176, %v5277
    %v6241 = vsel %vm2547, %v6177, %v5279
    %v6242 = vsel %vm2547, %v6178, %v5281
    %v6243 = vsel %vm2547, %v6179, %v5283
    %v6244 = vsel %vm2547, %v6180, %v5285
    %v6245 = vsel %vm2547, %v6181, %v5287
    %v6246 = vsel %vm2547, %v6182, %v5289
    %v6247 = vsel %vm2547, %v6183, %v5291
    %v6248 = vsel %vm2547, %v6184, %v5293
    %v6249 = vsel %vm2547, %v6185, %v5295
    %v6250 = vsel %vm2547, %v6186, %v5297
    %v6251 = vsel %vm2547, %v6187, %v5299
    %v6252 = vsel %vm2547, %v6188, %v5301
    %v6253 = vsel %vm2547, %v6189, %v5303
    %v6254 = vsel %vm2547, %v6190, %v5305
    %v6255 = vsel %vm2547, %v6191, %v5307
    %v6256 = vsel %vm2547, %v6192, %v5309
    %v6257 = vsel %vm2547, %v6193, %v5311
    %v6258 = vsel %vm2547, %v6194, %v5313
    %v6259 = vsel %vm2547, %v6195, %v5315
    %v6260 = vsel %vm2547, %v6196, %v5317
    %v6261 = vsel %vm2547, %v6197, %v5319
    %v6262 = vsel %vm2547, %v6198, %v5321
    %v6263 = vsel %vm2547, %v6199, %v5323
    %v6264 = vsel %vm2547, %v6200, %v5325
    %v6265 = vsel %vm2547, %v6201, %v5327
    %v6266 = vsel %vm2547, %v6202, %v5329
    %v6267 = vsel %vm2547, %v6203, %v5331
    %v6268 = vsel %vm2547, %v6204, %v5333
    %v6269 = vsel %vm2547, %v6205, %v5335
    %v6270 = vsel %vm2547, %v6206, %v5337
    %v6271 = vsel %vm2547, %v6207, %v5339
    %v6272 = vsel %vm2547, %v6208, %v5341
    %v6273 = vsel %vm2547, %v6209, %v5343
    %v6274 = vsel %vm2547, %v6210, %v5345
    %v6275 = vsel %vm2547, %v6211, %v5347
    %v6276 = vsel %vm2547, %v6212, %v5349
    %v6277 = vsel %vm2547, %v6213, %v5351
    %v6278 = vsel %vm2547, %v6214, %v5353
    %v6279 = vsel %vm2547, %v6215, %v5355
    %v6280 = vsel %vm2547, %v6216, %v5357
    %v6281 = vsel %vm2547, %v6217, %v5359
    %v6282 = vsel %vm2547, %v6218, %v5361
    %v6283 = vsel %vm2547, %v6219, %v5363
    %v6284 = vsel %vm2547, %v6220, %v5365
    %v6285 = vsel %vm2547, %v6221, %v5367
    %v6286 = vsel %vm2547, %v6222, %v5369
    %v6287 = vsel %vm2547, %v6223, %v5371
    %v6288 = vsel %vm2612, %v6224, %v5437
    %v6289 = vsel %vm2612, %v6225, %v5439
    %v6290 = vsel %vm2612, %v6226, %v5441
    %v6291 = vsel %vm2612, %v6227, %v5443
    %v6292 = vsel %vm2612, %v6228, %v5445
    %v6293 = vsel %vm2612, %v6229, %v5447
    %v6294 = vsel %vm2612, %v6230, %v5449
    %v6295 = vsel %vm2612, %v6231, %v5451
    %v6296 = vsel %vm2612, %v6232, %v5453
    %v6297 = vsel %vm2612, %v6233, %v5455
    %v6298 = vsel %vm2612, %v6234, %v5457
    %v6299 = vsel %vm2612, %v6235, %v5459
    %v6300 = vsel %vm2612, %v6236, %v5461
    %v6301 = vsel %vm2612, %v6237, %v5463
    %v6302 = vsel %vm2612, %v6238, %v5465
    %v6303 = vsel %vm2612, %v6239, %v5467
    %v6304 = vsel %vm2612, %v6240, %v5469
    %v6305 = vsel %vm2612, %v6241, %v5471
    %v6306 = vsel %vm2612, %v6242, %v5473
    %v6307 = vsel %vm2612, %v6243, %v5475
    %v6308 = vsel %vm2612, %v6244, %v5477
    %v6309 = vsel %vm2612, %v6245, %v5479
    %v6310 = vsel %vm2612, %v6246, %v5481
    %v6311 = vsel %vm2612, %v6247, %v5483
    %v6312 = vsel %vm2612, %v6248, %v5485
    %v6313 = vsel %vm2612, %v6249, %v5487
    %v6314 = vsel %vm2612, %v6250, %v5489
    %v6315 = vsel %vm2612, %v6251, %v5491
    %v6316 = vsel %vm2612, %v6252, %v5493
    %v6317 = vsel %vm2612, %v6253, %v5495
    %v6318 = vsel %vm2612, %v6254, %v1805
    %v6319 = vsel %vm2612, %v6255, %v1805
    %v6320 = vsel %vm2612, %v6256, %v5497
    %v6321 = vsel %vm2612, %v6257, %v5499
    %v6322 = vsel %vm2612, %v6258, %v5501
    %v6323 = vsel %vm2612, %v6259, %v5503
    %v6324 = vsel %vm2612, %v6260, %v5505
    %v6325 = vsel %vm2612, %v6261, %v5507
    %v6326 = vsel %vm2612, %v6262, %v5509
    %v6327 = vsel %vm2612, %v6263, %v5511
    %v6328 = vsel %vm2612, %v6264, %v5513
    %v6329 = vsel %vm2612, %v6265, %v5515
    %v6330 = vsel %vm2612, %v6266, %v5517
    %v6331 = vsel %vm2612, %v6267, %v5519
    %v6332 = vsel %vm2612, %v6268, %v5521
    %v6333 = vsel %vm2612, %v6269, %v5523
    %v6334 = vsel %vm2612, %v6270, %v5525
    %v6335 = vsel %vm2612, %v6271, %v5527
    %v6336 = vsel %vm2612, %v6272, %v5529
    %v6337 = vsel %vm2612, %v6273, %v5531
    %v6338 = vsel %vm2612, %v6274, %v5533
    %v6339 = vsel %vm2612, %v6275, %v5535
    %v6340 = vsel %vm2612, %v6276, %v5537
    %v6341 = vsel %vm2612, %v6277, %v5539
    %v6342 = vsel %vm2612, %v6278, %v5541
    %v6343 = vsel %vm2612, %v6279, %v5543
    %v6344 = vsel %vm2612, %v6280, %v5545
    %v6345 = vsel %vm2612, %v6281, %v5547
    %v6346 = vsel %vm2612, %v6282, %v5549
    %v6347 = vsel %vm2612, %v6283, %v5551
    %v6348 = vsel %vm2612, %v6284, %v5553
    %v6349 = vsel %vm2612, %v6285, %v5555
    %v6350 = vsel %vm2612, %v6286, %v1805
    %v6351 = vsel %vm2612, %v6287, %v1805
    %v6352 = vsel %vm2677, %v6288, %v5617
    %v6353 = vsel %vm2677, %v6289, %v5619
    %v6354 = vsel %vm2677, %v6290, %v5621
    %v6355 = vsel %vm2677, %v6291, %v5623
    %v6356 = vsel %vm2677, %v6292, %v5625
    %v6357 = vsel %vm2677, %v6293, %v5627
    %v6358 = vsel %vm2677, %v6294, %v5629
    %v6359 = vsel %vm2677, %v6295, %v5631
    %v6360 = vsel %vm2677, %v6296, %v5633
    %v6361 = vsel %vm2677, %v6297, %v5635
    %v6362 = vsel %vm2677, %v6298, %v5637
    %v6363 = vsel %vm2677, %v6299, %v5639
    %v6364 = vsel %vm2677, %v6300, %v5641
    %v6365 = vsel %vm2677, %v6301, %v5643
    %v6366 = vsel %vm2677, %v6302, %v5645
    %v6367 = vsel %vm2677, %v6303, %v5647
    %v6368 = vsel %vm2677, %v6304, %v5649
    %v6369 = vsel %vm2677, %v6305, %v5651
    %v6370 = vsel %vm2677, %v6306, %v5653
    %v6371 = vsel %vm2677, %v6307, %v5655
    %v6372 = vsel %vm2677, %v6308, %v5657
    %v6373 = vsel %vm2677, %v6309, %v5659
    %v6374 = vsel %vm2677, %v6310, %v5661
    %v6375 = vsel %vm2677, %v6311, %v5663
    %v6376 = vsel %vm2677, %v6312, %v5665
    %v6377 = vsel %vm2677, %v6313, %v5667
    %v6378 = vsel %vm2677, %v6314, %v5669
    %v6379 = vsel %vm2677, %v6315, %v5671
    %v6380 = vsel %vm2677, %v6316, %v5673
    %v6381 = vsel %vm2677, %v6317, %v5675
    %v6382 = vsel %vm2677, %v6318, %v1988
    %v6383 = vsel %vm2677, %v6319, %v1988
    %v6384 = vsel %vm2677, %v6320, %v5677
    %v6385 = vsel %vm2677, %v6321, %v5679
    %v6386 = vsel %vm2677, %v6322, %v5681
    %v6387 = vsel %vm2677, %v6323, %v5683
    %v6388 = vsel %vm2677, %v6324, %v5685
    %v6389 = vsel %vm2677, %v6325, %v5687
    %v6390 = vsel %vm2677, %v6326, %v5689
    %v6391 = vsel %vm2677, %v6327, %v5691
    %v6392 = vsel %vm2677, %v6328, %v5693
    %v6393 = vsel %vm2677, %v6329, %v5695
    %v6394 = vsel %vm2677, %v6330, %v5697
    %v6395 = vsel %vm2677, %v6331, %v5699
    %v6396 = vsel %vm2677, %v6332, %v5701
    %v6397 = vsel %vm2677, %v6333, %v5703
    %v6398 = vsel %vm2677, %v6334, %v5705
    %v6399 = vsel %vm2677, %v6335, %v5707
    %v6400 = vsel %vm2677, %v6336, %v5709
    %v6401 = vsel %vm2677, %v6337, %v5711
    %v6402 = vsel %vm2677, %v6338, %v5713
    %v6403 = vsel %vm2677, %v6339, %v5715
    %v6404 = vsel %vm2677, %v6340, %v5717
    %v6405 = vsel %vm2677, %v6341, %v5719
    %v6406 = vsel %vm2677, %v6342, %v5721
    %v6407 = vsel %vm2677, %v6343, %v5723
    %v6408 = vsel %vm2677, %v6344, %v5725
    %v6409 = vsel %vm2677, %v6345, %v5727
    %v6410 = vsel %vm2677, %v6346, %v5729
    %v6411 = vsel %vm2677, %v6347, %v5731
    %v6412 = vsel %vm2677, %v6348, %v5733
    %v6413 = vsel %vm2677, %v6349, %v5735
    %v6414 = vsel %vm2677, %v6350, %v1988
    %v6415 = vsel %vm2677, %v6351, %v1988
    %v6416 = vsel %vm2742, %v6352, %v5797
    %v6417 = vsel %vm2742, %v6353, %v5799
    %v6418 = vsel %vm2742, %v6354, %v5801
    %v6419 = vsel %vm2742, %v6355, %v5803
    %v6420 = vsel %vm2742, %v6356, %v5805
    %v6421 = vsel %vm2742, %v6357, %v5807
    %v6422 = vsel %vm2742, %v6358, %v5809
    %v6423 = vsel %vm2742, %v6359, %v5811
    %v6424 = vsel %vm2742, %v6360, %v5813
    %v6425 = vsel %vm2742, %v6361, %v5815
    %v6426 = vsel %vm2742, %v6362, %v5817
    %v6427 = vsel %vm2742, %v6363, %v5819
    %v6428 = vsel %vm2742, %v6364, %v5821
    %v6429 = vsel %vm2742, %v6365, %v5823
    %v6430 = vsel %vm2742, %v6366, %v5825
    %v6431 = vsel %vm2742, %v6367, %v5827
    %v6432 = vsel %vm2742, %v6368, %v5829
    %v6433 = vsel %vm2742, %v6369, %v5831
    %v6434 = vsel %vm2742, %v6370, %v5833
    %v6435 = vsel %vm2742, %v6371, %v5835
    %v6436 = vsel %vm2742, %v6372, %v5837
    %v6437 = vsel %vm2742, %v6373, %v5839
    %v6438 = vsel %vm2742, %v6374, %v5841
    %v6439 = vsel %vm2742, %v6375, %v5843
    %v6440 = vsel %vm2742, %v6376, %v5845
    %v6441 = vsel %vm2742, %v6377, %v5847
    %v6442 = vsel %vm2742, %v6378, %v5849
    %v6443 = vsel %vm2742, %v6379, %v5851
    %v6444 = vsel %vm2742, %v6380, %v5853
    %v6445 = vsel %vm2742, %v6381, %v5855
    %v6446 = vsel %vm2742, %v6382, %v2171
    %v6447 = vsel %vm2742, %v6383, %v2171
    %v6448 = vsel %vm2742, %v6384, %v5857
    %v6449 = vsel %vm2742, %v6385, %v5859
    %v6450 = vsel %vm2742, %v6386, %v5861
    %v6451 = vsel %vm2742, %v6387, %v5863
    %v6452 = vsel %vm2742, %v6388, %v5865
    %v6453 = vsel %vm2742, %v6389, %v5867
    %v6454 = vsel %vm2742, %v6390, %v5869
    %v6455 = vsel %vm2742, %v6391, %v5871
    %v6456 = vsel %vm2742, %v6392, %v5873
    %v6457 = vsel %vm2742, %v6393, %v5875
    %v6458 = vsel %vm2742, %v6394, %v5877
    %v6459 = vsel %vm2742, %v6395, %v5879
    %v6460 = vsel %vm2742, %v6396, %v5881
    %v6461 = vsel %vm2742, %v6397, %v5883
    %v6462 = vsel %vm2742, %v6398, %v5885
    %v6463 = vsel %vm2742, %v6399, %v5887
    %v6464 = vsel %vm2742, %v6400, %v5889
    %v6465 = vsel %vm2742, %v6401, %v5891
    %v6466 = vsel %vm2742, %v6402, %v5893
    %v6467 = vsel %vm2742, %v6403, %v5895
    %v6468 = vsel %vm2742, %v6404, %v5897
    %v6469 = vsel %vm2742, %v6405, %v5899
    %v6470 = vsel %vm2742, %v6406, %v5901
    %v6471 = vsel %vm2742, %v6407, %v5903
    %v6472 = vsel %vm2742, %v6408, %v5905
    %v6473 = vsel %vm2742, %v6409, %v5907
    %v6474 = vsel %vm2742, %v6410, %v5909
    %v6475 = vsel %vm2742, %v6411, %v5911
    %v6476 = vsel %vm2742, %v6412, %v5913
    %v6477 = vsel %vm2742, %v6413, %v5915
    %v6478 = vsel %vm2742, %v6414, %v2171
    %v6479 = vsel %vm2742, %v6415, %v2171
    %v6480 = vsel %vm2807, %v6416, 0.0
    %v6481 = vsel %vm2807, %v6417, 0.0
    %v6482 = vsel %vm2807, %v6418, 0.0
    %v6483 = vsel %vm2807, %v6419, 0.0
    %v6484 = vsel %vm2807, %v6420, 0.0
    %v6485 = vsel %vm2807, %v6421, 0.0
    %v6486 = vsel %vm2807, %v6422, 0.0
    %v6487 = vsel %vm2807, %v6423, 0.0
    %v6488 = vsel %vm2807, %v6424, 0.0
    %v6489 = vsel %vm2807, %v6425, 0.0
    %v6490 = vsel %vm2807, %v6426, 0.0
    %v6491 = vsel %vm2807, %v6427, 0.0
    %v6492 = vsel %vm2807, %v6428, 0.0
    %v6493 = vsel %vm2807, %v6429, 0.0
    %v6494 = vsel %vm2807, %v6430, 0.0
    %v6495 = vsel %vm2807, %v6431, 0.0
    %v6496 = vsel %vm2807, %v6432, 0.0
    %v6497 = vsel %vm2807, %v6433, 0.0
    %v6498 = vsel %vm2807, %v6434, 0.0
    %v6499 = vsel %vm2807, %v6435, 0.0
    %v6500 = vsel %vm2807, %v6436, 0.0
    %v6501 = vsel %vm2807, %v6437, 0.0
    %v6502 = vsel %vm2807, %v6438, 0.0
    %v6503 = vsel %vm2807, %v6439, 0.0
    %v6504 = vsel %vm2807, %v6440, 0.0
    %v6505 = vsel %vm2807, %v6441, 0.0
    %v6506 = vsel %vm2807, %v6442, 0.0
    %v6507 = vsel %vm2807, %v6443, 0.0
    %v6508 = vsel %vm2807, %v6444, 0.0
    %v6509 = vsel %vm2807, %v6445, 0.0
    %v6510 = vsel %vm2807, %v6446, 0.0
    %v6511 = vsel %vm2807, %v6447, 0.0
    %v6512 = vsel %vm2807, %v6448, 0.0
    %v6513 = vsel %vm2807, %v6449, 0.0
    %v6514 = vsel %vm2807, %v6450, 0.0
    %v6515 = vsel %vm2807, %v6451, 0.0
    %v6516 = vsel %vm2807, %v6452, 0.0
    %v6517 = vsel %vm2807, %v6453, 0.0
    %v6518 = vsel %vm2807, %v6454, 0.0
    %v6519 = vsel %vm2807, %v6455, 0.0
    %v6520 = vsel %vm2807, %v6456, 0.0
    %v6521 = vsel %vm2807, %v6457, 0.0
    %v6522 = vsel %vm2807, %v6458, 0.0
    %v6523 = vsel %vm2807, %v6459, 0.0
    %v6524 = vsel %vm2807, %v6460, 0.0
    %v6525 = vsel %vm2807, %v6461, 0.0
    %v6526 = vsel %vm2807, %v6462, 0.0
    %v6527 = vsel %vm2807, %v6463, 0.0
    %v6528 = vsel %vm2807, %v6464, 0.0
    %v6529 = vsel %vm2807, %v6465, 0.0
    %v6530 = vsel %vm2807, %v6466, 0.0
    %v6531 = vsel %vm2807, %v6467, 0.0
    %v6532 = vsel %vm2807, %v6468, 0.0
    %v6533 = vsel %vm2807, %v6469, 0.0
    %v6534 = vsel %vm2807, %v6470, 0.0
    %v6535 = vsel %vm2807, %v6471, 0.0
    %v6536 = vsel %vm2807, %v6472, 0.0
    %v6537 = vsel %vm2807, %v6473, 0.0
    %v6538 = vsel %vm2807, %v6474, 0.0
    %v6539 = vsel %vm2807, %v6475, 0.0
    %v6540 = vsel %vm2807, %v6476, 0.0
    %v6541 = vsel %vm2807, %v6477, 0.0
    %v6542 = vsel %vm2807, %v6478, 0.0
    %v6543 = vsel %vm2807, %v6479, 0.0
    %v6544 = vpack.c.bf16 %v6481, %v6480
    %v6545 = vpack.c.bf16 %v6483, %v6482
    %v6546 = vpack.c.bf16 %v6485, %v6484
    %v6547 = vpack.c.bf16 %v6487, %v6486
    %v6548 = vpack.c.bf16 %v6489, %v6488
    %v6549 = vpack.c.bf16 %v6491, %v6490
    %v6550 = vpack.c.bf16 %v6493, %v6492
    %v6551 = vpack.c.bf16 %v6495, %v6494
    %v6552 = vpack.c.bf16 %v6497, %v6496
    %v6553 = vpack.c.bf16 %v6499, %v6498
    %v6554 = vpack.c.bf16 %v6501, %v6500
    %v6555 = vpack.c.bf16 %v6503, %v6502
    %v6556 = vpack.c.bf16 %v6505, %v6504
    %v6557 = vpack.c.bf16 %v6507, %v6506
    %v6558 = vpack.c.bf16 %v6509, %v6508
    %v6559 = vpack.c.bf16 %v6511, %v6510
    %v6560 = vpack.c.bf16 %v6513, %v6512
    %v6561 = vpack.c.bf16 %v6515, %v6514
    %v6562 = vpack.c.bf16 %v6517, %v6516
    %v6563 = vpack.c.bf16 %v6519, %v6518
    %v6564 = vpack.c.bf16 %v6521, %v6520
    %v6565 = vpack.c.bf16 %v6523, %v6522
    %v6566 = vpack.c.bf16 %v6525, %v6524
    %v6567 = vpack.c.bf16 %v6527, %v6526
    %v6568 = vpack.c.bf16 %v6529, %v6528
    %v6569 = vpack.c.bf16 %v6531, %v6530
    %v6570 = vpack.c.bf16 %v6533, %v6532
    %v6571 = vpack.c.bf16 %v6535, %v6534
    %v6572 = vpack.c.bf16 %v6537, %v6536
    %v6573 = vpack.c.bf16 %v6539, %v6538
    %v6574 = vpack.c.bf16 %v6541, %v6540
    %v6575 = vpack.c.bf16 %v6543, %v6542
    %v6576 = vld [vmem:[%s4] sm:$0xf]
    %v6577 = vld [vmem:[%s4 + $0x4] sm:$0xf]
    %v6578 = vld [vmem:[%s4 + $0x8] sm:$0xf]
    %v6579 = vld [vmem:[%s4 + $0xc] sm:$0xf]
    %v6580 = vld [vmem:[%s4 + $0x10] sm:$0xf]
    %v6581 = vld [vmem:[%s4 + $0x14] sm:$0xf]
    %v6582 = vld [vmem:[%s4 + $0x18] sm:$0xf]
    %v6583 = vld [vmem:[%s4 + $0x1c] sm:$0xf]
    %v6584 = vld [vmem:[%s4 + $0x20] sm:$0xf]
    %v6585 = vld [vmem:[%s4 + $0x24] sm:$0xf]
    %v6586 = vld [vmem:[%s4 + $0x28] sm:$0xf]
    %v6587 = vld [vmem:[%s4 + $0x2c] sm:$0xf]
    %v6588 = vld [vmem:[%s4 + $0x30] sm:$0xf]
    %v6589 = vld [vmem:[%s4 + $0x34] sm:$0xf]
    %v6590 = vld [vmem:[%s4 + $0x38] sm:$0xf]
    %v6591 = vld [vmem:[%s4 + $0x3c] sm:$0xf]
    %v6608 = vunpack.c.l.b16 %v6576
    %v6609 = vunpack.c.l.b16 %v6577
    %v6610 = vunpack.c.l.b16 %v6578
    %v6611 = vunpack.c.l.b16 %v6579
    %v6612 = vunpack.c.l.b16 %v6580
    %v6613 = vunpack.c.l.b16 %v6581
    %v6614 = vunpack.c.l.b16 %v6582
    %v6615 = vunpack.c.l.b16 %v6583
    %v6616 = vunpack.c.l.b16 %v6584
    %v6617 = vunpack.c.l.b16 %v6585
    %v6618 = vunpack.c.l.b16 %v6586
    %v6619 = vunpack.c.l.b16 %v6587
    %v6620 = vunpack.c.l.b16 %v6588
    %v6621 = vunpack.c.l.b16 %v6589
    %v6622 = vunpack.c.l.b16 %v6590
    %v6623 = vunpack.c.l.b16 %v6591
    %v6624 = vpack.c.b16 %v6609, %v6608
    %v6625 = vpack.c.b16 %v6611, %v6610
    %v6626 = vpack.c.b16 %v6613, %v6612
    %v6627 = vpack.c.b16 %v6615, %v6614
    %v6628 = vpack.c.b16 %v6617, %v6616
    %v6629 = vpack.c.b16 %v6619, %v6618
    %v6630 = vpack.c.b16 %v6621, %v6620
    %v6631 = vpack.c.b16 %v6623, %v6622
    %6640 = vmatprep.subr.bf16.mxu0 0
    %6641 = vmatpush1.bf16.msra.mxu0 %v6624
    %6642 = vmatprep.subr.bf16.mxu0 0
    %6643 = vmatpush1.bf16.msra.mxu0 %v6625
    %6644 = vmatprep.subr.bf16.mxu0 0
    %6645 = vmatpush1.bf16.msra.mxu0 %v6626
    %6646 = vmatprep.subr.bf16.mxu0 0
    %6647 = vmatpush1.bf16.msra.mxu0 %v6627
    %6648 = vmatprep.subr.bf16.mxu0 0
    %6649 = vmatpush1.bf16.msra.mxu0 %v6628
    %6650 = vmatprep.subr.bf16.mxu0 0
    %6651 = vmatpush1.bf16.msra.mxu0 %v6629
    %6652 = vmatprep.subr.bf16.mxu0 0
    %6653 = vmatpush1.bf16.msra.mxu0 %v6630
    %6654 = vmatprep.subr.bf16.mxu0 0
    %6655 = vmatpush1.bf16.msra.mxu0 %v6631
    %6656 = vmatprep.subr.bf16.mxu0 0
    %6657 = vmatpush1.bf16.msra.mxu0 0
    %6658 = vmatprep.subr.bf16.mxu0 0
    %6659 = vmatpush1.bf16.msra.mxu0 0
    %6660 = vmatprep.subr.bf16.mxu0 0
    %6661 = vmatpush1.bf16.msra.mxu0 0
    %6662 = vmatprep.subr.bf16.mxu0 0
    %6663 = vmatpush1.bf16.msra.mxu0 0
    %6664 = vmatprep.subr.bf16.mxu0 0
    %6665 = vmatpush1.bf16.msra.mxu0 0
    %6666 = vmatprep.subr.bf16.mxu0 0
    %6667 = vmatpush1.bf16.msra.mxu0 0
    %6668 = vmatprep.subr.bf16.mxu0 0
    %6669 = vmatpush1.bf16.msra.mxu0 0
    %6670 = vmatprep.subr.bf16.mxu0 0
    %6671 = vmatpush1.bf16.msra.mxu0 0
    %6672 = vmatprep.mubr.bf16.mxu0 0
    %6673 = vmatmul.mubr.bf16.gmra.mrb[0].mxu0 %v6544
    %v6674 = vpop.f32.mrb[0].mxu0
    %v6675 = vadd.f32 0.0, %v6674
    %v6676 = vpop.f32.mrb[0].mxu0
    %v6677 = vpop.f32.mrb[0].mxu0
    %v6678 = vadd.f32 0.0, %v6677
    %v6679 = vpop.f32.mrb[0].mxu0
    %6680 = vmatprep.mubr.bf16.mxu0 0
    %6681 = vmatmul.mubr.bf16.gmra.mrb[0].mxu0 %v6545
    %v6682 = vpop.f32.mrb[0].mxu0
    %v6683 = vadd.f32 0.0, %v6682
    %v6684 = vpop.f32.mrb[0].mxu0
    %v6685 = vpop.f32.mrb[0].mxu0
    %v6686 = vadd.f32 0.0, %v6685
    %v6687 = vpop.f32.mrb[0].mxu0
    %6688 = vmatprep.mubr.bf16.mxu0 0
    %6689 = vmatmul.mubr.bf16.gmra.mrb[0].mxu0 %v6546
    %v6690 = vpop.f32.mrb[0].mxu0
    %v6691 = vadd.f32 0.0, %v6690
    %v6692 = vpop.f32.mrb[0].mxu0
    %v6693 = vpop.f32.mrb[0].mxu0
    %v6694 = vadd.f32 0.0, %v6693
    %v6695 = vpop.f32.mrb[0].mxu0
    %6696 = vmatprep.mubr.bf16.mxu0 0
    %6697 = vmatmul.mubr.bf16.gmra.mrb[0].mxu0 %v6547
    %v6698 = vpop.f32.mrb[0].mxu0
    %v6699 = vadd.f32 0.0, %v6698
    %v6700 = vpop.f32.mrb[0].mxu0
    %v6701 = vpop.f32.mrb[0].mxu0
    %v6702 = vadd.f32 0.0, %v6701
    %v6703 = vpop.f32.mrb[0].mxu0
    %6704 = vmatprep.mubr.bf16.mxu0 0
    %6705 = vmatmul.mubr.bf16.gmra.mrb[0].mxu0 %v6548
    %v6706 = vpop.f32.mrb[0].mxu0
    %v6707 = vadd.f32 0.0, %v6706
    %v6708 = vpop.f32.mrb[0].mxu0
    %v6709 = vpop.f32.mrb[0].mxu0
    %v6710 = vadd.f32 0.0, %v6709
    %v6711 = vpop.f32.mrb[0].mxu0
    %6712 = vmatprep.mubr.bf16.mxu0 0
    %6713 = vmatmul.mubr.bf16.gmra.mrb[0].mxu0 %v6549
    %v6714 = vpop.f32.mrb[0].mxu0
    %v6715 = vadd.f32 0.0, %v6714
    %v6716 = vpop.f32.mrb[0].mxu0
    %v6717 = vpop.f32.mrb[0].mxu0
    %v6718 = vadd.f32 0.0, %v6717
    %v6719 = vpop.f32.mrb[0].mxu0
    %6720 = vmatprep.mubr.bf16.mxu0 0
    %6721 = vmatmul.mubr.bf16.gmra.mrb[0].mxu0 %v6550
    %v6722 = vpop.f32.mrb[0].mxu0
    %v6723 = vadd.f32 0.0, %v6722
    %v6724 = vpop.f32.mrb[0].mxu0
    %v6725 = vpop.f32.mrb[0].mxu0
    %v6726 = vadd.f32 0.0, %v6725
    %v6727 = vpop.f32.mrb[0].mxu0
    %6728 = vmatprep.mubr.bf16.mxu0 0
    %6729 = vmatmul.mubr.bf16.gmra.mrb[0].mxu0 %v6551
    %v6730 = vpop.f32.mrb[0].mxu0
    %v6731 = vadd.f32 0.0, %v6730
    %v6732 = vpop.f32.mrb[0].mxu0
    %v6733 = vpop.f32.mrb[0].mxu0
    %v6734 = vadd.f32 0.0, %v6733
    %v6735 = vpop.f32.mrb[0].mxu0
    %6736 = vmatprep.mubr.bf16.mxu0 0
    %6737 = vmatmul.mubr.bf16.gmra.mrb[0].mxu0 %v6552
    %v6738 = vpop.f32.mrb[0].mxu0
    %v6739 = vadd.f32 0.0, %v6738
    %v6740 = vpop.f32.mrb[0].mxu0
    %v6741 = vpop.f32.mrb[0].mxu0
    %v6742 = vadd.f32 0.0, %v6741
    %v6743 = vpop.f32.mrb[0].mxu0
    %6744 = vmatprep.mubr.bf16.mxu0 0
    %6745 = vmatmul.mubr.bf16.gmra.mrb[0].mxu0 %v6553
    %v6746 = vpop.f32.mrb[0].mxu0
    %v6747 = vadd.f32 0.0, %v6746
    %v6748 = vpop.f32.mrb[0].mxu0
    %v6749 = vpop.f32.mrb[0].mxu0
    %v6750 = vadd.f32 0.0, %v6749
    %v6751 = vpop.f32.mrb[0].mxu0
    %6752 = vmatprep.mubr.bf16.mxu0 0
    %6753 = vmatmul.mubr.bf16.gmra.mrb[0].mxu0 %v6554
    %v6754 = vpop.f32.mrb[0].mxu0
    %v6755 = vadd.f32 0.0, %v6754
    %v6756 = vpop.f32.mrb[0].mxu0
    %v6757 = vpop.f32.mrb[0].mxu0
    %v6758 = vadd.f32 0.0, %v6757
    %v6759 = vpop.f32.mrb[0].mxu0
    %6760 = vmatprep.mubr.bf16.mxu0 0
    %6761 = vmatmul.mubr.bf16.gmra.mrb[0].mxu0 %v6555
    %v6762 = vpop.f32.mrb[0].mxu0
    %v6763 = vadd.f32 0.0, %v6762
    %v6764 = vpop.f32.mrb[0].mxu0
    %v6765 = vpop.f32.mrb[0].mxu0
    %v6766 = vadd.f32 0.0, %v6765
    %v6767 = vpop.f32.mrb[0].mxu0
    %6768 = vmatprep.mubr.bf16.mxu0 0
    %6769 = vmatmul.mubr.bf16.gmra.mrb[0].mxu0 %v6556
    %v6770 = vpop.f32.mrb[0].mxu0
    %v6771 = vadd.f32 0.0, %v6770
    %v6772 = vpop.f32.mrb[0].mxu0
    %v6773 = vpop.f32.mrb[0].mxu0
    %v6774 = vadd.f32 0.0, %v6773
    %v6775 = vpop.f32.mrb[0].mxu0
    %6776 = vmatprep.mubr.bf16.mxu0 0
    %6777 = vmatmul.mubr.bf16.gmra.mrb[0].mxu0 %v6557
    %v6778 = vpop.f32.mrb[0].mxu0
    %v6779 = vadd.f32 0.0, %v6778
    %v6780 = vpop.f32.mrb[0].mxu0
    %v6781 = vpop.f32.mrb[0].mxu0
    %v6782 = vadd.f32 0.0, %v6781
    %v6783 = vpop.f32.mrb[0].mxu0
    %6784 = vmatprep.mubr.bf16.mxu0 0
    %6785 = vmatmul.mubr.bf16.gmra.mrb[0].mxu0 %v6558
    %v6786 = vpop.f32.mrb[0].mxu0
    %v6787 = vadd.f32 0.0, %v6786
    %v6788 = vpop.f32.mrb[0].mxu0
    %v6789 = vpop.f32.mrb[0].mxu0
    %v6790 = vadd.f32 0.0, %v6789
    %v6791 = vpop.f32.mrb[0].mxu0
    %6792 = vmatprep.mubr.bf16.mxu0 0
    %6793 = vmatmul.mubr.bf16.gmra.mrb[0].mxu0 %v6559
    %v6794 = vpop.f32.mrb[0].mxu0
    %v6795 = vadd.f32 0.0, %v6794
    %v6796 = vpop.f32.mrb[0].mxu0
    %v6797 = vpop.f32.mrb[0].mxu0
    %v6798 = vadd.f32 0.0, %v6797
    %v6799 = vpop.f32.mrb[0].mxu0
    %6800 = vmatprep.mubr.bf16.mxu0 0
    %6801 = vmatmul.mubr.bf16.gmra.mrb[0].mxu0 %v6560
    %v6802 = vpop.f32.mrb[0].mxu0
    %v6803 = vadd.f32 0.0, %v6802
    %v6804 = vpop.f32.mrb[0].mxu0
    %v6805 = vpop.f32.mrb[0].mxu0
    %v6806 = vadd.f32 0.0, %v6805
    %v6807 = vpop.f32.mrb[0].mxu0
    %6808 = vmatprep.mubr.bf16.mxu0 0
    %6809 = vmatmul.mubr.bf16.gmra.mrb[0].mxu0 %v6561
    %v6810 = vpop.f32.mrb[0].mxu0
    %v6811 = vadd.f32 0.0, %v6810
    %v6812 = vpop.f32.mrb[0].mxu0
    %v6813 = vpop.f32.mrb[0].mxu0
    %v6814 = vadd.f32 0.0, %v6813
    %v6815 = vpop.f32.mrb[0].mxu0
    %6816 = vmatprep.mubr.bf16.mxu0 0
    %6817 = vmatmul.mubr.bf16.gmra.mrb[0].mxu0 %v6562
    %v6818 = vpop.f32.mrb[0].mxu0
    %v6819 = vadd.f32 0.0, %v6818
    %v6820 = vpop.f32.mrb[0].mxu0
    %v6821 = vpop.f32.mrb[0].mxu0
    %v6822 = vadd.f32 0.0, %v6821
    %v6823 = vpop.f32.mrb[0].mxu0
    %6824 = vmatprep.mubr.bf16.mxu0 0
    %6825 = vmatmul.mubr.bf16.gmra.mrb[0].mxu0 %v6563
    %v6826 = vpop.f32.mrb[0].mxu0
    %v6827 = vadd.f32 0.0, %v6826
    %v6828 = vpop.f32.mrb[0].mxu0
    %v6829 = vpop.f32.mrb[0].mxu0
    %v6830 = vadd.f32 0.0, %v6829
    %v6831 = vpop.f32.mrb[0].mxu0
    %6832 = vmatprep.mubr.bf16.mxu0 0
    %6833 = vmatmul.mubr.bf16.gmra.mrb[0].mxu0 %v6564
    %v6834 = vpop.f32.mrb[0].mxu0
    %v6835 = vadd.f32 0.0, %v6834
    %v6836 = vpop.f32.mrb[0].mxu0
    %v6837 = vpop.f32.mrb[0].mxu0
    %v6838 = vadd.f32 0.0, %v6837
    %v6839 = vpop.f32.mrb[0].mxu0
    %6840 = vmatprep.mubr.bf16.mxu0 0
    %6841 = vmatmul.mubr.bf16.gmra.mrb[0].mxu0 %v6565
    %v6842 = vpop.f32.mrb[0].mxu0
    %v6843 = vadd.f32 0.0, %v6842
    %v6844 = vpop.f32.mrb[0].mxu0
    %v6845 = vpop.f32.mrb[0].mxu0
    %v6846 = vadd.f32 0.0, %v6845
    %v6847 = vpop.f32.mrb[0].mxu0
    %6848 = vmatprep.mubr.bf16.mxu0 0
    %6849 = vmatmul.mubr.bf16.gmra.mrb[0].mxu0 %v6566
    %v6850 = vpop.f32.mrb[0].mxu0
    %v6851 = vadd.f32 0.0, %v6850
    %v6852 = vpop.f32.mrb[0].mxu0
    %v6853 = vpop.f32.mrb[0].mxu0
    %v6854 = vadd.f32 0.0, %v6853
    %v6855 = vpop.f32.mrb[0].mxu0
    %6856 = vmatprep.mubr.bf16.mxu0 0
    %6857 = vmatmul.mubr.bf16.gmra.mrb[0].mxu0 %v6567
    %v6858 = vpop.f32.mrb[0].mxu0
    %v6859 = vadd.f32 0.0, %v6858
    %v6860 = vpop.f32.mrb[0].mxu0
    %v6861 = vpop.f32.mrb[0].mxu0
    %v6862 = vadd.f32 0.0, %v6861
    %v6863 = vpop.f32.mrb[0].mxu0
    %6864 = vmatprep.mubr.bf16.mxu0 0
    %6865 = vmatmul.mubr.bf16.gmra.mrb[0].mxu0 %v6568
    %v6866 = vpop.f32.mrb[0].mxu0
    %v6867 = vadd.f32 0.0, %v6866
    %v6868 = vpop.f32.mrb[0].mxu0
    %v6869 = vpop.f32.mrb[0].mxu0
    %v6870 = vadd.f32 0.0, %v6869
    %v6871 = vpop.f32.mrb[0].mxu0
    %6872 = vmatprep.mubr.bf16.mxu0 0
    %6873 = vmatmul.mubr.bf16.gmra.mrb[0].mxu0 %v6569
    %v6874 = vpop.f32.mrb[0].mxu0
    %v6875 = vadd.f32 0.0, %v6874
    %v6876 = vpop.f32.mrb[0].mxu0
    %v6877 = vpop.f32.mrb[0].mxu0
    %v6878 = vadd.f32 0.0, %v6877
    %v6879 = vpop.f32.mrb[0].mxu0
    %6880 = vmatprep.mubr.bf16.mxu0 0
    %6881 = vmatmul.mubr.bf16.gmra.mrb[0].mxu0 %v6570
    %v6882 = vpop.f32.mrb[0].mxu0
    %v6883 = vadd.f32 0.0, %v6882
    %v6884 = vpop.f32.mrb[0].mxu0
    %v6885 = vpop.f32.mrb[0].mxu0
    %v6886 = vadd.f32 0.0, %v6885
    %v6887 = vpop.f32.mrb[0].mxu0
    %6888 = vmatprep.mubr.bf16.mxu0 0
    %6889 = vmatmul.mubr.bf16.gmra.mrb[0].mxu0 %v6571
    %v6890 = vpop.f32.mrb[0].mxu0
    %v6891 = vadd.f32 0.0, %v6890
    %v6892 = vpop.f32.mrb[0].mxu0
    %v6893 = vpop.f32.mrb[0].mxu0
    %v6894 = vadd.f32 0.0, %v6893
    %v6895 = vpop.f32.mrb[0].mxu0
    %6896 = vmatprep.mubr.bf16.mxu0 0
    %6897 = vmatmul.mubr.bf16.gmra.mrb[0].mxu0 %v6572
    %v6898 = vpop.f32.mrb[0].mxu0
    %v6899 = vadd.f32 0.0, %v6898
    %v6900 = vpop.f32.mrb[0].mxu0
    %v6901 = vpop.f32.mrb[0].mxu0
    %v6902 = vadd.f32 0.0, %v6901
    %v6903 = vpop.f32.mrb[0].mxu0
    %6904 = vmatprep.mubr.bf16.mxu0 0
    %6905 = vmatmul.mubr.bf16.gmra.mrb[0].mxu0 %v6573
    %v6906 = vpop.f32.mrb[0].mxu0
    %v6907 = vadd.f32 0.0, %v6906
    %v6908 = vpop.f32.mrb[0].mxu0
    %v6909 = vpop.f32.mrb[0].mxu0
    %v6910 = vadd.f32 0.0, %v6909
    %v6911 = vpop.f32.mrb[0].mxu0
    %6912 = vmatprep.mubr.bf16.mxu0 0
    %6913 = vmatmul.mubr.bf16.gmra.mrb[0].mxu0 %v6574
    %v6914 = vpop.f32.mrb[0].mxu0
    %v6915 = vadd.f32 0.0, %v6914
    %v6916 = vpop.f32.mrb[0].mxu0
    %v6917 = vpop.f32.mrb[0].mxu0
    %v6918 = vadd.f32 0.0, %v6917
    %v6919 = vpop.f32.mrb[0].mxu0
    %6920 = vmatprep.mubr.bf16.mxu0 0
    %6921 = vmatmul.mubr.bf16.gmra.mrb[0].mxu0 %v6575
    %v6922 = vpop.f32.mrb[0].mxu0
    %v6923 = vadd.f32 0.0, %v6922
    %v6924 = vpop.f32.mrb[0].mxu0
    %v6925 = vpop.f32.mrb[0].mxu0
    %v6926 = vadd.f32 0.0, %v6925
    %v6927 = vpop.f32.mrb[0].mxu0
    %6928 = vdwg.mxu0
    %v6929 = vld [vmem:[%s5] sm:$0x1]
    %v6930 = vld [vmem:[%s6] sm:$0x1]
    %v6931 = vadd.f32 %v6675, %v6678
    %v6932 = vadd.f32 %v6931, %v6683
    %v6933 = vadd.f32 %v6932, %v6686
    %v6934 = vadd.f32 %v6933, %v6691
    %v6935 = vadd.f32 %v6934, %v6694
    %v6936 = vadd.f32 %v6935, %v6699
    %v6937 = vadd.f32 %v6936, %v6702
    %v6938 = vadd.f32 %v6937, %v6707
    %v6939 = vadd.f32 %v6938, %v6710
    %v6940 = vadd.f32 %v6939, %v6715
    %v6941 = vadd.f32 %v6940, %v6718
    %v6942 = vadd.f32 %v6941, %v6723
    %v6943 = vadd.f32 %v6942, %v6726
    %v6944 = vadd.f32 %v6943, %v6731
    %v6945 = vadd.f32 %v6944, %v6734
    %v6946 = vadd.f32 %v6945, %v6739
    %v6947 = vadd.f32 %v6946, %v6742
    %v6948 = vadd.f32 %v6947, %v6747
    %v6949 = vadd.f32 %v6948, %v6750
    %v6950 = vadd.f32 %v6949, %v6755
    %v6951 = vadd.f32 %v6950, %v6758
    %v6952 = vadd.f32 %v6951, %v6763
    %v6953 = vadd.f32 %v6952, %v6766
    %v6954 = vadd.f32 %v6953, %v6771
    %v6955 = vadd.f32 %v6954, %v6774
    %v6956 = vadd.f32 %v6955, %v6779
    %v6957 = vadd.f32 %v6956, %v6782
    %v6958 = vadd.f32 %v6957, %v6787
    %v6959 = vadd.f32 %v6958, %v6790
    %v6960 = vadd.f32 %v6959, %v6795
    %v6961 = vadd.f32 %v6960, %v6798
    %v6962 = vadd.f32 %v6961, %v6803
    %v6963 = vadd.f32 %v6962, %v6806
    %v6964 = vadd.f32 %v6963, %v6811
    %v6965 = vadd.f32 %v6964, %v6814
    %v6966 = vadd.f32 %v6965, %v6819
    %v6967 = vadd.f32 %v6966, %v6822
    %v6968 = vadd.f32 %v6967, %v6827
    %v6969 = vadd.f32 %v6968, %v6830
    %v6970 = vadd.f32 %v6969, %v6835
    %v6971 = vadd.f32 %v6970, %v6838
    %v6972 = vadd.f32 %v6971, %v6843
    %v6973 = vadd.f32 %v6972, %v6846
    %v6974 = vadd.f32 %v6973, %v6851
    %v6975 = vadd.f32 %v6974, %v6854
    %v6976 = vadd.f32 %v6975, %v6859
    %v6977 = vadd.f32 %v6976, %v6862
    %v6978 = vadd.f32 %v6977, %v6867
    %v6979 = vadd.f32 %v6978, %v6870
    %v6980 = vadd.f32 %v6979, %v6875
    %v6981 = vadd.f32 %v6980, %v6878
    %v6982 = vadd.f32 %v6981, %v6883
    %v6983 = vadd.f32 %v6982, %v6886
    %v6984 = vadd.f32 %v6983, %v6891
    %v6985 = vadd.f32 %v6984, %v6894
    %v6986 = vadd.f32 %v6985, %v6899
    %v6987 = vadd.f32 %v6986, %v6902
    %v6988 = vadd.f32 %v6987, %v6907
    %v6989 = vadd.f32 %v6988, %v6910
    %v6990 = vadd.f32 %v6989, %v6915
    %v6991 = vadd.f32 %v6990, %v6918
    %v6992 = vadd.f32 %v6991, %v6923
    %v6993 = vadd.f32 %v6992, %v6926
    %v6994 = vrot.slane %v6993, 4
    %v6995 = vadd.f32 %v6993, %v6994
    %v6996 = vrot.slane %v6995, 2
    %v6997 = vadd.f32 %v6995, %v6996
    %v6998 = vrot.slane %v6997, 1
    %v6999 = vadd.f32 %v6997, %v6998
    %v7000 = vmul.f32 %v6999, %v3328
    %v7001 = vsub.f32 %v6675, %v7000
    %v7002 = vsub.f32 %v6678, %v7000
    %v7003 = vsub.f32 %v6683, %v7000
    %v7004 = vsub.f32 %v6686, %v7000
    %v7005 = vsub.f32 %v6691, %v7000
    %v7006 = vsub.f32 %v6694, %v7000
    %v7007 = vsub.f32 %v6699, %v7000
    %v7008 = vsub.f32 %v6702, %v7000
    %v7009 = vsub.f32 %v6707, %v7000
    %v7010 = vsub.f32 %v6710, %v7000
    %v7011 = vsub.f32 %v6715, %v7000
    %v7012 = vsub.f32 %v6718, %v7000
    %v7013 = vsub.f32 %v6723, %v7000
    %v7014 = vsub.f32 %v6726, %v7000
    %v7015 = vsub.f32 %v6731, %v7000
    %v7016 = vsub.f32 %v6734, %v7000
    %v7017 = vsub.f32 %v6739, %v7000
    %v7018 = vsub.f32 %v6742, %v7000
    %v7019 = vsub.f32 %v6747, %v7000
    %v7020 = vsub.f32 %v6750, %v7000
    %v7021 = vsub.f32 %v6755, %v7000
    %v7022 = vsub.f32 %v6758, %v7000
    %v7023 = vsub.f32 %v6763, %v7000
    %v7024 = vsub.f32 %v6766, %v7000
    %v7025 = vsub.f32 %v6771, %v7000
    %v7026 = vsub.f32 %v6774, %v7000
    %v7027 = vsub.f32 %v6779, %v7000
    %v7028 = vsub.f32 %v6782, %v7000
    %v7029 = vsub.f32 %v6787, %v7000
    %v7030 = vsub.f32 %v6790, %v7000
    %v7031 = vsub.f32 %v6795, %v7000
    %v7032 = vsub.f32 %v6798, %v7000
    %v7033 = vsub.f32 %v6803, %v7000
    %v7034 = vsub.f32 %v6806, %v7000
    %v7035 = vsub.f32 %v6811, %v7000
    %v7036 = vsub.f32 %v6814, %v7000
    %v7037 = vsub.f32 %v6819, %v7000
    %v7038 = vsub.f32 %v6822, %v7000
    %v7039 = vsub.f32 %v6827, %v7000
    %v7040 = vsub.f32 %v6830, %v7000
    %v7041 = vsub.f32 %v6835, %v7000
    %v7042 = vsub.f32 %v6838, %v7000
    %v7043 = vsub.f32 %v6843, %v7000
    %v7044 = vsub.f32 %v6846, %v7000
    %v7045 = vsub.f32 %v6851, %v7000
    %v7046 = vsub.f32 %v6854, %v7000
    %v7047 = vsub.f32 %v6859, %v7000
    %v7048 = vsub.f32 %v6862, %v7000
    %v7049 = vsub.f32 %v6867, %v7000
    %v7050 = vsub.f32 %v6870, %v7000
    %v7051 = vsub.f32 %v6875, %v7000
    %v7052 = vsub.f32 %v6878, %v7000
    %v7053 = vsub.f32 %v6883, %v7000
    %v7054 = vsub.f32 %v6886, %v7000
    %v7055 = vsub.f32 %v6891, %v7000
    %v7056 = vsub.f32 %v6894, %v7000
    %v7057 = vsub.f32 %v6899, %v7000
    %v7058 = vsub.f32 %v6902, %v7000
    %v7059 = vsub.f32 %v6907, %v7000
    %v7060 = vsub.f32 %v6910, %v7000
    %v7061 = vsub.f32 %v6915, %v7000
    %v7062 = vsub.f32 %v6918, %v7000
    %v7063 = vsub.f32 %v6923, %v7000
    %v7064 = vsub.f32 %v6926, %v7000
    %v7065 = vmul.f32 %v7001, %v7001
    %v7066 = vmul.f32 %v7002, %v7002
    %v7067 = vmul.f32 %v7003, %v7003
    %v7068 = vmul.f32 %v7004, %v7004
    %v7069 = vmul.f32 %v7005, %v7005
    %v7070 = vmul.f32 %v7006, %v7006
    %v7071 = vmul.f32 %v7007, %v7007
    %v7072 = vmul.f32 %v7008, %v7008
    %v7073 = vmul.f32 %v7009, %v7009
    %v7074 = vmul.f32 %v7010, %v7010
    %v7075 = vmul.f32 %v7011, %v7011
    %v7076 = vmul.f32 %v7012, %v7012
    %v7077 = vmul.f32 %v7013, %v7013
    %v7078 = vmul.f32 %v7014, %v7014
    %v7079 = vmul.f32 %v7015, %v7015
    %v7080 = vmul.f32 %v7016, %v7016
    %v7081 = vmul.f32 %v7017, %v7017
    %v7082 = vmul.f32 %v7018, %v7018
    %v7083 = vmul.f32 %v7019, %v7019
    %v7084 = vmul.f32 %v7020, %v7020
    %v7085 = vmul.f32 %v7021, %v7021
    %v7086 = vmul.f32 %v7022, %v7022
    %v7087 = vmul.f32 %v7023, %v7023
    %v7088 = vmul.f32 %v7024, %v7024
    %v7089 = vmul.f32 %v7025, %v7025
    %v7090 = vmul.f32 %v7026, %v7026
    %v7091 = vmul.f32 %v7027, %v7027
    %v7092 = vmul.f32 %v7028, %v7028
    %v7093 = vmul.f32 %v7029, %v7029
    %v7094 = vmul.f32 %v7030, %v7030
    %v7095 = vmul.f32 %v7031, %v7031
    %v7096 = vmul.f32 %v7032, %v7032
    %v7097 = vmul.f32 %v7033, %v7033
    %v7098 = vmul.f32 %v7034, %v7034
    %v7099 = vmul.f32 %v7035, %v7035
    %v7100 = vmul.f32 %v7036, %v7036
    %v7101 = vmul.f32 %v7037, %v7037
    %v7102 = vmul.f32 %v7038, %v7038
    %v7103 = vmul.f32 %v7039, %v7039
    %v7104 = vmul.f32 %v7040, %v7040
    %v7105 = vmul.f32 %v7041, %v7041
    %v7106 = vmul.f32 %v7042, %v7042
    %v7107 = vmul.f32 %v7043, %v7043
    %v7108 = vmul.f32 %v7044, %v7044
    %v7109 = vmul.f32 %v7045, %v7045
    %v7110 = vmul.f32 %v7046, %v7046
    %v7111 = vmul.f32 %v7047, %v7047
    %v7112 = vmul.f32 %v7048, %v7048
    %v7113 = vmul.f32 %v7049, %v7049
    %v7114 = vmul.f32 %v7050, %v7050
    %v7115 = vmul.f32 %v7051, %v7051
    %v7116 = vmul.f32 %v7052, %v7052
    %v7117 = vmul.f32 %v7053, %v7053
    %v7118 = vmul.f32 %v7054, %v7054
    %v7119 = vmul.f32 %v7055, %v7055
    %v7120 = vmul.f32 %v7056, %v7056
    %v7121 = vmul.f32 %v7057, %v7057
    %v7122 = vmul.f32 %v7058, %v7058
    %v7123 = vmul.f32 %v7059, %v7059
    %v7124 = vmul.f32 %v7060, %v7060
    %v7125 = vmul.f32 %v7061, %v7061
    %v7126 = vmul.f32 %v7062, %v7062
    %v7127 = vmul.f32 %v7063, %v7063
    %v7128 = vmul.f32 %v7064, %v7064
    %v7129 = vadd.f32 %v7065, %v7066
    %v7130 = vadd.f32 %v7129, %v7067
    %v7131 = vadd.f32 %v7130, %v7068
    %v7132 = vadd.f32 %v7131, %v7069
    %v7133 = vadd.f32 %v7132, %v7070
    %v7134 = vadd.f32 %v7133, %v7071
    %v7135 = vadd.f32 %v7134, %v7072
    %v7136 = vadd.f32 %v7135, %v7073
    %v7137 = vadd.f32 %v7136, %v7074
    %v7138 = vadd.f32 %v7137, %v7075
    %v7139 = vadd.f32 %v7138, %v7076
    %v7140 = vadd.f32 %v7139, %v7077
    %v7141 = vadd.f32 %v7140, %v7078
    %v7142 = vadd.f32 %v7141, %v7079
    %v7143 = vadd.f32 %v7142, %v7080
    %v7144 = vadd.f32 %v7143, %v7081
    %v7145 = vadd.f32 %v7144, %v7082
    %v7146 = vadd.f32 %v7145, %v7083
    %v7147 = vadd.f32 %v7146, %v7084
    %v7148 = vadd.f32 %v7147, %v7085
    %v7149 = vadd.f32 %v7148, %v7086
    %v7150 = vadd.f32 %v7149, %v7087
    %v7151 = vadd.f32 %v7150, %v7088
    %v7152 = vadd.f32 %v7151, %v7089
    %v7153 = vadd.f32 %v7152, %v7090
    %v7154 = vadd.f32 %v7153, %v7091
    %v7155 = vadd.f32 %v7154, %v7092
    %v7156 = vadd.f32 %v7155, %v7093
    %v7157 = vadd.f32 %v7156, %v7094
    %v7158 = vadd.f32 %v7157, %v7095
    %v7159 = vadd.f32 %v7158, %v7096
    %v7160 = vadd.f32 %v7159, %v7097
    %v7161 = vadd.f32 %v7160, %v7098
    %v7162 = vadd.f32 %v7161, %v7099
    %v7163 = vadd.f32 %v7162, %v7100
    %v7164 = vadd.f32 %v7163, %v7101
    %v7165 = vadd.f32 %v7164, %v7102
    %v7166 = vadd.f32 %v7165, %v7103
    %v7167 = vadd.f32 %v7166, %v7104
    %v7168 = vadd.f32 %v7167, %v7105
    %v7169 = vadd.f32 %v7168, %v7106
    %v7170 = vadd.f32 %v7169, %v7107
    %v7171 = vadd.f32 %v7170, %v7108
    %v7172 = vadd.f32 %v7171, %v7109
    %v7173 = vadd.f32 %v7172, %v7110
    %v7174 = vadd.f32 %v7173, %v7111
    %v7175 = vadd.f32 %v7174, %v7112
    %v7176 = vadd.f32 %v7175, %v7113
    %v7177 = vadd.f32 %v7176, %v7114
    %v7178 = vadd.f32 %v7177, %v7115
    %v7179 = vadd.f32 %v7178, %v7116
    %v7180 = vadd.f32 %v7179, %v7117
    %v7181 = vadd.f32 %v7180, %v7118
    %v7182 = vadd.f32 %v7181, %v7119
    %v7183 = vadd.f32 %v7182, %v7120
    %v7184 = vadd.f32 %v7183, %v7121
    %v7185 = vadd.f32 %v7184, %v7122
    %v7186 = vadd.f32 %v7185, %v7123
    %v7187 = vadd.f32 %v7186, %v7124
    %v7188 = vadd.f32 %v7187, %v7125
    %v7189 = vadd.f32 %v7188, %v7126
    %v7190 = vadd.f32 %v7189, %v7127
    %v7191 = vadd.f32 %v7190, %v7128
    %v7192 = vrot.slane %v7191, 4
    %v7193 = vadd.f32 %v7191, %v7192
    %v7194 = vrot.slane %v7193, 2
    %v7195 = vadd.f32 %v7193, %v7194
    %v7196 = vrot.slane %v7195, 1
    %v7197 = vadd.f32 %v7195, %v7196
    %v7198 = vmul.f32 %v7197, %v3328
    %v7199 = vadd.f32 %v7198, 1e-05
    %v7200 = vrsqrt.pop %v7199
    %v7201 = vmul.f32 %v7001, %v7200
    %v7202 = vmul.f32 %v7002, %v7200
    %v7203 = vmul.f32 %v7003, %v7200
    %v7204 = vmul.f32 %v7004, %v7200
    %v7205 = vmul.f32 %v7005, %v7200
    %v7206 = vmul.f32 %v7006, %v7200
    %v7207 = vmul.f32 %v7007, %v7200
    %v7208 = vmul.f32 %v7008, %v7200
    %v7209 = vmul.f32 %v7009, %v7200
    %v7210 = vmul.f32 %v7010, %v7200
    %v7211 = vmul.f32 %v7011, %v7200
    %v7212 = vmul.f32 %v7012, %v7200
    %v7213 = vmul.f32 %v7013, %v7200
    %v7214 = vmul.f32 %v7014, %v7200
    %v7215 = vmul.f32 %v7015, %v7200
    %v7216 = vmul.f32 %v7016, %v7200
    %v7217 = vmul.f32 %v7017, %v7200
    %v7218 = vmul.f32 %v7018, %v7200
    %v7219 = vmul.f32 %v7019, %v7200
    %v7220 = vmul.f32 %v7020, %v7200
    %v7221 = vmul.f32 %v7021, %v7200
    %v7222 = vmul.f32 %v7022, %v7200
    %v7223 = vmul.f32 %v7023, %v7200
    %v7224 = vmul.f32 %v7024, %v7200
    %v7225 = vmul.f32 %v7025, %v7200
    %v7226 = vmul.f32 %v7026, %v7200
    %v7227 = vmul.f32 %v7027, %v7200
    %v7228 = vmul.f32 %v7028, %v7200
    %v7229 = vmul.f32 %v7029, %v7200
    %v7230 = vmul.f32 %v7030, %v7200
    %v7231 = vmul.f32 %v7031, %v7200
    %v7232 = vmul.f32 %v7032, %v7200
    %v7233 = vmul.f32 %v7033, %v7200
    %v7234 = vmul.f32 %v7034, %v7200
    %v7235 = vmul.f32 %v7035, %v7200
    %v7236 = vmul.f32 %v7036, %v7200
    %v7237 = vmul.f32 %v7037, %v7200
    %v7238 = vmul.f32 %v7038, %v7200
    %v7239 = vmul.f32 %v7039, %v7200
    %v7240 = vmul.f32 %v7040, %v7200
    %v7241 = vmul.f32 %v7041, %v7200
    %v7242 = vmul.f32 %v7042, %v7200
    %v7243 = vmul.f32 %v7043, %v7200
    %v7244 = vmul.f32 %v7044, %v7200
    %v7245 = vmul.f32 %v7045, %v7200
    %v7246 = vmul.f32 %v7046, %v7200
    %v7247 = vmul.f32 %v7047, %v7200
    %v7248 = vmul.f32 %v7048, %v7200
    %v7249 = vmul.f32 %v7049, %v7200
    %v7250 = vmul.f32 %v7050, %v7200
    %v7251 = vmul.f32 %v7051, %v7200
    %v7252 = vmul.f32 %v7052, %v7200
    %v7253 = vmul.f32 %v7053, %v7200
    %v7254 = vmul.f32 %v7054, %v7200
    %v7255 = vmul.f32 %v7055, %v7200
    %v7256 = vmul.f32 %v7056, %v7200
    %v7257 = vmul.f32 %v7057, %v7200
    %v7258 = vmul.f32 %v7058, %v7200
    %v7259 = vmul.f32 %v7059, %v7200
    %v7260 = vmul.f32 %v7060, %v7200
    %v7261 = vmul.f32 %v7061, %v7200
    %v7262 = vmul.f32 %v7062, %v7200
    %v7263 = vmul.f32 %v7063, %v7200
    %v7264 = vmul.f32 %v7064, %v7200
    %v7266 = vlaneseq
    %v7267 = vshrl.u32 %v7266, 7
    %v7268 = vsub.s32 0, %v7267
    %v7269 = vrot.slane %v6929, %v7268
    %v7271 = vmul.f32 %v7201, %v7269
    %v7272 = vmul.f32 %v7202, %v7269
    %v7273 = vmul.f32 %v7203, %v7269
    %v7274 = vmul.f32 %v7204, %v7269
    %v7275 = vmul.f32 %v7205, %v7269
    %v7276 = vmul.f32 %v7206, %v7269
    %v7277 = vmul.f32 %v7207, %v7269
    %v7278 = vmul.f32 %v7208, %v7269
    %v7279 = vmul.f32 %v7209, %v7269
    %v7280 = vmul.f32 %v7210, %v7269
    %v7281 = vmul.f32 %v7211, %v7269
    %v7282 = vmul.f32 %v7212, %v7269
    %v7283 = vmul.f32 %v7213, %v7269
    %v7284 = vmul.f32 %v7214, %v7269
    %v7285 = vmul.f32 %v7215, %v7269
    %v7286 = vmul.f32 %v7216, %v7269
    %v7287 = vmul.f32 %v7217, %v7269
    %v7288 = vmul.f32 %v7218, %v7269
    %v7289 = vmul.f32 %v7219, %v7269
    %v7290 = vmul.f32 %v7220, %v7269
    %v7291 = vmul.f32 %v7221, %v7269
    %v7292 = vmul.f32 %v7222, %v7269
    %v7293 = vmul.f32 %v7223, %v7269
    %v7294 = vmul.f32 %v7224, %v7269
    %v7295 = vmul.f32 %v7225, %v7269
    %v7296 = vmul.f32 %v7226, %v7269
    %v7297 = vmul.f32 %v7227, %v7269
    %v7298 = vmul.f32 %v7228, %v7269
    %v7299 = vmul.f32 %v7229, %v7269
    %v7300 = vmul.f32 %v7230, %v7269
    %v7301 = vmul.f32 %v7231, %v7269
    %v7302 = vmul.f32 %v7232, %v7269
    %v7303 = vmul.f32 %v7233, %v7269
    %v7304 = vmul.f32 %v7234, %v7269
    %v7305 = vmul.f32 %v7235, %v7269
    %v7306 = vmul.f32 %v7236, %v7269
    %v7307 = vmul.f32 %v7237, %v7269
    %v7308 = vmul.f32 %v7238, %v7269
    %v7309 = vmul.f32 %v7239, %v7269
    %v7310 = vmul.f32 %v7240, %v7269
    %v7311 = vmul.f32 %v7241, %v7269
    %v7312 = vmul.f32 %v7242, %v7269
    %v7313 = vmul.f32 %v7243, %v7269
    %v7314 = vmul.f32 %v7244, %v7269
    %v7315 = vmul.f32 %v7245, %v7269
    %v7316 = vmul.f32 %v7246, %v7269
    %v7317 = vmul.f32 %v7247, %v7269
    %v7318 = vmul.f32 %v7248, %v7269
    %v7319 = vmul.f32 %v7249, %v7269
    %v7320 = vmul.f32 %v7250, %v7269
    %v7321 = vmul.f32 %v7251, %v7269
    %v7322 = vmul.f32 %v7252, %v7269
    %v7323 = vmul.f32 %v7253, %v7269
    %v7324 = vmul.f32 %v7254, %v7269
    %v7325 = vmul.f32 %v7255, %v7269
    %v7326 = vmul.f32 %v7256, %v7269
    %v7327 = vmul.f32 %v7257, %v7269
    %v7328 = vmul.f32 %v7258, %v7269
    %v7329 = vmul.f32 %v7259, %v7269
    %v7330 = vmul.f32 %v7260, %v7269
    %v7331 = vmul.f32 %v7261, %v7269
    %v7332 = vmul.f32 %v7262, %v7269
    %v7333 = vmul.f32 %v7263, %v7269
    %v7334 = vmul.f32 %v7264, %v7269
    %v7336 = vlaneseq
    %v7337 = vshrl.u32 %v7336, 7
    %v7338 = vsub.s32 0, %v7337
    %v7339 = vrot.slane %v6930, %v7338
    %v7341 = vadd.f32 %v7271, %v7339
    %v7342 = vadd.f32 %v7272, %v7339
    %v7343 = vadd.f32 %v7273, %v7339
    %v7344 = vadd.f32 %v7274, %v7339
    %v7345 = vadd.f32 %v7275, %v7339
    %v7346 = vadd.f32 %v7276, %v7339
    %v7347 = vadd.f32 %v7277, %v7339
    %v7348 = vadd.f32 %v7278, %v7339
    %v7349 = vadd.f32 %v7279, %v7339
    %v7350 = vadd.f32 %v7280, %v7339
    %v7351 = vadd.f32 %v7281, %v7339
    %v7352 = vadd.f32 %v7282, %v7339
    %v7353 = vadd.f32 %v7283, %v7339
    %v7354 = vadd.f32 %v7284, %v7339
    %v7355 = vadd.f32 %v7285, %v7339
    %v7356 = vadd.f32 %v7286, %v7339
    %v7357 = vadd.f32 %v7287, %v7339
    %v7358 = vadd.f32 %v7288, %v7339
    %v7359 = vadd.f32 %v7289, %v7339
    %v7360 = vadd.f32 %v7290, %v7339
    %v7361 = vadd.f32 %v7291, %v7339
    %v7362 = vadd.f32 %v7292, %v7339
    %v7363 = vadd.f32 %v7293, %v7339
    %v7364 = vadd.f32 %v7294, %v7339
    %v7365 = vadd.f32 %v7295, %v7339
    %v7366 = vadd.f32 %v7296, %v7339
    %v7367 = vadd.f32 %v7297, %v7339
    %v7368 = vadd.f32 %v7298, %v7339
    %v7369 = vadd.f32 %v7299, %v7339
    %v7370 = vadd.f32 %v7300, %v7339
    %v7371 = vadd.f32 %v7301, %v7339
    %v7372 = vadd.f32 %v7302, %v7339
    %v7373 = vadd.f32 %v7303, %v7339
    %v7374 = vadd.f32 %v7304, %v7339
    %v7375 = vadd.f32 %v7305, %v7339
    %v7376 = vadd.f32 %v7306, %v7339
    %v7377 = vadd.f32 %v7307, %v7339
    %v7378 = vadd.f32 %v7308, %v7339
    %v7379 = vadd.f32 %v7309, %v7339
    %v7380 = vadd.f32 %v7310, %v7339
    %v7381 = vadd.f32 %v7311, %v7339
    %v7382 = vadd.f32 %v7312, %v7339
    %v7383 = vadd.f32 %v7313, %v7339
    %v7384 = vadd.f32 %v7314, %v7339
    %v7385 = vadd.f32 %v7315, %v7339
    %v7386 = vadd.f32 %v7316, %v7339
    %v7387 = vadd.f32 %v7317, %v7339
    %v7388 = vadd.f32 %v7318, %v7339
    %v7389 = vadd.f32 %v7319, %v7339
    %v7390 = vadd.f32 %v7320, %v7339
    %v7391 = vadd.f32 %v7321, %v7339
    %v7392 = vadd.f32 %v7322, %v7339
    %v7393 = vadd.f32 %v7323, %v7339
    %v7394 = vadd.f32 %v7324, %v7339
    %v7395 = vadd.f32 %v7325, %v7339
    %v7396 = vadd.f32 %v7326, %v7339
    %v7397 = vadd.f32 %v7327, %v7339
    %v7398 = vadd.f32 %v7328, %v7339
    %v7399 = vadd.f32 %v7329, %v7339
    %v7400 = vadd.f32 %v7330, %v7339
    %v7401 = vadd.f32 %v7331, %v7339
    %v7402 = vadd.f32 %v7332, %v7339
    %v7403 = vadd.f32 %v7333, %v7339
    %v7404 = vadd.f32 %v7334, %v7339
    %v7405 = vsel %vm2293, %v28, 0.0
    %v7406 = vsel %vm2293, %v29, 0.0
    %v7407 = vsel %vm2293, %v30, 0.0
    %v7408 = vsel %vm2293, %v31, 0.0
    %v7409 = vsel %vm2293, %v32, 0.0
    %v7410 = vsel %vm2293, %v33, 0.0
    %v7411 = vsel %vm2293, %v34, 0.0
    %v7412 = vsel %vm2293, %v35, 0.0
    %v7413 = vsel %vm2293, %v36, 0.0
    %v7414 = vsel %vm2293, %v37, 0.0
    %v7415 = vsel %vm2293, %v38, 0.0
    %v7416 = vsel %vm2293, %v39, 0.0
    %v7417 = vsel %vm2293, %v40, 0.0
    %v7418 = vsel %vm2293, %v41, 0.0
    %v7419 = vsel %vm2293, %v42, 0.0
    %v7420 = vsel %vm2293, %v43, 0.0
    %v7421 = vsel %vm2293, %v44, 0.0
    %v7422 = vsel %vm2293, %v45, 0.0
    %v7423 = vsel %vm2293, %v46, 0.0
    %v7424 = vsel %vm2293, %v47, 0.0
    %v7425 = vsel %vm2293, %v48, 0.0
    %v7426 = vsel %vm2293, %v49, 0.0
    %v7427 = vsel %vm2293, %v50, 0.0
    %v7428 = vsel %vm2293, %v51, 0.0
    %v7429 = vsel %vm2293, %v52, 0.0
    %v7430 = vsel %vm2293, %v53, 0.0
    %v7431 = vsel %vm2293, %v54, 0.0
    %v7432 = vsel %vm2293, %v55, 0.0
    %v7433 = vsel %vm2293, %v56, 0.0
    %v7434 = vsel %vm2293, %v57, 0.0
    %v7435 = vsel %vm2293, %v58, 0.0
    %v7436 = vsel %vm2293, %v59, 0.0
    %v7437 = vsel %vm2293, %v60, 0.0
    %v7438 = vsel %vm2293, %v61, 0.0
    %v7439 = vsel %vm2293, %v62, 0.0
    %v7440 = vsel %vm2293, %v63, 0.0
    %v7441 = vsel %vm2293, %v64, 0.0
    %v7442 = vsel %vm2293, %v65, 0.0
    %v7443 = vsel %vm2293, %v66, 0.0
    %v7444 = vsel %vm2293, %v67, 0.0
    %v7445 = vsel %vm2293, %v68, 0.0
    %v7446 = vsel %vm2293, %v69, 0.0
    %v7447 = vsel %vm2293, %v70, 0.0
    %v7448 = vsel %vm2293, %v71, 0.0
    %v7449 = vsel %vm2293, %v72, 0.0
    %v7450 = vsel %vm2293, %v73, 0.0
    %v7451 = vsel %vm2293, %v74, 0.0
    %v7452 = vsel %vm2293, %v75, 0.0
    %v7453 = vsel %vm2293, %v76, 0.0
    %v7454 = vsel %vm2293, %v77, 0.0
    %v7455 = vsel %vm2293, %v78, 0.0
    %v7456 = vsel %vm2293, %v79, 0.0
    %v7457 = vsel %vm2293, %v80, 0.0
    %v7458 = vsel %vm2293, %v81, 0.0
    %v7459 = vsel %vm2293, %v82, 0.0
    %v7460 = vsel %vm2293, %v83, 0.0
    %v7461 = vsel %vm2293, %v84, 0.0
    %v7462 = vsel %vm2293, %v85, 0.0
    %v7463 = vsel %vm2293, %v86, 0.0
    %v7464 = vsel %vm2293, %v87, 0.0
    %v7465 = vsel %vm2293, %v88, 0.0
    %v7466 = vsel %vm2293, %v89, 0.0
    %v7467 = vsel %vm2293, %v90, 0.0
    %v7468 = vsel %vm2293, %v91, 0.0
    %v7469 = vadd.f32 %v7341, %v7405
    %v7470 = vadd.f32 %v7342, %v7406
    %v7471 = vadd.f32 %v7343, %v7407
    %v7472 = vadd.f32 %v7344, %v7408
    %v7473 = vadd.f32 %v7345, %v7409
    %v7474 = vadd.f32 %v7346, %v7410
    %v7475 = vadd.f32 %v7347, %v7411
    %v7476 = vadd.f32 %v7348, %v7412
    %v7477 = vadd.f32 %v7349, %v7413
    %v7478 = vadd.f32 %v7350, %v7414
    %v7479 = vadd.f32 %v7351, %v7415
    %v7480 = vadd.f32 %v7352, %v7416
    %v7481 = vadd.f32 %v7353, %v7417
    %v7482 = vadd.f32 %v7354, %v7418
    %v7483 = vadd.f32 %v7355, %v7419
    %v7484 = vadd.f32 %v7356, %v7420
    %v7485 = vadd.f32 %v7357, %v7421
    %v7486 = vadd.f32 %v7358, %v7422
    %v7487 = vadd.f32 %v7359, %v7423
    %v7488 = vadd.f32 %v7360, %v7424
    %v7489 = vadd.f32 %v7361, %v7425
    %v7490 = vadd.f32 %v7362, %v7426
    %v7491 = vadd.f32 %v7363, %v7427
    %v7492 = vadd.f32 %v7364, %v7428
    %v7493 = vadd.f32 %v7365, %v7429
    %v7494 = vadd.f32 %v7366, %v7430
    %v7495 = vadd.f32 %v7367, %v7431
    %v7496 = vadd.f32 %v7368, %v7432
    %v7497 = vadd.f32 %v7369, %v7433
    %v7498 = vadd.f32 %v7370, %v7434
    %v7499 = vadd.f32 %v7371, %v7435
    %v7500 = vadd.f32 %v7372, %v7436
    %v7501 = vadd.f32 %v7373, %v7437
    %v7502 = vadd.f32 %v7374, %v7438
    %v7503 = vadd.f32 %v7375, %v7439
    %v7504 = vadd.f32 %v7376, %v7440
    %v7505 = vadd.f32 %v7377, %v7441
    %v7506 = vadd.f32 %v7378, %v7442
    %v7507 = vadd.f32 %v7379, %v7443
    %v7508 = vadd.f32 %v7380, %v7444
    %v7509 = vadd.f32 %v7381, %v7445
    %v7510 = vadd.f32 %v7382, %v7446
    %v7511 = vadd.f32 %v7383, %v7447
    %v7512 = vadd.f32 %v7384, %v7448
    %v7513 = vadd.f32 %v7385, %v7449
    %v7514 = vadd.f32 %v7386, %v7450
    %v7515 = vadd.f32 %v7387, %v7451
    %v7516 = vadd.f32 %v7388, %v7452
    %v7517 = vadd.f32 %v7389, %v7453
    %v7518 = vadd.f32 %v7390, %v7454
    %v7519 = vadd.f32 %v7391, %v7455
    %v7520 = vadd.f32 %v7392, %v7456
    %v7521 = vadd.f32 %v7393, %v7457
    %v7522 = vadd.f32 %v7394, %v7458
    %v7523 = vadd.f32 %v7395, %v7459
    %v7524 = vadd.f32 %v7396, %v7460
    %v7525 = vadd.f32 %v7397, %v7461
    %v7526 = vadd.f32 %v7398, %v7462
    %v7527 = vadd.f32 %v7399, %v7463
    %v7528 = vadd.f32 %v7400, %v7464
    %v7529 = vadd.f32 %v7401, %v7465
    %v7530 = vadd.f32 %v7402, %v7466
    %v7531 = vadd.f32 %v7403, %v7467
    %v7532 = vadd.f32 %v7404, %v7468
    %v7533 = vmax.f32 %v7469, 0.0
    %v7534 = vmax.f32 %v7470, 0.0
    %v7535 = vmax.f32 %v7471, 0.0
    %v7536 = vmax.f32 %v7472, 0.0
    %v7537 = vmax.f32 %v7473, 0.0
    %v7538 = vmax.f32 %v7474, 0.0
    %v7539 = vmax.f32 %v7475, 0.0
    %v7540 = vmax.f32 %v7476, 0.0
    %v7541 = vmax.f32 %v7477, 0.0
    %v7542 = vmax.f32 %v7478, 0.0
    %v7543 = vmax.f32 %v7479, 0.0
    %v7544 = vmax.f32 %v7480, 0.0
    %v7545 = vmax.f32 %v7481, 0.0
    %v7546 = vmax.f32 %v7482, 0.0
    %v7547 = vmax.f32 %v7483, 0.0
    %v7548 = vmax.f32 %v7484, 0.0
    %v7549 = vmax.f32 %v7485, 0.0
    %v7550 = vmax.f32 %v7486, 0.0
    %v7551 = vmax.f32 %v7487, 0.0
    %v7552 = vmax.f32 %v7488, 0.0
    %v7553 = vmax.f32 %v7489, 0.0
    %v7554 = vmax.f32 %v7490, 0.0
    %v7555 = vmax.f32 %v7491, 0.0
    %v7556 = vmax.f32 %v7492, 0.0
    %v7557 = vmax.f32 %v7493, 0.0
    %v7558 = vmax.f32 %v7494, 0.0
    %v7559 = vmax.f32 %v7495, 0.0
    %v7560 = vmax.f32 %v7496, 0.0
    %v7561 = vmax.f32 %v7497, 0.0
    %v7562 = vmax.f32 %v7498, 0.0
    %v7563 = vmax.f32 %v7499, 0.0
    %v7564 = vmax.f32 %v7500, 0.0
    %v7565 = vmax.f32 %v7501, 0.0
    %v7566 = vmax.f32 %v7502, 0.0
    %v7567 = vmax.f32 %v7503, 0.0
    %v7568 = vmax.f32 %v7504, 0.0
    %v7569 = vmax.f32 %v7505, 0.0
    %v7570 = vmax.f32 %v7506, 0.0
    %v7571 = vmax.f32 %v7507, 0.0
    %v7572 = vmax.f32 %v7508, 0.0
    %v7573 = vmax.f32 %v7509, 0.0
    %v7574 = vmax.f32 %v7510, 0.0
    %v7575 = vmax.f32 %v7511, 0.0
    %v7576 = vmax.f32 %v7512, 0.0
    %v7577 = vmax.f32 %v7513, 0.0
    %v7578 = vmax.f32 %v7514, 0.0
    %v7579 = vmax.f32 %v7515, 0.0
    %v7580 = vmax.f32 %v7516, 0.0
    %v7581 = vmax.f32 %v7517, 0.0
    %v7582 = vmax.f32 %v7518, 0.0
    %v7583 = vmax.f32 %v7519, 0.0
    %v7584 = vmax.f32 %v7520, 0.0
    %v7585 = vmax.f32 %v7521, 0.0
    %v7586 = vmax.f32 %v7522, 0.0
    %v7587 = vmax.f32 %v7523, 0.0
    %v7588 = vmax.f32 %v7524, 0.0
    %v7589 = vmax.f32 %v7525, 0.0
    %v7590 = vmax.f32 %v7526, 0.0
    %v7591 = vmax.f32 %v7527, 0.0
    %v7592 = vmax.f32 %v7528, 0.0
    %v7593 = vmax.f32 %v7529, 0.0
    %v7594 = vmax.f32 %v7530, 0.0
    %v7595 = vmax.f32 %v7531, 0.0
    %v7596 = vmax.f32 %v7532, 0.0
    %7597 = vst [vmem:[#allocation2] sm:$0xff] %v7533
    %7598 = vst [vmem:[#allocation2 + $0x8] sm:$0xff] %v7534
    %7599 = vst [vmem:[#allocation2 + $0x10] sm:$0xff] %v7535
    %7600 = vst [vmem:[#allocation2 + $0x18] sm:$0xff] %v7536
    %7601 = vst [vmem:[#allocation2 + $0x20] sm:$0xff] %v7537
    %7602 = vst [vmem:[#allocation2 + $0x28] sm:$0xff] %v7538
    %7603 = vst [vmem:[#allocation2 + $0x30] sm:$0xff] %v7539
    %7604 = vst [vmem:[#allocation2 + $0x38] sm:$0xff] %v7540
    %7605 = vst [vmem:[#allocation2 + $0x40] sm:$0xff] %v7541
    %7606 = vst [vmem:[#allocation2 + $0x48] sm:$0xff] %v7542
    %7607 = vst [vmem:[#allocation2 + $0x50] sm:$0xff] %v7543
    %7608 = vst [vmem:[#allocation2 + $0x58] sm:$0xff] %v7544
    %7609 = vst [vmem:[#allocation2 + $0x60] sm:$0xff] %v7545
    %7610 = vst [vmem:[#allocation2 + $0x68] sm:$0xff] %v7546
    %7611 = vst [vmem:[#allocation2 + $0x70] sm:$0xff] %v7547
    %7612 = vst [vmem:[#allocation2 + $0x78] sm:$0xff] %v7548
    %7613 = vst [vmem:[#allocation2 + $0x80] sm:$0xff] %v7549
    %7614 = vst [vmem:[#allocation2 + $0x88] sm:$0xff] %v7550
    %7615 = vst [vmem:[#allocation2 + $0x90] sm:$0xff] %v7551
    %7616 = vst [vmem:[#allocation2 + $0x98] sm:$0xff] %v7552
    %7617 = vst [vmem:[#allocation2 + $0xa0] sm:$0xff] %v7553
    %7618 = vst [vmem:[#allocation2 + $0xa8] sm:$0xff] %v7554
    %7619 = vst [vmem:[#allocation2 + $0xb0] sm:$0xff] %v7555
    %7620 = vst [vmem:[#allocation2 + $0xb8] sm:$0xff] %v7556
    %7621 = vst [vmem:[#allocation2 + $0xc0] sm:$0xff] %v7557
    %7622 = vst [vmem:[#allocation2 + $0xc8] sm:$0xff] %v7558
    %7623 = vst [vmem:[#allocation2 + $0xd0] sm:$0xff] %v7559
    %7624 = vst [vmem:[#allocation2 + $0xd8] sm:$0xff] %v7560
    %7625 = vst [vmem:[#allocation2 + $0xe0] sm:$0xff] %v7561
    %7626 = vst [vmem:[#allocation2 + $0xe8] sm:$0xff] %v7562
    %7627 = vst [vmem:[#allocation2 + $0xf0] sm:$0xff] %v7563
    %7628 = vst [vmem:[#allocation2 + $0xf8] sm:$0xff] %v7564
    %7629 = vst [vmem:[#allocation2 + $0x100] sm:$0xff] %v7565
    %7630 = vst [vmem:[#allocation2 + $0x108] sm:$0xff] %v7566
    %7631 = vst [vmem:[#allocation2 + $0x110] sm:$0xff] %v7567
    %7632 = vst [vmem:[#allocation2 + $0x118] sm:$0xff] %v7568
    %7633 = vst [vmem:[#allocation2 + $0x120] sm:$0xff] %v7569
    %7634 = vst [vmem:[#allocation2 + $0x128] sm:$0xff] %v7570
    %7635 = vst [vmem:[#allocation2 + $0x130] sm:$0xff] %v7571
    %7636 = vst [vmem:[#allocation2 + $0x138] sm:$0xff] %v7572
    %7637 = vst [vmem:[#allocation2 + $0x140] sm:$0xff] %v7573
    %7638 = vst [vmem:[#allocation2 + $0x148] sm:$0xff] %v7574
    %7639 = vst [vmem:[#allocation2 + $0x150] sm:$0xff] %v7575
    %7640 = vst [vmem:[#allocation2 + $0x158] sm:$0xff] %v7576
    %7641 = vst [vmem:[#allocation2 + $0x160] sm:$0xff] %v7577
    %7642 = vst [vmem:[#allocation2 + $0x168] sm:$0xff] %v7578
    %7643 = vst [vmem:[#allocation2 + $0x170] sm:$0xff] %v7579
    %7644 = vst [vmem:[#allocation2 + $0x178] sm:$0xff] %v7580
    %7645 = vst [vmem:[#allocation2 + $0x180] sm:$0xff] %v7581
    %7646 = vst [vmem:[#allocation2 + $0x188] sm:$0xff] %v7582
    %7647 = vst [vmem:[#allocation2 + $0x190] sm:$0xff] %v7583
    %7648 = vst [vmem:[#allocation2 + $0x198] sm:$0xff] %v7584
    %7649 = vst [vmem:[#allocation2 + $0x1a0] sm:$0xff] %v7585
    %7650 = vst [vmem:[#allocation2 + $0x1a8] sm:$0xff] %v7586
    %7651 = vst [vmem:[#allocation2 + $0x1b0] sm:$0xff] %v7587
    %7652 = vst [vmem:[#allocation2 + $0x1b8] sm:$0xff] %v7588
    %7653 = vst [vmem:[#allocation2 + $0x1c0] sm:$0xff] %v7589
    %7654 = vst [vmem:[#allocation2 + $0x1c8] sm:$0xff] %v7590
    %7655 = vst [vmem:[#allocation2 + $0x1d0] sm:$0xff] %v7591
    %7656 = vst [vmem:[#allocation2 + $0x1d8] sm:$0xff] %v7592
    %7657 = vst [vmem:[#allocation2 + $0x1e0] sm:$0xff] %v7593
    %7658 = vst [vmem:[#allocation2 + $0x1e8] sm:$0xff] %v7594
    %7659 = vst [vmem:[#allocation2 + $0x1f0] sm:$0xff] %v7595
    %7660 = vst [vmem:[#allocation2 + $0x1f8] sm:$0xff] %v7596
    // Predicated region
    $region30: #{tpu_custom_call.1} parent=1 // pred_check
      _
    $region31: #{tpu_custom_call.1} parent=1 // pred_check_branch
      %7662 = sbr.rel (0) target = $region33
    $region32: #{tpu_custom_call.1} parent=1 // pred_region
      %s7664 = ssub.s32 8192, 8192
      %7665 = vsyncadd [#allocation3], %s7664
      %s7666 = sshll.u32 [#allocation2], 4
      %s7667 = int_to_ptr.vmem [resolvable:$true] %s7666
      %7672 = dma.vmem_to_hbm [thread:$0]  %s7667, 8192, %s7, [#allocation3], 128, 128, 8
    $region33: #{tpu_custom_call.1} parent=1 // pred_fallthru
      _
    // Predicated region
    $region34: #{tpu_custom_call.1} parent=1 // pred_check
      _
    $region35: #{tpu_custom_call.1} parent=1 // pred_check_branch
      %7674 = sbr.rel (0) target = $region37
    $region36: #{tpu_custom_call.1} parent=1 // pred_region
      %7675 = dma.done [#allocation3], 8192
    $region37: #{tpu_custom_call.1} parent=1 // pred_fallthru
      _
    %7676 = vsyncpa [#allocation3], 1

</llo_original>
